<compile_context>
chip_gen: v7x
topology: tpu7x:2x2x1
jax: 0.10.0
libtpu: 0.0.40
codegen_flags: <defaults>
</compile_context>

<pallas_src>
import math
import functools

import numpy as np
import jax
import jax.numpy as jnp
from jax.experimental import pallas as pl
from jax.experimental.pallas import tpu as pltpu

# ----------------------------------------------------------------------------
# config (small shapes consistent with the module)
# ----------------------------------------------------------------------------
CFG = dict(
    hidden_dim=32,      # D
    num_heads=2,        # H  (head_dim = 16)
    horizon=2,          # planning horizon
    max_dof=3,          # => N = max_dof + 1 = 4 dof tokens
    num_layers=2,       # transformer encoder blocks
    train_steps=100,    # DDPM train timesteps
    freq_embed=256,     # timestep-embedding frequency size
    mlp_ratio=4,        # DiT MLP ratio
)
NEG = -1e30  # stands in for float('-inf'); identical post-softmax


# ----------------------------------------------------------------------------
# in-kernel helpers
# ----------------------------------------------------------------------------
def _layernorm(x, eps=1e-6):
    # LayerNorm(elementwise_affine=False), DiT style
    mu = jnp.mean(x, axis=-1, keepdims=True)
    xc = x - mu
    var = jnp.mean(xc * xc, axis=-1, keepdims=True)
    return xc * jax.lax.rsqrt(var + eps)


def _rup8(n):
    return ((n + 7) // 8) * 8


# ----------------------------------------------------------------------------
# weight-slab layout: every kernel weight lives in one (rows, 128) f32 buffer
# ----------------------------------------------------------------------------
def make_slab_layout(cfg, rows):
    D = cfg['hidden_dim']
    L = cfg['num_layers']
    Dm = cfg['mlp_ratio'] * D
    assert 4 * D <= 128 and Dm <= 128 and L * D <= 128, "slab packing assumes D=32-ish"
    layout = {}
    off = 0

    def add(name, nr):
        nonlocal off
        nr_pad = _rup8(nr)
        layout[name] = (off, nr_pad)
        off += nr_pad

    add('w_emb', 32)          # block-diag (noisy|ref) 9->D proj, padded to 32 rows, cols 0:D
    add('posb', rows)         # pos-embeddings + proj biases, tiled per batch chunk, cols 0:D
    add('bias', 3 * L + 1)    # row 3l: qkv|proj bias, 3l+1: mlp1 bias, 3l+2: mlp2 bias, 3L: final bias
    for l in range(L):
        add('attn%d' % l, D)  # cols [0,3D)=w_qkv, [3D,4D)=w_proj
    for l in range(L):
        add('mlp1_%d' % l, D)  # (D, Dm)
    add('mlp2', Dm)           # layer l in cols [l*D, (l+1)*D)
    add('w_fl', D)            # cols [0,9) real weights, rest zero (lane-dense output)
    return layout, off


# ----------------------------------------------------------------------------
# fused kernel: embed -> num_layers x DiT block -> FinalLayer
# one grid step == one batch chunk (chunk = whole batch on v5e/v6e, 1 elem on v7x)
# ----------------------------------------------------------------------------
def fused_policy_kernel(poses_ref, ada_ref, mask_ref, slab_ref, o_ref, *,
                        num_heads, num_layers, hidden_dim, mlp_dim, rows, layout):
    f32 = jnp.float32
    D = hidden_dim
    Dm = mlp_dim
    hd = D // num_heads
    sm_scale = 1.0 / math.sqrt(hd)

    def region(name):
        r0, nr = layout[name]
        return slab_ref[r0:r0 + nr, :]               # full-lane (nr, 128) load

    poses = poses_ref[0]                             # (rows, 32)
    mask = mask_ref[0]                               # (rows, rows)  (block-diag if batch merged)
    biases = region('bias')                          # (8, 128)

    # --- embedding: one block-diagonal (32 -> D) matmul; pos-emb + Linear biases
    #     are pre-folded into the 'posb' slab region (one add, no concats)
    x = (jnp.dot(poses, region('w_emb')[:, :D], preferred_element_type=f32)
         + region('posb')[:rows, :D])                # (rows, D)

    for l in range(num_layers):
        shift_msa = ada_ref[0, 6 * l + 0]            # (rows, D) — precomputed adaLN(c)
        scale_msa = ada_ref[0, 6 * l + 1]
        gate_msa = ada_ref[0, 6 * l + 2]
        shift_mlp = ada_ref[0, 6 * l + 3]
        scale_mlp = ada_ref[0, 6 * l + 4]
        gate_mlp = ada_ref[0, 6 * l + 5]

        # --- attention branch: ONE fused (rows, D) @ (D, 3D) QKV matmul ---
        h = _layernorm(x) * (1.0 + scale_msa) + shift_msa
        attn_w = region('attn%d' % l)                # (D, 128): [:, :3D]=qkv, [:, 3D:4D]=proj
        b_row = biases[3 * l:3 * l + 1, :]           # (1, 128): [:3D]=qkv bias, [3D:4D]=proj bias
        qkv = (jnp.dot(h, attn_w[:, :3 * D], preferred_element_type=f32)
               + b_row[:, :3 * D])                   # (rows, 3D)

        heads = []
        for hi in range(num_heads):
            # static lane slices (offsets 0..3D-1 sit inside one 128-lane vreg)
            q = qkv[:, hi * hd:(hi + 1) * hd]
            k = qkv[:, D + hi * hd:D + (hi + 1) * hd]
            v = qkv[:, 2 * D + hi * hd:2 * D + (hi + 1) * hd]
            s = jax.lax.dot_general(q, k, (((1,), (1,)), ((), ())),
                                    preferred_element_type=f32) * sm_scale
            s = s + mask                             # additive mask
            s = s - jnp.max(s, axis=-1, keepdims=True)
            p = jnp.exp(s)
            p = p * pl.reciprocal(jnp.sum(p, axis=-1, keepdims=True), approx=True)
            heads.append(jnp.dot(p, v, preferred_element_type=f32))   # (rows, hd)
        oh = jnp.concatenate(heads, axis=-1)         # (rows, D): cheap lane concat
        attn = (jnp.dot(oh, attn_w[:, 3 * D:4 * D], preferred_element_type=f32)
                + b_row[:, 3 * D:4 * D])             # ONE (rows,D)@(D,D) out-proj push
        x = x + gate_msa * attn

        # --- MLP branch ---
        h2 = _layernorm(x) * (1.0 + scale_mlp) + shift_mlp
        h2 = (jnp.dot(h2, region('mlp1_%d' % l)[:, :Dm], preferred_element_type=f32)
              + biases[3 * l + 1:3 * l + 2, :Dm])
        h2 = jax.nn.gelu(h2, approximate=True)       # tanh GELU (DiT convention)
        h2 = (jnp.dot(h2, region('mlp2')[:, l * D:(l + 1) * D],
                      preferred_element_type=f32)
              + biases[3 * l + 2:3 * l + 3, :D])
        x = x + gate_mlp * h2

    # --- FinalLayer: precomputed adaLN (shift, scale) + LayerNorm + padded Linear ---
    fshift = ada_ref[0, 6 * num_layers + 0]
    fscale = ada_ref[0, 6 * num_layers + 1]
    hf = _layernorm(x) * (1.0 + fscale) + fshift
    # w_fl padded to (D, 128) (cols 9: zero) -> unmasked full-lane output store
    o_ref[0] = (jnp.dot(hf, region('w_fl'), preferred_element_type=f32)
                + biases[3 * num_layers:3 * num_layers + 1, :])


# ----------------------------------------------------------------------------
# pallas_call wrapper
# ----------------------------------------------------------------------------
def _cost_estimate(G, rows, cfg, bytes_accessed):
    D = cfg['hidden_dim']
    H = cfg['num_heads']
    hd = D // H
    L = cfg['num_layers']
    Dm = cfg['mlp_ratio'] * D
    per = 2 * rows * 32 * D                                    # embed
    per += L * (2 * rows * D * 3 * D                           # fused qkv
                + H * (2 * rows * rows * hd * 2)               # scores + p@v
                + 2 * rows * D * D                             # fused out proj
                + 2 * 2 * rows * D * Dm)                       # MLP
    per += 2 * rows * D * 128                                  # final layer (lane-padded)
    trans = G * (L * (H * rows * rows + rows * Dm))            # exp / gelu
    return pl.CostEstimate(flops=int(G * per), transcendentals=int(trans),
                           bytes_accessed=int(bytes_accessed))


def run_fused(poses, ada, mask, slab, layout, cfg, rows):
    G = poses.shape[0]
    D = cfg['hidden_dim']
    n_ada = ada.shape[1]
    slab_rows = slab.shape[0]

    kern = functools.partial(
        fused_policy_kernel,
        num_heads=cfg['num_heads'], num_layers=cfg['num_layers'],
        hidden_dim=D, mlp_dim=cfg['mlp_ratio'] * D, rows=rows, layout=layout)

    bytes_accessed = 4 * (poses.size + ada.size + mask.size + slab.size
                          + G * rows * 128)

    return pl.pallas_call(
        kern,
        grid=(G,),
        in_specs=[
            pl.BlockSpec((1, rows, poses.shape[-1]), lambda g: (g, 0, 0)),   # pose tokens
            pl.BlockSpec((1, n_ada, rows, D), lambda g: (g, 0, 0, 0)),       # adaLN(c), per-row
            pl.BlockSpec((1, rows, rows), lambda g: (g, 0, 0)),              # additive mask
            pl.BlockSpec((slab_rows, 128), lambda g: (0, 0)),                # weight slab (shared)
        ],
        out_specs=pl.BlockSpec((1, rows, 128), lambda g: (g, 0, 0)),
        out_shape=jax.ShapeDtypeStruct((G, rows, 128), jnp.float32),
        compiler_params=pltpu.CompilerParams(
            dimension_semantics=("parallel",),
            vmem_limit_bytes=16 * 1024 * 1024),
        cost_estimate=_cost_estimate(G, rows, cfg, bytes_accessed),
    )(poses, ada, mask, slab)


# ----------------------------------------------------------------------------
# host-side repacking of standard-layout params into the kernel layout
# (pure reshapes / pads / concats: numerically identical to the fused Linears)
# ----------------------------------------------------------------------------
def prepare_kernel_params(params, cfg, batch_chunk):
    D = cfg['hidden_dim']
    L = cfg['num_layers']
    Dm = cfg['mlp_ratio'] * D
    N = cfg['max_dof'] + 1
    Hh = cfg['horizon']
    T = N * (Hh + 1) + 1
    rows = batch_chunk * T
    layout, total = make_slab_layout(cfg, rows)

    slab = jnp.zeros((total, 128), jnp.float32)

    def put(sl, name, arr, col0=0):
        r0, _ = layout[name]
        r, c = arr.shape
        return sl.at[r0:r0 + r, col0:col0 + c].set(arr.astype(jnp.float32))

    # embedding: block-diagonal (noisy rows 0:9 | ref rows 9:18) -> D, zero-padded to 32 rows
    w_emb = jnp.zeros((32, D), jnp.float32)
    w_emb = w_emb.at[0:9].set(params['w_noisy'])
    w_emb = w_emb.at[9:18].set(params['w_ref'])
    slab = put(slab, 'w_emb', w_emb)

    # positional embeddings + the two Linear biases, folded into one (T, D) add, tiled per chunk
    dof_pe = sinusoid_pe(N, D)
    pos_noisy = (jnp.tile(dof_pe, (Hh, 1)) +
                 jnp.repeat(params['hor_emb'], N, axis=0))            # (Tn, D)
    posb = jnp.concatenate([pos_noisy + params['b_noisy'],
                            params['cond_pos'] + params['b_ref']], axis=0)   # (T, D)
    slab = put(slab, 'posb', jnp.tile(posb, (batch_chunk, 1)))

    # biases row-packed
    nb = 3 * L + 1
    bias = jnp.zeros((nb, 128), jnp.float32)
    for l, bp in enumerate(params['blocks']):
        bias = bias.at[3 * l, 0:3 * D].set(bp['b_qkv'][0])
        bias = bias.at[3 * l, 3 * D:4 * D].set(bp['b_proj'][0])
        bias = bias.at[3 * l + 1, 0:Dm].set(bp['b_mlp1'][0])
        bias = bias.at[3 * l + 2, 0:D].set(bp['b_mlp2'][0])
    bias = bias.at[3 * L, 0:9].set(params['f_b_lin'][0])
    slab = put(slab, 'bias', bias)

    # attention / MLP weights
    mlp2_cols = []
    for l, bp in enumerate(params['blocks']):
        slab = put(slab, 'attn%d' % l,
                   jnp.concatenate([bp['w_qkv'], bp['w_proj']], axis=1))   # (D, 4D)
        slab = put(slab, 'mlp1_%d' % l, bp['w_mlp1'])                      # (D, Dm)
        mlp2_cols.append(bp['w_mlp2'])
    slab = put(slab, 'mlp2', jnp.concatenate(mlp2_cols, axis=1))           # (Dm, L*D)
    slab = put(slab, 'w_fl', params['f_w_lin'])                            # (D, 9) -> cols 0:9

    # adaLN conditioning weights (hoisted to the wrapper): one (D, (6L+2)D) matmul
    ada_w = jnp.concatenate([bp['w_ada'] for bp in params['blocks']]
                            + [params['f_w_ada']], axis=1)                 # (D, (6L+2)D)
    ada_b = jnp.concatenate([bp['b_ada'] for bp in params['blocks']]
                            + [params['f_b_ada']], axis=1)                 # (1, (6L+2)D)

    kp = dict(slab=slab, ada_w=ada_w, ada_b=ada_b)
    return kp, layout, rows


def pick_batch_chunk(B):
    # v7x: 2 TensorCores/chip -> 1 batch element per grid step so the parallel
    # grid shards one-per-core.  v5e/v6e: single TC -> merge the whole batch
    # into one grid step (stacked along sublanes, block-diagonal mask) to kill
    # per-step overhead and halve the tiny-MXU-push count.
    try:
        kind = jax.devices()[0].device_kind.lower()
    except Exception:
        kind = ''
    if 'v7' in kind or '7x' in kind:
        return 1
    return B


# ----------------------------------------------------------------------------
# plain-JAX glue (setup / RNG / mask / loss)
# ----------------------------------------------------------------------------
def sinusoid_pe(n, d):
    pos = np.arange(n)[:, None].astype(np.float32)
    div = np.exp(np.arange(0, d, 2).astype(np.float32) * (-math.log(10000.0) / d))
    pe = np.zeros((n, d), np.float32)
    pe[:, 0::2] = np.sin(pos * div)
    pe[:, 1::2] = np.cos(pos * div)
    return jnp.asarray(pe)


def build_causal_mask(cfg):
    N = cfg['max_dof'] + 1
    Hh = cfg['horizon']
    T = N * (Hh + 1) + 1
    C = np.full((N, N), NEG, np.float32)
    for i in range(N):
        C[i, :i + 1] = 0.0
    Dm = np.full((N, N), NEG, np.float32)
    np.fill_diagonal(Dm, 0.0)
    Fm = np.full((N, N), NEG, np.float32)
    M = np.full((Hh * N, Hh * N), NEG, np.float32)
    for i in range(Hh):
        M[i * N:(i + 1) * N, i * N:(i + 1) * N] = C
        for j in range(i):
            M[i * N:(i + 1) * N, j * N:(j + 1) * N] = Dm
        for j in range(i + 1, Hh):
            M[i * N:(i + 1) * N, j * N:(j + 1) * N] = Fm
    causal = np.zeros((T, T), np.float32)
    causal[:N * Hh, :N * Hh] = M
    return jnp.asarray(causal)


def get_mask(dof_mask, causal_mask, cfg):
    # head-deduplicated: (B, T, T) — identical across heads, reused in-kernel
    B, N = dof_mask.shape
    Hh = cfg['horizon']
    T = causal_mask.shape[0]
    dm = jnp.where(dof_mask, jnp.float32(NEG), jnp.float32(0.0))   # (B, N)
    ext = jnp.broadcast_to(dm[:, None, :], (B, T, N))              # (B, T, N)
    ext = jnp.tile(ext, (1, 1, Hh + 1))                            # (B, T, T-1)
    mask = jnp.broadcast_to(causal_mask[None], (B, T, T))
    mask = mask.at[..., :-1].add(ext)
    return mask.astype(jnp.float32)


def chunk_block_mask(mask, batch_chunk):
    # stack `batch_chunk` elements along sublanes with a block-diagonal mask
    B, T, _ = mask.shape
    if batch_chunk == 1:
        return mask
    G = B // batch_chunk
    R = batch_chunk * T
    mm = mask.reshape(G, batch_chunk, T, T)
    out = jnp.full((G, R, R), jnp.float32(NEG), jnp.float32)
    for i in range(batch_chunk):
        out = out.at[:, i * T:(i + 1) * T, i * T:(i + 1) * T].set(mm[:, i])
    return out


def timestep_embed(t, params, cfg):
    half = cfg['freq_embed'] // 2
    freqs = jnp.exp(-math.log(10000.0) *
                    jnp.arange(half, dtype=jnp.float32) / half)
    args = t.astype(jnp.float32)[:, None] * freqs[None, :]
    emb = jnp.concatenate([jnp.cos(args), jnp.sin(args)], axis=-1)  # (B, freq)
    h = emb @ params['t_w0'] + params['t_b0']
    h = jax.nn.silu(h)
    h = h @ params['t_w2'] + params['t_b2']
    return h  # (B, D)


# ----------------------------------------------------------------------------
# deterministic parameter init
# NOTE: the torch module zero-inits adaLN / final_layer weights, which would
# make the network output identically zero.  Here we use deterministic random
# (xavier-uniform-style) values so the kernels do non-trivial work.
# ----------------------------------------------------------------------------
def xavier(key, fan_in, fan_out):
    lim = math.sqrt(6.0 / (fan_in + fan_out))
    return jax.random.uniform(key, (fan_in, fan_out), jnp.float32, -lim, lim)


def init_params(key, cfg):
    D = cfg['hidden_dim']
    N = cfg['max_dof'] + 1
    Dm = cfg['mlp_ratio'] * D
    F = cfg['freq_embed']
    keys = iter(jax.random.split(key, 64))
    p = dict(
        w_noisy=xavier(next(keys), 9, D), b_noisy=jnp.zeros((1, D), jnp.float32),
        w_ref=xavier(next(keys), 9, D), b_ref=jnp.zeros((1, D), jnp.float32),
        hor_emb=jax.random.normal(next(keys), (cfg['horizon'], D), jnp.float32),
        cond_pos=0.02 * jax.random.normal(next(keys), (N + 1, D), jnp.float32),
        t_w0=0.02 * jax.random.normal(next(keys), (F, D), jnp.float32),
        t_b0=jnp.zeros((D,), jnp.float32),
        t_w2=0.02 * jax.random.normal(next(keys), (D, D), jnp.float32),
        t_b2=jnp.zeros((D,), jnp.float32),
        f_w_ada=xavier(next(keys), D, 2 * D), f_b_ada=jnp.zeros((1, 2 * D), jnp.float32),
        f_w_lin=xavier(next(keys), D, 9), f_b_lin=jnp.zeros((1, 9), jnp.float32),
    )
    blocks = []
    for _ in range(cfg['num_layers']):
        blocks.append(dict(
            w_ada=xavier(next(keys), D, 6 * D), b_ada=jnp.zeros((1, 6 * D), jnp.float32),
            w_qkv=xavier(next(keys), D, 3 * D), b_qkv=jnp.zeros((1, 3 * D), jnp.float32),
            w_proj=xavier(next(keys), D, D), b_proj=jnp.zeros((1, D), jnp.float32),
            w_mlp1=xavier(next(keys), D, Dm), b_mlp1=jnp.zeros((1, Dm), jnp.float32),
            w_mlp2=xavier(next(keys), Dm, D), b_mlp2=jnp.zeros((1, D), jnp.float32),
        ))
    p['blocks'] = blocks
    return p


# ----------------------------------------------------------------------------
# full policy forward (training forward of MultistepPosePlanningPolicy)
# ----------------------------------------------------------------------------
def policy_forward(kp, params, data, key, *, cfg, causal_mask, layout, rows, batch_chunk):
    B = data['TAB_9d_h'].shape[0]
    D = cfg['hidden_dim']
    N = cfg['max_dof'] + 1
    Hh = cfg['horizon']
    L = cfg['num_layers']
    Tn = N * Hh
    T = N * (Hh + 1) + 1
    assert rows == batch_chunk * T and B % batch_chunk == 0

    rel_poses = data['TAB_9d_h'].reshape(B, -1, 9)                  # (B, Tn, 9)

    k1, k2 = jax.random.split(key)
    timesteps = jax.random.randint(k1, (B,), 0, cfg['train_steps'])
    noise = jax.random.normal(k2, rel_poses.shape, jnp.float32)

    # DDPM add_noise (linear beta schedule) -- glue
    betas = jnp.linspace(1e-4, 0.02, cfg['train_steps'], dtype=jnp.float32)
    acp = jnp.cumprod(1.0 - betas)
    sa = jnp.sqrt(acp[timesteps])[:, None, None]
    sb = jnp.sqrt(1.0 - acp[timesteps])[:, None, None]
    noisy_rel = sa * rel_poses + sb * noise

    # pose tokens: noisy rows in cols 0:9, cond rows in cols 9:18, zero-padded to 32 lanes
    cond9 = jnp.concatenate([data['PA_9d'],
                             data['goal_pose_9d'][:, None, :]], axis=1)     # (B, N+1, 9)
    poses = jnp.zeros((B, T, 32), jnp.float32)
    poses = poses.at[:, :Tn, 0:9].set(noisy_rel)
    poses = poses.at[:, Tn:, 9:18].set(cond9)

    # attention mask (head-deduplicated), then per-chunk block-diagonal
    mask = get_mask(data['dof_mask'], causal_mask, cfg)             # (B, T, T)

    # adaLN conditioning hoisted out of the kernel: ONE (B,D)@(D,(6L+2)D) matmul
    c = timestep_embed(timesteps, params, cfg)                      # (B, D)
    n_ada = 6 * L + 2
    ada = jax.nn.silu(c) @ kp['ada_w'] + kp['ada_b']                # (B, n_ada*D)
    ada = ada.reshape(B, n_ada, D)

    Bc = batch_chunk
    G = B // Bc
    poses_g = poses.reshape(G, Bc * T, 32)
    mask_g = chunk_block_mask(mask, Bc)                             # (G, R, R)
    ada_g = jnp.repeat(ada[:, :, None, :], T, axis=2)               # (B, n_ada, T, D)
    ada_g = (ada_g.reshape(G, Bc, n_ada, T, D)
             .transpose(0, 2, 1, 3, 4).reshape(G, n_ada, Bc * T, D))

    # --- Pallas hot path: one fused call, 4 inputs total ---
    out = run_fused(poses_g, ada_g, mask_g, kp['slab'], layout, cfg, rows)  # (G, R, 128)
    out = out.reshape(B, T, 128)[..., :9]                           # lane-dense store, slice here

    # masked MSE loss (boolean row-select implemented as masked mean)
    pred = out[:, :Tn]
    keep = jnp.logical_not(jnp.tile(data['dof_mask'], (1, Hh)))     # (B, Tn)
    se = (pred - noise) ** 2
    loss = jnp.sum(se * keep[..., None].astype(jnp.float32)) / (
        jnp.sum(keep).astype(jnp.float32) * 9.0)
    return loss, out


# ----------------------------------------------------------------------------
if __name__ == "__main__":
    key = jax.random.PRNGKey(0)
    kparam, kd1, kd2, kd3, kf = jax.random.split(key, 5)

    cfg = CFG
    B = 2
    N = cfg['max_dof'] + 1
    Hh = cfg['horizon']

    params = init_params(kparam, cfg)
    causal_mask = build_causal_mask(cfg)

    data = dict(
        TAB_9d_h=jax.random.normal(kd1, (B, Hh, N, 9), jnp.float32),
        PA_9d=jax.random.normal(kd2, (B, N, 9), jnp.float32),
        goal_pose_9d=jax.random.normal(kd3, (B, 9), jnp.float32),
        dof_mask=jnp.array([[False, False, False, True],
                            [False, False, True, True]]),
    )

    Bc = pick_batch_chunk(B)
    if B % Bc != 0:
        Bc = 1
    kp, layout, rows = prepare_kernel_params(params, cfg, Bc)

    fwd = jax.jit(functools.partial(
        policy_forward, cfg=cfg, causal_mask=causal_mask,
        layout=layout, rows=rows, batch_chunk=Bc))
    loss, residual = fwd(kp, params, data, kf)
    jax.block_until_ready((loss, residual))
    assert residual.shape == (B, N * (Hh + 1) + 1, 9)
    assert bool(jnp.isfinite(loss))
    print("KERNEL_OK")
</pallas_src>

<mosaic_0001>
module attributes {stable_mosaic.version = 11 : i64} {
  func.func @fused_policy_kernel(%arg0: i32, %arg1: memref<1x26x32xf32, #tpu.memory_space<vmem>>, %arg2: memref<1x14x26x32xf32, #tpu.memory_space<vmem>>, %arg3: memref<1x26x26xf32, #tpu.memory_space<vmem>>, %arg4: memref<360x128xf32, #tpu.memory_space<vmem>>, %arg5: memref<1x26x128xf32, #tpu.memory_space<vmem>>) attributes {dimension_semantics = [#tpu.dimension_semantics<parallel>], iteration_bounds = array<i64: 1>, scalar_prefetch = 0 : i64, scratch_operands = 0 : i64, tpu.core_type = #tpu.core_type<tc>, window_params = [{transform_indices = @transform_0, window_bounds = array<i64: 1, 26, 32>}, {transform_indices = @transform_1, window_bounds = array<i64: 1, 14, 26, 32>}, {transform_indices = @transform_2, window_bounds = array<i64: 1, 26, 26>}, {pipeline_mode = #tpu.pipeline_mode<synchronous>, transform_indices = @transform_3, window_bounds = array<i64: 360, 128>}, {transform_indices = @transform_4, window_bounds = array<i64: 1, 26, 128>}]} {
    %c0 = arith.constant 0 : index
    %c0_0 = arith.constant 0 : index
    %c0_1 = arith.constant 0 : index
    %0 = vector.load %arg1[%c0, %c0_0, %c0_1] : memref<1x26x32xf32, #tpu.memory_space<vmem>>, vector<1x26x32xf32>
    %1 = vector.shape_cast %0 : vector<1x26x32xf32> to vector<26x32xf32>
    %c0_2 = arith.constant 0 : index
    %c0_3 = arith.constant 0 : index
    %c0_4 = arith.constant 0 : index
    %2 = vector.load %arg3[%c0_2, %c0_3, %c0_4] : memref<1x26x26xf32, #tpu.memory_space<vmem>>, vector<1x26x26xf32>
    %3 = vector.shape_cast %2 : vector<1x26x26xf32> to vector<26x26xf32>
    %c64 = arith.constant 64 : index
    %c0_5 = arith.constant 0 : index
    %4 = vector.load %arg4[%c64, %c0_5] : memref<360x128xf32, #tpu.memory_space<vmem>>, vector<8x128xf32>
    %c0_6 = arith.constant 0 : index
    %c0_7 = arith.constant 0 : index
    %5 = vector.load %arg4[%c0_6, %c0_7] : memref<360x128xf32, #tpu.memory_space<vmem>>, vector<32x128xf32>
    %6 = vector.extract_strided_slice %5 {offsets = [0, 0], sizes = [32, 32], strides = [1, 1]} : vector<32x128xf32> to vector<32x32xf32>
    %cst = arith.constant dense<0.000000e+00> : vector<26x32xf32>
    %7 = tpu.matmul %1, %6, %cst {dimension_numbers = #tpu.dot_dimension_numbers<[1], [0], [0], [1], [0, 0, 1, 1], [], []>} : vector<26x32xf32>, vector<32x32xf32>, vector<26x32xf32> -> vector<26x32xf32>
    %c32 = arith.constant 32 : index
    %c0_8 = arith.constant 0 : index
    %8 = vector.load %arg4[%c32, %c0_8] : memref<360x128xf32, #tpu.memory_space<vmem>>, vector<32x128xf32>
    %9 = vector.extract_strided_slice %8 {offsets = [0, 0], sizes = [26, 32], strides = [1, 1]} : vector<32x128xf32> to vector<26x32xf32>
    %10 = arith.addf %7, %9 : vector<26x32xf32>
    %c0_9 = arith.constant 0 : index
    %c0_10 = arith.constant 0 : index
    %c0_11 = arith.constant 0 : index
    %c0_12 = arith.constant 0 : index
    %11 = vector.load %arg2[%c0_9, %c0_10, %c0_11, %c0_12] : memref<1x14x26x32xf32, #tpu.memory_space<vmem>>, vector<1x1x26x32xf32>
    %12 = vector.shape_cast %11 : vector<1x1x26x32xf32> to vector<26x32xf32>
    %c0_13 = arith.constant 0 : index
    %c1 = arith.constant 1 : index
    %c0_14 = arith.constant 0 : index
    %c0_15 = arith.constant 0 : index
    %13 = vector.load %arg2[%c0_13, %c1, %c0_14, %c0_15] : memref<1x14x26x32xf32, #tpu.memory_space<vmem>>, vector<1x1x26x32xf32>
    %14 = vector.shape_cast %13 : vector<1x1x26x32xf32> to vector<26x32xf32>
    %c0_16 = arith.constant 0 : index
    %c2 = arith.constant 2 : index
    %c0_17 = arith.constant 0 : index
    %c0_18 = arith.constant 0 : index
    %15 = vector.load %arg2[%c0_16, %c2, %c0_17, %c0_18] : memref<1x14x26x32xf32, #tpu.memory_space<vmem>>, vector<1x1x26x32xf32>
    %16 = vector.shape_cast %15 : vector<1x1x26x32xf32> to vector<26x32xf32>
    %c0_19 = arith.constant 0 : index
    %c3 = arith.constant 3 : index
    %c0_20 = arith.constant 0 : index
    %c0_21 = arith.constant 0 : index
    %17 = vector.load %arg2[%c0_19, %c3, %c0_20, %c0_21] : memref<1x14x26x32xf32, #tpu.memory_space<vmem>>, vector<1x1x26x32xf32>
    %18 = vector.shape_cast %17 : vector<1x1x26x32xf32> to vector<26x32xf32>
    %c0_22 = arith.constant 0 : index
    %c4 = arith.constant 4 : index
    %c0_23 = arith.constant 0 : index
    %c0_24 = arith.constant 0 : index
    %19 = vector.load %arg2[%c0_22, %c4, %c0_23, %c0_24] : memref<1x14x26x32xf32, #tpu.memory_space<vmem>>, vector<1x1x26x32xf32>
    %20 = vector.shape_cast %19 : vector<1x1x26x32xf32> to vector<26x32xf32>
    %c0_25 = arith.constant 0 : index
    %c5 = arith.constant 5 : index
    %c0_26 = arith.constant 0 : index
    %c0_27 = arith.constant 0 : index
    %21 = vector.load %arg2[%c0_25, %c5, %c0_26, %c0_27] : memref<1x14x26x32xf32, #tpu.memory_space<vmem>>, vector<1x1x26x32xf32>
    %22 = vector.shape_cast %21 : vector<1x1x26x32xf32> to vector<26x32xf32>
    %cst_28 = arith.constant dense<0.000000e+00> : vector<26xf32>
    %23 = vector.multi_reduction <add>, %10, %cst_28 [1] : vector<26x32xf32> to vector<26xf32>
    %24 = vector.shape_cast %23 : vector<26xf32> to vector<26x1xf32>
    %cst_29 = arith.constant 3.200000e+01 : f32
    %25 = vector.broadcast %cst_29 : f32 to vector<26x1xf32>
    %26 = arith.divf %24, %25 : vector<26x1xf32>
    %27 = vector.broadcast %26 : vector<26x1xf32> to vector<26x32xf32>
    %28 = arith.subf %10, %27 : vector<26x32xf32>
    %29 = arith.mulf %28, %28 : vector<26x32xf32>
    %cst_30 = arith.constant dense<0.000000e+00> : vector<26xf32>
    %30 = vector.multi_reduction <add>, %29, %cst_30 [1] : vector<26x32xf32> to vector<26xf32>
    %31 = vector.shape_cast %30 : vector<26xf32> to vector<26x1xf32>
    %cst_31 = arith.constant 3.200000e+01 : f32
    %32 = vector.broadcast %cst_31 : f32 to vector<26x1xf32>
    %33 = arith.divf %31, %32 : vector<26x1xf32>
    %cst_32 = arith.constant 9.99999997E-7 : f32
    %34 = vector.broadcast %cst_32 : f32 to vector<26x1xf32>
    %35 = arith.addf %33, %34 : vector<26x1xf32>
    %36 = math.rsqrt %35 : vector<26x1xf32>
    %37 = vector.broadcast %36 : vector<26x1xf32> to vector<26x32xf32>
    %38 = arith.mulf %28, %37 : vector<26x32xf32>
    %cst_33 = arith.constant 1.000000e+00 : f32
    %39 = vector.broadcast %cst_33 : f32 to vector<26x32xf32>
    %40 = arith.addf %39, %14 : vector<26x32xf32>
    %41 = arith.mulf %38, %40 : vector<26x32xf32>
    %42 = arith.addf %41, %12 : vector<26x32xf32>
    %c72 = arith.constant 72 : index
    %c0_34 = arith.constant 0 : index
    %43 = vector.load %arg4[%c72, %c0_34] : memref<360x128xf32, #tpu.memory_space<vmem>>, vector<32x128xf32>
    %44 = vector.extract_strided_slice %4 {offsets = [0, 0], sizes = [1, 128], strides = [1, 1]} : vector<8x128xf32> to vector<1x128xf32>
    %45 = vector.extract_strided_slice %43 {offsets = [0, 0], sizes = [32, 96], strides = [1, 1]} : vector<32x128xf32> to vector<32x96xf32>
    %cst_35 = arith.constant dense<0.000000e+00> : vector<26x96xf32>
    %46 = tpu.matmul %42, %45, %cst_35 {dimension_numbers = #tpu.dot_dimension_numbers<[1], [0], [0], [1], [0, 0, 1, 1], [], []>} : vector<26x32xf32>, vector<32x96xf32>, vector<26x96xf32> -> vector<26x96xf32>
    %47 = vector.extract_strided_slice %44 {offsets = [0, 0], sizes = [1, 96], strides = [1, 1]} : vector<1x128xf32> to vector<1x96xf32>
    %48 = vector.broadcast %47 : vector<1x96xf32> to vector<26x96xf32>
    %49 = arith.addf %46, %48 : vector<26x96xf32>
    %50 = vector.extract_strided_slice %49 {offsets = [0, 0], sizes = [26, 16], strides = [1, 1]} : vector<26x96xf32> to vector<26x16xf32>
    %51 = vector.extract_strided_slice %49 {offsets = [0, 32], sizes = [26, 16], strides = [1, 1]} : vector<26x96xf32> to vector<26x16xf32>
    %52 = vector.extract_strided_slice %49 {offsets = [0, 64], sizes = [26, 16], strides = [1, 1]} : vector<26x96xf32> to vector<26x16xf32>
    %cst_36 = arith.constant dense<0.000000e+00> : vector<26x26xf32>
    %53 = tpu.matmul %50, %51, %cst_36 {dimension_numbers = #tpu.dot_dimension_numbers<[1], [1], [0], [0], [0, 0, 1, 0], [], []>} : vector<26x16xf32>, vector<26x16xf32>, vector<26x26xf32> -> vector<26x26xf32>
    %cst_37 = arith.constant 2.500000e-01 : f32
    %54 = vector.broadcast %cst_37 : f32 to vector<26x26xf32>
    %55 = arith.mulf %53, %54 : vector<26x26xf32>
    %56 = arith.addf %55, %3 : vector<26x26xf32>
    %cst_38 = arith.constant dense<0xFF800000> : vector<26xf32>
    %57 = vector.multi_reduction <maximumf>, %56, %cst_38 [1] : vector<26x26xf32> to vector<26xf32>
    %58 = vector.shape_cast %57 : vector<26xf32> to vector<26x1xf32>
    %59 = vector.broadcast %58 : vector<26x1xf32> to vector<26x26xf32>
    %60 = arith.subf %56, %59 : vector<26x26xf32>
    %61 = math.exp %60 : vector<26x26xf32>
    %cst_39 = arith.constant dense<0.000000e+00> : vector<26xf32>
    %62 = vector.multi_reduction <add>, %61, %cst_39 [1] : vector<26x26xf32> to vector<26xf32>
    %63 = vector.shape_cast %62 : vector<26xf32> to vector<26x1xf32>
    %64 = tpu.reciprocal %63 {approx = true} : vector<26x1xf32> -> vector<26x1xf32>
    %65 = vector.broadcast %64 : vector<26x1xf32> to vector<26x26xf32>
    %66 = arith.mulf %61, %65 : vector<26x26xf32>
    %cst_40 = arith.constant dense<0.000000e+00> : vector<26x16xf32>
    %67 = tpu.matmul %66, %52, %cst_40 {dimension_numbers = #tpu.dot_dimension_numbers<[1], [0], [0], [1], [0, 0, 1, 1], [], []>} : vector<26x26xf32>, vector<26x16xf32>, vector<26x16xf32> -> vector<26x16xf32>
    %68 = vector.extract_strided_slice %49 {offsets = [0, 16], sizes = [26, 16], strides = [1, 1]} : vector<26x96xf32> to vector<26x16xf32>
    %69 = vector.extract_strided_slice %49 {offsets = [0, 48], sizes = [26, 16], strides = [1, 1]} : vector<26x96xf32> to vector<26x16xf32>
    %70 = vector.extract_strided_slice %49 {offsets = [0, 80], sizes = [26, 16], strides = [1, 1]} : vector<26x96xf32> to vector<26x16xf32>
    %cst_41 = arith.constant dense<0.000000e+00> : vector<26x26xf32>
    %71 = tpu.matmul %68, %69, %cst_41 {dimension_numbers = #tpu.dot_dimension_numbers<[1], [1], [0], [0], [0, 0, 1, 0], [], []>} : vector<26x16xf32>, vector<26x16xf32>, vector<26x26xf32> -> vector<26x26xf32>
    %cst_42 = arith.constant 2.500000e-01 : f32
    %72 = vector.broadcast %cst_42 : f32 to vector<26x26xf32>
    %73 = arith.mulf %71, %72 : vector<26x26xf32>
    %74 = arith.addf %73, %3 : vector<26x26xf32>
    %cst_43 = arith.constant dense<0xFF800000> : vector<26xf32>
    %75 = vector.multi_reduction <maximumf>, %74, %cst_43 [1] : vector<26x26xf32> to vector<26xf32>
    %76 = vector.shape_cast %75 : vector<26xf32> to vector<26x1xf32>
    %77 = vector.broadcast %76 : vector<26x1xf32> to vector<26x26xf32>
    %78 = arith.subf %74, %77 : vector<26x26xf32>
    %79 = math.exp %78 : vector<26x26xf32>
    %cst_44 = arith.constant dense<0.000000e+00> : vector<26xf32>
    %80 = vector.multi_reduction <add>, %79, %cst_44 [1] : vector<26x26xf32> to vector<26xf32>
    %81 = vector.shape_cast %80 : vector<26xf32> to vector<26x1xf32>
    %82 = tpu.reciprocal %81 {approx = true} : vector<26x1xf32> -> vector<26x1xf32>
    %83 = vector.broadcast %82 : vector<26x1xf32> to vector<26x26xf32>
    %84 = arith.mulf %79, %83 : vector<26x26xf32>
    %cst_45 = arith.constant dense<0.000000e+00> : vector<26x16xf32>
    %85 = tpu.matmul %84, %70, %cst_45 {dimension_numbers = #tpu.dot_dimension_numbers<[1], [0], [0], [1], [0, 0, 1, 1], [], []>} : vector<26x26xf32>, vector<26x16xf32>, vector<26x16xf32> -> vector<26x16xf32>
    %86 = tpu.concatenate %67, %85 in 1 : vector<26x16xf32>, vector<26x16xf32> -> vector<26x32xf32>
    %87 = vector.extract_strided_slice %43 {offsets = [0, 96], sizes = [32, 32], strides = [1, 1]} : vector<32x128xf32> to vector<32x32xf32>
    %cst_46 = arith.constant dense<0.000000e+00> : vector<26x32xf32>
    %88 = tpu.matmul %86, %87, %cst_46 {dimension_numbers = #tpu.dot_dimension_numbers<[1], [0], [0], [1], [0, 0, 1, 1], [], []>} : vector<26x32xf32>, vector<32x32xf32>, vector<26x32xf32> -> vector<26x32xf32>
    %89 = vector.extract_strided_slice %44 {offsets = [0, 96], sizes = [1, 32], strides = [1, 1]} : vector<1x128xf32> to vector<1x32xf32>
    %90 = vector.broadcast %89 : vector<1x32xf32> to vector<26x32xf32>
    %91 = arith.addf %88, %90 : vector<26x32xf32>
    %92 = arith.mulf %16, %91 : vector<26x32xf32>
    %93 = arith.addf %10, %92 : vector<26x32xf32>
    %cst_47 = arith.constant dense<0.000000e+00> : vector<26xf32>
    %94 = vector.multi_reduction <add>, %93, %cst_47 [1] : vector<26x32xf32> to vector<26xf32>
    %95 = vector.shape_cast %94 : vector<26xf32> to vector<26x1xf32>
    %cst_48 = arith.constant 3.200000e+01 : f32
    %96 = vector.broadcast %cst_48 : f32 to vector<26x1xf32>
    %97 = arith.divf %95, %96 : vector<26x1xf32>
    %98 = vector.broadcast %97 : vector<26x1xf32> to vector<26x32xf32>
    %99 = arith.subf %93, %98 : vector<26x32xf32>
    %100 = arith.mulf %99, %99 : vector<26x32xf32>
    %cst_49 = arith.constant dense<0.000000e+00> : vector<26xf32>
    %101 = vector.multi_reduction <add>, %100, %cst_49 [1] : vector<26x32xf32> to vector<26xf32>
    %102 = vector.shape_cast %101 : vector<26xf32> to vector<26x1xf32>
    %cst_50 = arith.constant 3.200000e+01 : f32
    %103 = vector.broadcast %cst_50 : f32 to vector<26x1xf32>
    %104 = arith.divf %102, %103 : vector<26x1xf32>
    %cst_51 = arith.constant 9.99999997E-7 : f32
    %105 = vector.broadcast %cst_51 : f32 to vector<26x1xf32>
    %106 = arith.addf %104, %105 : vector<26x1xf32>
    %107 = math.rsqrt %106 : vector<26x1xf32>
    %108 = vector.broadcast %107 : vector<26x1xf32> to vector<26x32xf32>
    %109 = arith.mulf %99, %108 : vector<26x32xf32>
    %cst_52 = arith.constant 1.000000e+00 : f32
    %110 = vector.broadcast %cst_52 : f32 to vector<26x32xf32>
    %111 = arith.addf %110, %20 : vector<26x32xf32>
    %112 = arith.mulf %109, %111 : vector<26x32xf32>
    %113 = arith.addf %112, %18 : vector<26x32xf32>
    %c136 = arith.constant 136 : index
    %c0_53 = arith.constant 0 : index
    %114 = vector.load %arg4[%c136, %c0_53] : memref<360x128xf32, #tpu.memory_space<vmem>>, vector<32x128xf32>
    %cst_54 = arith.constant dense<0.000000e+00> : vector<26x128xf32>
    %115 = tpu.matmul %113, %114, %cst_54 {dimension_numbers = #tpu.dot_dimension_numbers<[1], [0], [0], [1], [0, 0, 1, 1], [], []>} : vector<26x32xf32>, vector<32x128xf32>, vector<26x128xf32> -> vector<26x128xf32>
    %116 = vector.extract_strided_slice %4 {offsets = [1, 0], sizes = [1, 128], strides = [1, 1]} : vector<8x128xf32> to vector<1x128xf32>
    %117 = vector.broadcast %116 : vector<1x128xf32> to vector<26x128xf32>
    %118 = arith.addf %115, %117 : vector<26x128xf32>
    %119 = arith.mulf %118, %118 : vector<26x128xf32>
    %120 = arith.mulf %118, %119 : vector<26x128xf32>
    %cst_55 = arith.constant 4.471500e-02 : f32
    %121 = vector.broadcast %cst_55 : f32 to vector<26x128xf32>
    %122 = arith.mulf %121, %120 : vector<26x128xf32>
    %123 = arith.addf %118, %122 : vector<26x128xf32>
    %cst_56 = arith.constant 0.797884583 : f32
    %124 = vector.broadcast %cst_56 : f32 to vector<26x128xf32>
    %125 = arith.mulf %124, %123 : vector<26x128xf32>
    %126 = math.tanh %125 : vector<26x128xf32>
    %cst_57 = arith.constant 1.000000e+00 : f32
    %127 = vector.broadcast %cst_57 : f32 to vector<26x128xf32>
    %128 = arith.addf %127, %126 : vector<26x128xf32>
    %cst_58 = arith.constant 5.000000e-01 : f32
    %129 = vector.broadcast %cst_58 : f32 to vector<26x128xf32>
    %130 = arith.mulf %129, %128 : vector<26x128xf32>
    %131 = arith.mulf %118, %130 : vector<26x128xf32>
    %c200 = arith.constant 200 : index
    %c0_59 = arith.constant 0 : index
    %132 = vector.load %arg4[%c200, %c0_59] : memref<360x128xf32, #tpu.memory_space<vmem>>, vector<128x128xf32>
    %133 = vector.extract_strided_slice %132 {offsets = [0, 0], sizes = [128, 32], strides = [1, 1]} : vector<128x128xf32> to vector<128x32xf32>
    %cst_60 = arith.constant dense<0.000000e+00> : vector<26x32xf32>
    %134 = tpu.matmul %131, %133, %cst_60 {dimension_numbers = #tpu.dot_dimension_numbers<[1], [0], [0], [1], [0, 0, 1, 1], [], []>} : vector<26x128xf32>, vector<128x32xf32>, vector<26x32xf32> -> vector<26x32xf32>
    %135 = vector.extract_strided_slice %4 {offsets = [2, 0], sizes = [1, 32], strides = [1, 1]} : vector<8x128xf32> to vector<1x32xf32>
    %136 = vector.broadcast %135 : vector<1x32xf32> to vector<26x32xf32>
    %137 = arith.addf %134, %136 : vector<26x32xf32>
    %138 = arith.mulf %22, %137 : vector<26x32xf32>
    %139 = arith.addf %93, %138 : vector<26x32xf32>
    %c0_61 = arith.constant 0 : index
    %c6 = arith.constant 6 : index
    %c0_62 = arith.constant 0 : index
    %c0_63 = arith.constant 0 : index
    %140 = vector.load %arg2[%c0_61, %c6, %c0_62, %c0_63] : memref<1x14x26x32xf32, #tpu.memory_space<vmem>>, vector<1x1x26x32xf32>
    %141 = vector.shape_cast %140 : vector<1x1x26x32xf32> to vector<26x32xf32>
    %c0_64 = arith.constant 0 : index
    %c7 = arith.constant 7 : index
    %c0_65 = arith.constant 0 : index
    %c0_66 = arith.constant 0 : index
    %142 = vector.load %arg2[%c0_64, %c7, %c0_65, %c0_66] : memref<1x14x26x32xf32, #tpu.memory_space<vmem>>, vector<1x1x26x32xf32>
    %143 = vector.shape_cast %142 : vector<1x1x26x32xf32> to vector<26x32xf32>
    %c0_67 = arith.constant 0 : index
    %c8 = arith.constant 8 : index
    %c0_68 = arith.constant 0 : index
    %c0_69 = arith.constant 0 : index
    %144 = vector.load %arg2[%c0_67, %c8, %c0_68, %c0_69] : memref<1x14x26x32xf32, #tpu.memory_space<vmem>>, vector<1x1x26x32xf32>
    %145 = vector.shape_cast %144 : vector<1x1x26x32xf32> to vector<26x32xf32>
    %c0_70 = arith.constant 0 : index
    %c9 = arith.constant 9 : index
    %c0_71 = arith.constant 0 : index
    %c0_72 = arith.constant 0 : index
    %146 = vector.load %arg2[%c0_70, %c9, %c0_71, %c0_72] : memref<1x14x26x32xf32, #tpu.memory_space<vmem>>, vector<1x1x26x32xf32>
    %147 = vector.shape_cast %146 : vector<1x1x26x32xf32> to vector<26x32xf32>
    %c0_73 = arith.constant 0 : index
    %c10 = arith.constant 10 : index
    %c0_74 = arith.constant 0 : index
    %c0_75 = arith.constant 0 : index
    %148 = vector.load %arg2[%c0_73, %c10, %c0_74, %c0_75] : memref<1x14x26x32xf32, #tpu.memory_space<vmem>>, vector<1x1x26x32xf32>
    %149 = vector.shape_cast %148 : vector<1x1x26x32xf32> to vector<26x32xf32>
    %c0_76 = arith.constant 0 : index
    %c11 = arith.constant 11 : index
    %c0_77 = arith.constant 0 : index
    %c0_78 = arith.constant 0 : index
    %150 = vector.load %arg2[%c0_76, %c11, %c0_77, %c0_78] : memref<1x14x26x32xf32, #tpu.memory_space<vmem>>, vector<1x1x26x32xf32>
    %151 = vector.shape_cast %150 : vector<1x1x26x32xf32> to vector<26x32xf32>
    %cst_79 = arith.constant dense<0.000000e+00> : vector<26xf32>
    %152 = vector.multi_reduction <add>, %139, %cst_79 [1] : vector<26x32xf32> to vector<26xf32>
    %153 = vector.shape_cast %152 : vector<26xf32> to vector<26x1xf32>
    %cst_80 = arith.constant 3.200000e+01 : f32
    %154 = vector.broadcast %cst_80 : f32 to vector<26x1xf32>
    %155 = arith.divf %153, %154 : vector<26x1xf32>
    %156 = vector.broadcast %155 : vector<26x1xf32> to vector<26x32xf32>
    %157 = arith.subf %139, %156 : vector<26x32xf32>
    %158 = arith.mulf %157, %157 : vector<26x32xf32>
    %cst_81 = arith.constant dense<0.000000e+00> : vector<26xf32>
    %159 = vector.multi_reduction <add>, %158, %cst_81 [1] : vector<26x32xf32> to vector<26xf32>
    %160 = vector.shape_cast %159 : vector<26xf32> to vector<26x1xf32>
    %cst_82 = arith.constant 3.200000e+01 : f32
    %161 = vector.broadcast %cst_82 : f32 to vector<26x1xf32>
    %162 = arith.divf %160, %161 : vector<26x1xf32>
    %cst_83 = arith.constant 9.99999997E-7 : f32
    %163 = vector.broadcast %cst_83 : f32 to vector<26x1xf32>
    %164 = arith.addf %162, %163 : vector<26x1xf32>
    %165 = math.rsqrt %164 : vector<26x1xf32>
    %166 = vector.broadcast %165 : vector<26x1xf32> to vector<26x32xf32>
    %167 = arith.mulf %157, %166 : vector<26x32xf32>
    %cst_84 = arith.constant 1.000000e+00 : f32
    %168 = vector.broadcast %cst_84 : f32 to vector<26x32xf32>
    %169 = arith.addf %168, %143 : vector<26x32xf32>
    %170 = arith.mulf %167, %169 : vector<26x32xf32>
    %171 = arith.addf %170, %141 : vector<26x32xf32>
    %c104 = arith.constant 104 : index
    %c0_85 = arith.constant 0 : index
    %172 = vector.load %arg4[%c104, %c0_85] : memref<360x128xf32, #tpu.memory_space<vmem>>, vector<32x128xf32>
    %173 = vector.extract_strided_slice %4 {offsets = [3, 0], sizes = [1, 128], strides = [1, 1]} : vector<8x128xf32> to vector<1x128xf32>
    %174 = vector.extract_strided_slice %172 {offsets = [0, 0], sizes = [32, 96], strides = [1, 1]} : vector<32x128xf32> to vector<32x96xf32>
    %cst_86 = arith.constant dense<0.000000e+00> : vector<26x96xf32>
    %175 = tpu.matmul %171, %174, %cst_86 {dimension_numbers = #tpu.dot_dimension_numbers<[1], [0], [0], [1], [0, 0, 1, 1], [], []>} : vector<26x32xf32>, vector<32x96xf32>, vector<26x96xf32> -> vector<26x96xf32>
    %176 = vector.extract_strided_slice %173 {offsets = [0, 0], sizes = [1, 96], strides = [1, 1]} : vector<1x128xf32> to vector<1x96xf32>
    %177 = vector.broadcast %176 : vector<1x96xf32> to vector<26x96xf32>
    %178 = arith.addf %175, %177 : vector<26x96xf32>
    %179 = vector.extract_strided_slice %178 {offsets = [0, 0], sizes = [26, 16], strides = [1, 1]} : vector<26x96xf32> to vector<26x16xf32>
    %180 = vector.extract_strided_slice %178 {offsets = [0, 32], sizes = [26, 16], strides = [1, 1]} : vector<26x96xf32> to vector<26x16xf32>
    %181 = vector.extract_strided_slice %178 {offsets = [0, 64], sizes = [26, 16], strides = [1, 1]} : vector<26x96xf32> to vector<26x16xf32>
    %cst_87 = arith.constant dense<0.000000e+00> : vector<26x26xf32>
    %182 = tpu.matmul %179, %180, %cst_87 {dimension_numbers = #tpu.dot_dimension_numbers<[1], [1], [0], [0], [0, 0, 1, 0], [], []>} : vector<26x16xf32>, vector<26x16xf32>, vector<26x26xf32> -> vector<26x26xf32>
    %cst_88 = arith.constant 2.500000e-01 : f32
    %183 = vector.broadcast %cst_88 : f32 to vector<26x26xf32>
    %184 = arith.mulf %182, %183 : vector<26x26xf32>
    %185 = arith.addf %184, %3 : vector<26x26xf32>
    %cst_89 = arith.constant dense<0xFF800000> : vector<26xf32>
    %186 = vector.multi_reduction <maximumf>, %185, %cst_89 [1] : vector<26x26xf32> to vector<26xf32>
    %187 = vector.shape_cast %186 : vector<26xf32> to vector<26x1xf32>
    %188 = vector.broadcast %187 : vector<26x1xf32> to vector<26x26xf32>
    %189 = arith.subf %185, %188 : vector<26x26xf32>
    %190 = math.exp %189 : vector<26x26xf32>
    %cst_90 = arith.constant dense<0.000000e+00> : vector<26xf32>
    %191 = vector.multi_reduction <add>, %190, %cst_90 [1] : vector<26x26xf32> to vector<26xf32>
    %192 = vector.shape_cast %191 : vector<26xf32> to vector<26x1xf32>
    %193 = tpu.reciprocal %192 {approx = true} : vector<26x1xf32> -> vector<26x1xf32>
    %194 = vector.broadcast %193 : vector<26x1xf32> to vector<26x26xf32>
    %195 = arith.mulf %190, %194 : vector<26x26xf32>
    %cst_91 = arith.constant dense<0.000000e+00> : vector<26x16xf32>
    %196 = tpu.matmul %195, %181, %cst_91 {dimension_numbers = #tpu.dot_dimension_numbers<[1], [0], [0], [1], [0, 0, 1, 1], [], []>} : vector<26x26xf32>, vector<26x16xf32>, vector<26x16xf32> -> vector<26x16xf32>
    %197 = vector.extract_strided_slice %178 {offsets = [0, 16], sizes = [26, 16], strides = [1, 1]} : vector<26x96xf32> to vector<26x16xf32>
    %198 = vector.extract_strided_slice %178 {offsets = [0, 48], sizes = [26, 16], strides = [1, 1]} : vector<26x96xf32> to vector<26x16xf32>
    %199 = vector.extract_strided_slice %178 {offsets = [0, 80], sizes = [26, 16], strides = [1, 1]} : vector<26x96xf32> to vector<26x16xf32>
    %cst_92 = arith.constant dense<0.000000e+00> : vector<26x26xf32>
    %200 = tpu.matmul %197, %198, %cst_92 {dimension_numbers = #tpu.dot_dimension_numbers<[1], [1], [0], [0], [0, 0, 1, 0], [], []>} : vector<26x16xf32>, vector<26x16xf32>, vector<26x26xf32> -> vector<26x26xf32>
    %cst_93 = arith.constant 2.500000e-01 : f32
    %201 = vector.broadcast %cst_93 : f32 to vector<26x26xf32>
    %202 = arith.mulf %200, %201 : vector<26x26xf32>
    %203 = arith.addf %202, %3 : vector<26x26xf32>
    %cst_94 = arith.constant dense<0xFF800000> : vector<26xf32>
    %204 = vector.multi_reduction <maximumf>, %203, %cst_94 [1] : vector<26x26xf32> to vector<26xf32>
    %205 = vector.shape_cast %204 : vector<26xf32> to vector<26x1xf32>
    %206 = vector.broadcast %205 : vector<26x1xf32> to vector<26x26xf32>
    %207 = arith.subf %203, %206 : vector<26x26xf32>
    %208 = math.exp %207 : vector<26x26xf32>
    %cst_95 = arith.constant dense<0.000000e+00> : vector<26xf32>
    %209 = vector.multi_reduction <add>, %208, %cst_95 [1] : vector<26x26xf32> to vector<26xf32>
    %210 = vector.shape_cast %209 : vector<26xf32> to vector<26x1xf32>
    %211 = tpu.reciprocal %210 {approx = true} : vector<26x1xf32> -> vector<26x1xf32>
    %212 = vector.broadcast %211 : vector<26x1xf32> to vector<26x26xf32>
    %213 = arith.mulf %208, %212 : vector<26x26xf32>
    %cst_96 = arith.constant dense<0.000000e+00> : vector<26x16xf32>
    %214 = tpu.matmul %213, %199, %cst_96 {dimension_numbers = #tpu.dot_dimension_numbers<[1], [0], [0], [1], [0, 0, 1, 1], [], []>} : vector<26x26xf32>, vector<26x16xf32>, vector<26x16xf32> -> vector<26x16xf32>
    %215 = tpu.concatenate %196, %214 in 1 : vector<26x16xf32>, vector<26x16xf32> -> vector<26x32xf32>
    %216 = vector.extract_strided_slice %172 {offsets = [0, 96], sizes = [32, 32], strides = [1, 1]} : vector<32x128xf32> to vector<32x32xf32>
    %cst_97 = arith.constant dense<0.000000e+00> : vector<26x32xf32>
    %217 = tpu.matmul %215, %216, %cst_97 {dimension_numbers = #tpu.dot_dimension_numbers<[1], [0], [0], [1], [0, 0, 1, 1], [], []>} : vector<26x32xf32>, vector<32x32xf32>, vector<26x32xf32> -> vector<26x32xf32>
    %218 = vector.extract_strided_slice %173 {offsets = [0, 96], sizes = [1, 32], strides = [1, 1]} : vector<1x128xf32> to vector<1x32xf32>
    %219 = vector.broadcast %218 : vector<1x32xf32> to vector<26x32xf32>
    %220 = arith.addf %217, %219 : vector<26x32xf32>
    %221 = arith.mulf %145, %220 : vector<26x32xf32>
    %222 = arith.addf %139, %221 : vector<26x32xf32>
    %cst_98 = arith.constant dense<0.000000e+00> : vector<26xf32>
    %223 = vector.multi_reduction <add>, %222, %cst_98 [1] : vector<26x32xf32> to vector<26xf32>
    %224 = vector.shape_cast %223 : vector<26xf32> to vector<26x1xf32>
    %cst_99 = arith.constant 3.200000e+01 : f32
    %225 = vector.broadcast %cst_99 : f32 to vector<26x1xf32>
    %226 = arith.divf %224, %225 : vector<26x1xf32>
    %227 = vector.broadcast %226 : vector<26x1xf32> to vector<26x32xf32>
    %228 = arith.subf %222, %227 : vector<26x32xf32>
    %229 = arith.mulf %228, %228 : vector<26x32xf32>
    %cst_100 = arith.constant dense<0.000000e+00> : vector<26xf32>
    %230 = vector.multi_reduction <add>, %229, %cst_100 [1] : vector<26x32xf32> to vector<26xf32>
    %231 = vector.shape_cast %230 : vector<26xf32> to vector<26x1xf32>
    %cst_101 = arith.constant 3.200000e+01 : f32
    %232 = vector.broadcast %cst_101 : f32 to vector<26x1xf32>
    %233 = arith.divf %231, %232 : vector<26x1xf32>
    %cst_102 = arith.constant 9.99999997E-7 : f32
    %234 = vector.broadcast %cst_102 : f32 to vector<26x1xf32>
    %235 = arith.addf %233, %234 : vector<26x1xf32>
    %236 = math.rsqrt %235 : vector<26x1xf32>
    %237 = vector.broadcast %236 : vector<26x1xf32> to vector<26x32xf32>
    %238 = arith.mulf %228, %237 : vector<26x32xf32>
    %cst_103 = arith.constant 1.000000e+00 : f32
    %239 = vector.broadcast %cst_103 : f32 to vector<26x32xf32>
    %240 = arith.addf %239, %149 : vector<26x32xf32>
    %241 = arith.mulf %238, %240 : vector<26x32xf32>
    %242 = arith.addf %241, %147 : vector<26x32xf32>
    %c168 = arith.constant 168 : index
    %c0_104 = arith.constant 0 : index
    %243 = vector.load %arg4[%c168, %c0_104] : memref<360x128xf32, #tpu.memory_space<vmem>>, vector<32x128xf32>
    %cst_105 = arith.constant dense<0.000000e+00> : vector<26x128xf32>
    %244 = tpu.matmul %242, %243, %cst_105 {dimension_numbers = #tpu.dot_dimension_numbers<[1], [0], [0], [1], [0, 0, 1, 1], [], []>} : vector<26x32xf32>, vector<32x128xf32>, vector<26x128xf32> -> vector<26x128xf32>
    %245 = vector.extract_strided_slice %4 {offsets = [4, 0], sizes = [1, 128], strides = [1, 1]} : vector<8x128xf32> to vector<1x128xf32>
    %246 = vector.broadcast %245 : vector<1x128xf32> to vector<26x128xf32>
    %247 = arith.addf %244, %246 : vector<26x128xf32>
    %248 = arith.mulf %247, %247 : vector<26x128xf32>
    %249 = arith.mulf %247, %248 : vector<26x128xf32>
    %cst_106 = arith.constant 4.471500e-02 : f32
    %250 = vector.broadcast %cst_106 : f32 to vector<26x128xf32>
    %251 = arith.mulf %250, %249 : vector<26x128xf32>
    %252 = arith.addf %247, %251 : vector<26x128xf32>
    %cst_107 = arith.constant 0.797884583 : f32
    %253 = vector.broadcast %cst_107 : f32 to vector<26x128xf32>
    %254 = arith.mulf %253, %252 : vector<26x128xf32>
    %255 = math.tanh %254 : vector<26x128xf32>
    %cst_108 = arith.constant 1.000000e+00 : f32
    %256 = vector.broadcast %cst_108 : f32 to vector<26x128xf32>
    %257 = arith.addf %256, %255 : vector<26x128xf32>
    %cst_109 = arith.constant 5.000000e-01 : f32
    %258 = vector.broadcast %cst_109 : f32 to vector<26x128xf32>
    %259 = arith.mulf %258, %257 : vector<26x128xf32>
    %260 = arith.mulf %247, %259 : vector<26x128xf32>
    %c200_110 = arith.constant 200 : index
    %c0_111 = arith.constant 0 : index
    %261 = vector.load %arg4[%c200_110, %c0_111] : memref<360x128xf32, #tpu.memory_space<vmem>>, vector<128x128xf32>
    %262 = vector.extract_strided_slice %261 {offsets = [0, 32], sizes = [128, 32], strides = [1, 1]} : vector<128x128xf32> to vector<128x32xf32>
    %cst_112 = arith.constant dense<0.000000e+00> : vector<26x32xf32>
    %263 = tpu.matmul %260, %262, %cst_112 {dimension_numbers = #tpu.dot_dimension_numbers<[1], [0], [0], [1], [0, 0, 1, 1], [], []>} : vector<26x128xf32>, vector<128x32xf32>, vector<26x32xf32> -> vector<26x32xf32>
    %264 = vector.extract_strided_slice %4 {offsets = [5, 0], sizes = [1, 32], strides = [1, 1]} : vector<8x128xf32> to vector<1x32xf32>
    %265 = vector.broadcast %264 : vector<1x32xf32> to vector<26x32xf32>
    %266 = arith.addf %263, %265 : vector<26x32xf32>
    %267 = arith.mulf %151, %266 : vector<26x32xf32>
    %268 = arith.addf %222, %267 : vector<26x32xf32>
    %c0_113 = arith.constant 0 : index
    %c12 = arith.constant 12 : index
    %c0_114 = arith.constant 0 : index
    %c0_115 = arith.constant 0 : index
    %269 = vector.load %arg2[%c0_113, %c12, %c0_114, %c0_115] : memref<1x14x26x32xf32, #tpu.memory_space<vmem>>, vector<1x1x26x32xf32>
    %270 = vector.shape_cast %269 : vector<1x1x26x32xf32> to vector<26x32xf32>
    %c0_116 = arith.constant 0 : index
    %c13 = arith.constant 13 : index
    %c0_117 = arith.constant 0 : index
    %c0_118 = arith.constant 0 : index
    %271 = vector.load %arg2[%c0_116, %c13, %c0_117, %c0_118] : memref<1x14x26x32xf32, #tpu.memory_space<vmem>>, vector<1x1x26x32xf32>
    %272 = vector.shape_cast %271 : vector<1x1x26x32xf32> to vector<26x32xf32>
    %cst_119 = arith.constant dense<0.000000e+00> : vector<26xf32>
    %273 = vector.multi_reduction <add>, %268, %cst_119 [1] : vector<26x32xf32> to vector<26xf32>
    %274 = vector.shape_cast %273 : vector<26xf32> to vector<26x1xf32>
    %cst_120 = arith.constant 3.200000e+01 : f32
    %275 = vector.broadcast %cst_120 : f32 to vector<26x1xf32>
    %276 = arith.divf %274, %275 : vector<26x1xf32>
    %277 = vector.broadcast %276 : vector<26x1xf32> to vector<26x32xf32>
    %278 = arith.subf %268, %277 : vector<26x32xf32>
    %279 = arith.mulf %278, %278 : vector<26x32xf32>
    %cst_121 = arith.constant dense<0.000000e+00> : vector<26xf32>
    %280 = vector.multi_reduction <add>, %279, %cst_121 [1] : vector<26x32xf32> to vector<26xf32>
    %281 = vector.shape_cast %280 : vector<26xf32> to vector<26x1xf32>
    %cst_122 = arith.constant 3.200000e+01 : f32
    %282 = vector.broadcast %cst_122 : f32 to vector<26x1xf32>
    %283 = arith.divf %281, %282 : vector<26x1xf32>
    %cst_123 = arith.constant 9.99999997E-7 : f32
    %284 = vector.broadcast %cst_123 : f32 to vector<26x1xf32>
    %285 = arith.addf %283, %284 : vector<26x1xf32>
    %286 = math.rsqrt %285 : vector<26x1xf32>
    %287 = vector.broadcast %286 : vector<26x1xf32> to vector<26x32xf32>
    %288 = arith.mulf %278, %287 : vector<26x32xf32>
    %cst_124 = arith.constant 1.000000e+00 : f32
    %289 = vector.broadcast %cst_124 : f32 to vector<26x32xf32>
    %290 = arith.addf %289, %272 : vector<26x32xf32>
    %291 = arith.mulf %288, %290 : vector<26x32xf32>
    %292 = arith.addf %291, %270 : vector<26x32xf32>
    %c328 = arith.constant 328 : index
    %c0_125 = arith.constant 0 : index
    %293 = vector.load %arg4[%c328, %c0_125] : memref<360x128xf32, #tpu.memory_space<vmem>>, vector<32x128xf32>
    %cst_126 = arith.constant dense<0.000000e+00> : vector<26x128xf32>
    %294 = tpu.matmul %292, %293, %cst_126 {dimension_numbers = #tpu.dot_dimension_numbers<[1], [0], [0], [1], [0, 0, 1, 1], [], []>} : vector<26x32xf32>, vector<32x128xf32>, vector<26x128xf32> -> vector<26x128xf32>
    %295 = vector.extract_strided_slice %4 {offsets = [6, 0], sizes = [1, 128], strides = [1, 1]} : vector<8x128xf32> to vector<1x128xf32>
    %296 = vector.broadcast %295 : vector<1x128xf32> to vector<26x128xf32>
    %297 = arith.addf %294, %296 : vector<26x128xf32>
    %c0_127 = arith.constant 0 : index
    %c0_128 = arith.constant 0 : index
    %c0_129 = arith.constant 0 : index
    %298 = vector.load %arg5[%c0_127, %c0_128, %c0_129] : memref<1x26x128xf32, #tpu.memory_space<vmem>>, vector<1x26x128xf32>
    %299 = vector.shape_cast %298 : vector<1x26x128xf32> to vector<26x128xf32>
    %300 = vector.shape_cast %297 : vector<26x128xf32> to vector<1x26x128xf32>
    tpu.vector_store %arg5[%c0_127, %c0_128, %c0_129], %300 {strides = array<i32>} : memref<1x26x128xf32, #tpu.memory_space<vmem>>, vector<1x26x128xf32>,
    return
  }
  func.func @transform_0(%arg0: i32) -> (i32, i32, i32) {
    %c0_i32 = arith.constant 0 : i32
    %c0_i32_0 = arith.constant 0 : i32
    %c0_i32_1 = arith.constant 0 : i32
    return %arg0, %c0_i32, %c0_i32_0 : i32, i32, i32
  }
  func.func @transform_1(%arg0: i32) -> (i32, i32, i32, i32) {
    %c0_i32 = arith.constant 0 : i32
    %c0_i32_0 = arith.constant 0 : i32
    %c0_i32_1 = arith.constant 0 : i32
    %c0_i32_2 = arith.constant 0 : i32
    return %arg0, %c0_i32, %c0_i32_0, %c0_i32_1 : i32, i32, i32, i32
  }
  func.func @transform_2(%arg0: i32) -> (i32, i32, i32) {
    %c0_i32 = arith.constant 0 : i32
    %c0_i32_0 = arith.constant 0 : i32
    %c0_i32_1 = arith.constant 0 : i32
    return %arg0, %c0_i32, %c0_i32_0 : i32, i32, i32
  }
  func.func @transform_3(%arg0: i32) -> (i32, i32) {
    %c0_i32 = arith.constant 0 : i32
    %c0_i32_0 = arith.constant 0 : i32
    %c0_i32_1 = arith.constant 0 : i32
    return %c0_i32, %c0_i32_0 : i32, i32
  }
  func.func @transform_4(%arg0: i32) -> (i32, i32, i32) {
    %c0_i32 = arith.constant 0 : i32
    %c0_i32_0 = arith.constant 0 : i32
    %c0_i32_1 = arith.constant 0 : i32
    return %arg0, %c0_i32, %c0_i32_0 : i32, i32, i32
  }
}

</mosaic_0001>

<llo_original>
// kernel: policy_forward.21
$region0: #{policy_forward.21}
  #allocation0 [shape = 'u32[]', space=smem, size = 0x4, offset = 0x4, fixed_abs, tag = 'smem constant byte address 0x4 - core index']
  #allocation1 [shape = 'u32[144,128]{1,0:T(1,128)}', space=vmem, size = 0x12000, scoped, tag = 'internal scratch']
  %s0 = inlined_call_operand.vmem [shape: f32[1,26,32], index: 0, kind: input, shape index: {}]
  %s1 = inlined_call_operand.vmem [shape: f32[1,14,26,32], index: 1, kind: input, shape index: {}]
  %s2 = inlined_call_operand.vmem [shape: f32[1,26,26], index: 2, kind: input, shape index: {}]
  %s3 = inlined_call_operand.vmem [shape: f32[360,128], index: 3, kind: input, shape index: {}]
  %s4 = inlined_call_operand.vmem [shape: f32[1,26,128], index: 4, kind: output, shape index: {}]
  %s5 = sld [smem:[#allocation0]]
  $region26: #{policy_forward.21} parent=0
    _
  %s7 = ssub.s32 1, %s5
  %s8 = scalar_select 0, %s7, %s5
  // Predicated region
  $region2: #{policy_forward.21} parent=0 // pred_check
    _
  $region3: #{policy_forward.21} parent=0 // pred_check_branch
    %10 = sbr.rel (0) target = $region5
  $region4: #{policy_forward.21} parent=0 // pred_region
    _
  $region5: #{policy_forward.21} parent=0 // pred_fallthru
    _
  // Predicated region
  $region6: #{policy_forward.21} parent=0 // pred_check
    _
  $region7: #{policy_forward.21} parent=0 // pred_check_branch
    %12 = sbr.rel (0) target = $region9
  $region8: #{policy_forward.21} parent=0 // pred_region
    _
  $region9: #{policy_forward.21} parent=0 // pred_fallthru
    _
  // Predicated region
  $region10: #{policy_forward.21} parent=0 // pred_check
    _
  $region11: #{policy_forward.21} parent=0 // pred_check_branch
    %14 = sbr.rel (0) target = $region13
  $region12: #{policy_forward.21} parent=0 // pred_region
    _
  $region13: #{policy_forward.21} parent=0 // pred_fallthru
    _
  // Predicated region
  $region14: #{policy_forward.21} parent=0 // pred_check
    _
  $region15: #{policy_forward.21} parent=0 // pred_check_branch
    %16 = sbr.rel (0) target = $region17
  $region16: #{policy_forward.21} parent=0 // pred_region
    _
  $region17: #{policy_forward.21} parent=0 // pred_fallthru
    _
  %v17 = vld [vmem:[%s0] sm:$0xff]
  %v18 = vld [vmem:[%s0 + $0x8] sm:$0xff]
  %v19 = vld [vmem:[%s0 + $0x10] sm:$0xff]
  %v20 = vld [vmem:[%s0 + $0x18] sm:$0x3]
  %v21 = vld [vmem:[%s2] sm:$0xff]
  %v22 = vld [vmem:[%s2 + $0x8] sm:$0xff]
  %v23 = vld [vmem:[%s2 + $0x10] sm:$0xff]
  %v24 = vld [vmem:[%s2 + $0x18] sm:$0x3]
  %v25 = vld [vmem:[%s3 + $0x40] sm:$0xff]
  %v26 = vld [vmem:[%s3] sm:$0xff]
  %v27 = vld [vmem:[%s3 + $0x8] sm:$0xff]
  %v28 = vld [vmem:[%s3 + $0x10] sm:$0xff]
  %v29 = vld [vmem:[%s3 + $0x18] sm:$0xff]
  %v30 = vld [vmem:[%s3 + $0x20] sm:$0xff]
  %v31 = vld [vmem:[%s3 + $0x28] sm:$0xff]
  %v32 = vld [vmem:[%s3 + $0x30] sm:$0xff]
  %v33 = vld [vmem:[%s3 + $0x38] sm:$0xff]
  %vm34 = vcmask 261120
  %v36 = vsel %vm34, %v17, 0
  %v39 = vsel %vm34, %v18, 0
  %v42 = vsel %vm34, %v19, 0
  %v45 = vsel %vm34, %v20, 0
  %47 = vmatprep.subr.mxu0 0.0
  %48 = vmatpush1.msra.mxu0 %v26
  %49 = vmatprep.subr.mxu0 0.0
  %50 = vmatpush1.msra.mxu0 %v27
  %51 = vmatprep.subr.mxu0 0.0
  %52 = vmatpush1.msra.mxu0 %v28
  %53 = vmatprep.subr.mxu0 0.0
  %54 = vmatpush1.msra.mxu0 %v29
  %55 = vmatprep.subr.mxu0 0.0
  %56 = vmatpush1.msra.mxu0 0.0
  %57 = vmatprep.subr.mxu0 0.0
  %58 = vmatpush1.msra.mxu0 0.0
  %59 = vmatprep.subr.mxu0 0.0
  %60 = vmatpush1.msra.mxu0 0.0
  %61 = vmatprep.subr.mxu0 0.0
  %62 = vmatpush1.msra.mxu0 0.0
  %63 = vmatprep.subr.mxu0 0.0
  %64 = vmatpush1.msra.mxu0 0.0
  %65 = vmatprep.subr.mxu0 0.0
  %66 = vmatpush1.msra.mxu0 0.0
  %67 = vmatprep.subr.mxu0 0.0
  %68 = vmatpush1.msra.mxu0 0.0
  %69 = vmatprep.subr.mxu0 0.0
  %70 = vmatpush1.msra.mxu0 0.0
  %71 = vmatprep.subr.mxu0 0.0
  %72 = vmatpush1.msra.mxu0 0.0
  %73 = vmatprep.subr.mxu0 0.0
  %74 = vmatpush1.msra.mxu0 0.0
  %75 = vmatprep.subr.mxu0 0.0
  %76 = vmatpush1.msra.mxu0 0.0
  %77 = vmatprep.subr.mxu0 0.0
  %78 = vmatpush1.msra.mxu0 0.0
  %79 = vmatprep.subr.mxu0 0.0
  %80 = vmatpush1.msra.mxu0 0.0
  %81 = vmatprep.subr.mxu0 0.0
  %82 = vmatpush1.msra.mxu0 0.0
  %83 = vmatprep.subr.mxu0 0.0
  %84 = vmatpush1.msra.mxu0 0.0
  %85 = vmatprep.subr.mxu0 0.0
  %86 = vmatpush1.msra.mxu0 0.0
  %87 = vmatprep.subr.mxu0 0.0
  %88 = vmatpush1.msra.mxu0 0.0
  %89 = vmatprep.subr.mxu0 0.0
  %90 = vmatpush1.msra.mxu0 0.0
  %91 = vmatprep.subr.mxu0 0.0
  %92 = vmatpush1.msra.mxu0 0.0
  %93 = vmatprep.subr.mxu0 0.0
  %94 = vmatpush1.msra.mxu0 0.0
  %95 = vmatprep.subr.mxu0 0.0
  %96 = vmatpush1.msra.mxu0 0.0
  %97 = vmatprep.subr.mxu0 0.0
  %98 = vmatpush1.msra.mxu0 0.0
  %99 = vmatprep.subr.mxu0 0.0
  %100 = vmatpush1.msra.mxu0 0.0
  %101 = vmatprep.subr.mxu0 0.0
  %102 = vmatpush1.msra.mxu0 0.0
  %103 = vmatprep.subr.mxu0 0.0
  %104 = vmatpush1.msra.mxu0 0.0
  %105 = vmatprep.subr.mxu0 0.0
  %106 = vmatpush1.msra.mxu0 0.0
  %107 = vmatprep.subr.mxu0 0.0
  %108 = vmatpush1.msra.mxu0 0.0
  %109 = vmatprep.subr.mxu0 0.0
  %110 = vmatpush1.msra.mxu0 0.0
  %111 = vmatprep.mubr.f32.mxu0 0.0
  %112 = vmatmul.mubr.f32.gmra.mrb[0].mxu0 %v36
  %v113 = vpop.f32.mrb[0].mxu0
  %v114 = vadd.f32 %v30, %v113
  %v115 = vpop.f32.mrb[0].mxu0
  %116 = vmatprep.mubr.f32.mxu0 0.0
  %117 = vmatmul.mubr.f32.gmra.mrb[0].mxu0 %v39
  %v118 = vpop.f32.mrb[0].mxu0
  %v119 = vadd.f32 %v31, %v118
  %v120 = vpop.f32.mrb[0].mxu0
  %121 = vmatprep.mubr.f32.mxu0 0.0
  %122 = vmatmul.mubr.f32.gmra.mrb[0].mxu0 %v42
  %v123 = vpop.f32.mrb[0].mxu0
  %v124 = vadd.f32 %v32, %v123
  %v125 = vpop.f32.mrb[0].mxu0
  %126 = vmatprep.mubr.f32.mxu0 0.0
  %127 = vmatmul.mubr.f32.gmra.mrb[0].mxu0 %v45
  %v128 = vpop.f32.mrb[0].mxu0
  %v129 = vadd.f32 %v33, %v128
  %v130 = vpop.f32.mrb[0].mxu0
  %131 = vdwg.mxu0
  %v132 = vld [vmem:[%s1] sm:$0xff]
  %v133 = vld [vmem:[%s1 + $0x8] sm:$0xff]
  %v134 = vld [vmem:[%s1 + $0x10] sm:$0xff]
  %v135 = vld [vmem:[%s1 + $0x18] sm:$0x3]
  %s136 = scalar_lea.vmem %s1, 32
  %v137 = vld [vmem:[%s136] sm:$0xff]
  %v138 = vld [vmem:[%s136 + $0x8] sm:$0xff]
  %v139 = vld [vmem:[%s136 + $0x10] sm:$0xff]
  %v140 = vld [vmem:[%s136 + $0x18] sm:$0x3]
  %s141 = scalar_lea.vmem %s1, 64
  %v142 = vld [vmem:[%s141] sm:$0xff]
  %v143 = vld [vmem:[%s141 + $0x8] sm:$0xff]
  %v144 = vld [vmem:[%s141 + $0x10] sm:$0xff]
  %v145 = vld [vmem:[%s141 + $0x18] sm:$0x3]
  %s146 = scalar_lea.vmem %s1, 96
  %v147 = vld [vmem:[%s146] sm:$0xff]
  %v148 = vld [vmem:[%s146 + $0x8] sm:$0xff]
  %v149 = vld [vmem:[%s146 + $0x10] sm:$0xff]
  %v150 = vld [vmem:[%s146 + $0x18] sm:$0x3]
  %s151 = scalar_lea.vmem %s1, 128
  %v152 = vld [vmem:[%s151] sm:$0xff]
  %v153 = vld [vmem:[%s151 + $0x8] sm:$0xff]
  %v154 = vld [vmem:[%s151 + $0x10] sm:$0xff]
  %v155 = vld [vmem:[%s151 + $0x18] sm:$0x3]
  %s156 = scalar_lea.vmem %s1, 160
  %v157 = vld [vmem:[%s156] sm:$0xff]
  %v158 = vld [vmem:[%s156 + $0x8] sm:$0xff]
  %v159 = vld [vmem:[%s156 + $0x10] sm:$0xff]
  %v160 = vld [vmem:[%s156 + $0x18] sm:$0x3]
  %v161 = vsel %vm34, %v114, 0.0
  %162 = vadd.xlane.f32.xlu0 %v161
  %v163 = vpop.xlane.xlu0 %162
  %v164 = vsel %vm34, %v119, 0.0
  %165 = vadd.xlane.f32.xlu0 %v164
  %v166 = vpop.xlane.xlu0 %165
  %v167 = vsel %vm34, %v124, 0.0
  %168 = vadd.xlane.f32.xlu0 %v167
  %v169 = vpop.xlane.xlu0 %168
  %vm170 = vcmask 254976
  %v171 = vsel %vm170, %v129, 0.0
  %172 = vadd.xlane.f32.xlu0 %v171
  %v173 = vpop.xlane.xlu0 %172
  %v174 = vrcp.pop 32.0
  %v175 = vmul.f32 %v163, %v174
  %v176 = vmul.f32 %v166, %v174
  %v177 = vmul.f32 %v169, %v174
  %v178 = vmul.f32 %v173, %v174
  %v179 = vsub.f32 %v114, %v175
  %v180 = vsub.f32 %v119, %v176
  %v181 = vsub.f32 %v124, %v177
  %v182 = vsub.f32 %v129, %v178
  %v183 = vmul.f32 %v179, %v179
  %v184 = vmul.f32 %v180, %v180
  %v185 = vmul.f32 %v181, %v181
  %v186 = vmul.f32 %v182, %v182
  %v187 = vsel %vm34, %v183, 0.0
  %188 = vadd.xlane.f32.xlu0 %v187
  %v189 = vpop.xlane.xlu0 %188
  %v190 = vsel %vm34, %v184, 0.0
  %191 = vadd.xlane.f32.xlu0 %v190
  %v192 = vpop.xlane.xlu0 %191
  %v193 = vsel %vm34, %v185, 0.0
  %194 = vadd.xlane.f32.xlu0 %v193
  %v195 = vpop.xlane.xlu0 %194
  %v196 = vsel %vm170, %v186, 0.0
  %197 = vadd.xlane.f32.xlu0 %v196
  %v198 = vpop.xlane.xlu0 %197
  %v199 = vmul.f32 %v189, %v174
  %v200 = vmul.f32 %v192, %v174
  %v201 = vmul.f32 %v195, %v174
  %v202 = vmul.f32 %v198, %v174
  %v203 = vadd.f32 %v199, 1e-06
  %v204 = vadd.f32 %v200, 1e-06
  %v205 = vadd.f32 %v201, 1e-06
  %v206 = vadd.f32 %v202, 1e-06
  %v207 = vrsqrt.pop %v203
  %v208 = vrsqrt.pop %v204
  %v209 = vrsqrt.pop %v205
  %v210 = vrsqrt.pop %v206
  %v211 = vmul.f32 %v179, %v207
  %v212 = vmul.f32 %v180, %v208
  %v213 = vmul.f32 %v181, %v209
  %v214 = vmul.f32 %v182, %v210
  %v215 = vadd.f32 %v137, 1.0
  %v216 = vadd.f32 %v138, 1.0
  %v217 = vadd.f32 %v139, 1.0
  %v218 = vadd.f32 %v140, 1.0
  %v219 = vmul.f32 %v211, %v215
  %v220 = vmul.f32 %v212, %v216
  %v221 = vmul.f32 %v213, %v217
  %v222 = vmul.f32 %v214, %v218
  %v223 = vadd.f32 %v219, %v132
  %v224 = vadd.f32 %v220, %v133
  %v225 = vadd.f32 %v221, %v134
  %v226 = vadd.f32 %v222, %v135
  %v227 = vld [vmem:[%s3 + $0x48] sm:$0xff]
  %v228 = vld [vmem:[%s3 + $0x50] sm:$0xff]
  %v229 = vld [vmem:[%s3 + $0x58] sm:$0xff]
  %v230 = vld [vmem:[%s3 + $0x60] sm:$0xff]
  %v231 = vlaneseq
  %v232 = vshrl.u32 %v231, 7
  %v233 = vsub.s32 0, %v232
  %v234 = vrot.slane %v25, %v233
  %v236 = vsel %vm34, %v223, 0
  %v239 = vsel %vm34, %v224, 0
  %v242 = vsel %vm34, %v225, 0
  %v245 = vsel %vm34, %v226, 0
  %247 = vmatprep.subr.mxu0 0.0
  %248 = vmatpush1.msra.mxu0 %v227
  %249 = vmatprep.subr.mxu0 0.0
  %250 = vmatpush1.msra.mxu0 %v228
  %251 = vmatprep.subr.mxu0 0.0
  %252 = vmatpush1.msra.mxu0 %v229
  %253 = vmatprep.subr.mxu0 0.0
  %254 = vmatpush1.msra.mxu0 %v230
  %255 = vmatprep.subr.mxu0 0.0
  %256 = vmatpush1.msra.mxu0 0.0
  %257 = vmatprep.subr.mxu0 0.0
  %258 = vmatpush1.msra.mxu0 0.0
  %259 = vmatprep.subr.mxu0 0.0
  %260 = vmatpush1.msra.mxu0 0.0
  %261 = vmatprep.subr.mxu0 0.0
  %262 = vmatpush1.msra.mxu0 0.0
  %263 = vmatprep.subr.mxu0 0.0
  %264 = vmatpush1.msra.mxu0 0.0
  %265 = vmatprep.subr.mxu0 0.0
  %266 = vmatpush1.msra.mxu0 0.0
  %267 = vmatprep.subr.mxu0 0.0
  %268 = vmatpush1.msra.mxu0 0.0
  %269 = vmatprep.subr.mxu0 0.0
  %270 = vmatpush1.msra.mxu0 0.0
  %271 = vmatprep.subr.mxu0 0.0
  %272 = vmatpush1.msra.mxu0 0.0
  %273 = vmatprep.subr.mxu0 0.0
  %274 = vmatpush1.msra.mxu0 0.0
  %275 = vmatprep.subr.mxu0 0.0
  %276 = vmatpush1.msra.mxu0 0.0
  %277 = vmatprep.subr.mxu0 0.0
  %278 = vmatpush1.msra.mxu0 0.0
  %279 = vmatprep.subr.mxu0 0.0
  %280 = vmatpush1.msra.mxu0 0.0
  %281 = vmatprep.subr.mxu0 0.0
  %282 = vmatpush1.msra.mxu0 0.0
  %283 = vmatprep.subr.mxu0 0.0
  %284 = vmatpush1.msra.mxu0 0.0
  %285 = vmatprep.subr.mxu0 0.0
  %286 = vmatpush1.msra.mxu0 0.0
  %287 = vmatprep.subr.mxu0 0.0
  %288 = vmatpush1.msra.mxu0 0.0
  %289 = vmatprep.subr.mxu0 0.0
  %290 = vmatpush1.msra.mxu0 0.0
  %291 = vmatprep.subr.mxu0 0.0
  %292 = vmatpush1.msra.mxu0 0.0
  %293 = vmatprep.subr.mxu0 0.0
  %294 = vmatpush1.msra.mxu0 0.0
  %295 = vmatprep.subr.mxu0 0.0
  %296 = vmatpush1.msra.mxu0 0.0
  %297 = vmatprep.subr.mxu0 0.0
  %298 = vmatpush1.msra.mxu0 0.0
  %299 = vmatprep.subr.mxu0 0.0
  %300 = vmatpush1.msra.mxu0 0.0
  %301 = vmatprep.subr.mxu0 0.0
  %302 = vmatpush1.msra.mxu0 0.0
  %303 = vmatprep.subr.mxu0 0.0
  %304 = vmatpush1.msra.mxu0 0.0
  %305 = vmatprep.subr.mxu0 0.0
  %306 = vmatpush1.msra.mxu0 0.0
  %307 = vmatprep.subr.mxu0 0.0
  %308 = vmatpush1.msra.mxu0 0.0
  %309 = vmatprep.subr.mxu0 0.0
  %310 = vmatpush1.msra.mxu0 0.0
  %311 = vmatprep.mubr.f32.mxu0 0.0
  %312 = vmatmul.mubr.f32.gmra.mrb[0].mxu0 %v236
  %v313 = vpop.f32.mrb[0].mxu0
  %v314 = vadd.f32 %v234, %v313
  %v315 = vpop.f32.mrb[0].mxu0
  %316 = vmatprep.mubr.f32.mxu0 0.0
  %317 = vmatmul.mubr.f32.gmra.mrb[0].mxu0 %v239
  %v318 = vpop.f32.mrb[0].mxu0
  %v319 = vadd.f32 %v234, %v318
  %v320 = vpop.f32.mrb[0].mxu0
  %321 = vmatprep.mubr.f32.mxu0 0.0
  %322 = vmatmul.mubr.f32.gmra.mrb[0].mxu0 %v242
  %v323 = vpop.f32.mrb[0].mxu0
  %v324 = vadd.f32 %v234, %v323
  %v325 = vpop.f32.mrb[0].mxu0
  %326 = vmatprep.mubr.f32.mxu0 0.0
  %327 = vmatmul.mubr.f32.gmra.mrb[0].mxu0 %v245
  %v328 = vpop.f32.mrb[0].mxu0
  %v329 = vadd.f32 %v234, %v328
  %v330 = vpop.f32.mrb[0].mxu0
  %331 = vdwg.mxu0
  %336 = vrot.lane.b32.xlu0 %v314, 96
  %v337 = vpop.permute.xlu0 %336
  %338 = vrot.lane.b32.xlu0 %v319, 96
  %v339 = vpop.permute.xlu0 %338
  %340 = vrot.lane.b32.xlu0 %v324, 96
  %v341 = vpop.permute.xlu0 %340
  %342 = vrot.lane.b32.xlu0 %v329, 96
  %v343 = vpop.permute.xlu0 %342
  %vm344 = vcmask 130048
  %v345 = vsel %vm344, %v314, 0
  %v347 = vsel %vm344, %v319, 0
  %v349 = vsel %vm344, %v324, 0
  %v351 = vsel %vm344, %v329, 0
  %v353 = vsel %vm344, %v337, 0
  %v355 = vsel %vm344, %v339, 0
  %v357 = vsel %vm344, %v341, 0
  %v359 = vsel %vm344, %v343, 0
  %361 = vmatprep.subr.mxu0 0.0
  %362 = vmatpush1.xpose.msra.mxu0 %v353
  %363 = vmatprep.subr.mxu0 0.0
  %364 = vmatpush1.xpose.msra.mxu0 %v355
  %365 = vmatprep.subr.mxu0 0.0
  %366 = vmatpush1.xpose.msra.mxu0 %v357
  %367 = vmatprep.subr.mxu0 0.0
  %368 = vmatpush1.xpose.msra.mxu0 %v359
  %369 = vmatprep.subr.mxu0 0.0
  %370 = vmatpush1.xpose.msra.mxu0 0.0
  %371 = vmatprep.subr.mxu0 0.0
  %372 = vmatpush1.xpose.msra.mxu0 0.0
  %373 = vmatprep.subr.mxu0 0.0
  %374 = vmatpush1.xpose.msra.mxu0 0.0
  %375 = vmatprep.subr.mxu0 0.0
  %376 = vmatpush1.xpose.msra.mxu0 0.0
  %377 = vmatprep.subr.mxu0 0.0
  %378 = vmatpush1.xpose.msra.mxu0 0.0
  %379 = vmatprep.subr.mxu0 0.0
  %380 = vmatpush1.xpose.msra.mxu0 0.0
  %381 = vmatprep.subr.mxu0 0.0
  %382 = vmatpush1.xpose.msra.mxu0 0.0
  %383 = vmatprep.subr.mxu0 0.0
  %384 = vmatpush1.xpose.msra.mxu0 0.0
  %385 = vmatprep.subr.mxu0 0.0
  %386 = vmatpush1.xpose.msra.mxu0 0.0
  %387 = vmatprep.subr.mxu0 0.0
  %388 = vmatpush1.xpose.msra.mxu0 0.0
  %389 = vmatprep.subr.mxu0 0.0
  %390 = vmatpush1.xpose.msra.mxu0 0.0
  %391 = vmatprep.subr.mxu0 0.0
  %392 = vmatpush1.xpose.msra.mxu0 0.0
  %393 = vmatprep.subr.mxu0 0.0
  %394 = vmatpush1.xpose.msra.mxu0 0.0
  %395 = vmatprep.subr.mxu0 0.0
  %396 = vmatpush1.xpose.msra.mxu0 0.0
  %397 = vmatprep.subr.mxu0 0.0
  %398 = vmatpush1.xpose.msra.mxu0 0.0
  %399 = vmatprep.subr.mxu0 0.0
  %400 = vmatpush1.xpose.msra.mxu0 0.0
  %401 = vmatprep.subr.mxu0 0.0
  %402 = vmatpush1.xpose.msra.mxu0 0.0
  %403 = vmatprep.subr.mxu0 0.0
  %404 = vmatpush1.xpose.msra.mxu0 0.0
  %405 = vmatprep.subr.mxu0 0.0
  %406 = vmatpush1.xpose.msra.mxu0 0.0
  %407 = vmatprep.subr.mxu0 0.0
  %408 = vmatpush1.xpose.msra.mxu0 0.0
  %409 = vmatprep.subr.mxu0 0.0
  %410 = vmatpush1.xpose.msra.mxu0 0.0
  %411 = vmatprep.subr.mxu0 0.0
  %412 = vmatpush1.xpose.msra.mxu0 0.0
  %413 = vmatprep.subr.mxu0 0.0
  %414 = vmatpush1.xpose.msra.mxu0 0.0
  %415 = vmatprep.subr.mxu0 0.0
  %416 = vmatpush1.xpose.msra.mxu0 0.0
  %417 = vmatprep.subr.mxu0 0.0
  %418 = vmatpush1.xpose.msra.mxu0 0.0
  %419 = vmatprep.subr.mxu0 0.0
  %420 = vmatpush1.xpose.msra.mxu0 0.0
  %421 = vmatprep.subr.mxu0 0.0
  %422 = vmatpush1.xpose.msra.mxu0 0.0
  %423 = vmatprep.subr.mxu0 0.0
  %424 = vmatpush1.xpose.msra.mxu0 0.0
  %425 = vmatprep.mubr.f32.mxu0 0.0
  %426 = vmatmul.mubr.f32.gmra.mrb[0].mxu0 %v345
  %v427 = vpop.f32.mrb[0].mxu0
  %v428 = vadd.f32 0.0, %v427
  %v429 = vpop.f32.mrb[0].mxu0
  %430 = vmatprep.mubr.f32.mxu0 0.0
  %431 = vmatmul.mubr.f32.gmra.mrb[0].mxu0 %v347
  %v432 = vpop.f32.mrb[0].mxu0
  %v433 = vadd.f32 0.0, %v432
  %v434 = vpop.f32.mrb[0].mxu0
  %435 = vmatprep.mubr.f32.mxu0 0.0
  %436 = vmatmul.mubr.f32.gmra.mrb[0].mxu0 %v349
  %v437 = vpop.f32.mrb[0].mxu0
  %v438 = vadd.f32 0.0, %v437
  %v439 = vpop.f32.mrb[0].mxu0
  %440 = vmatprep.mubr.f32.mxu0 0.0
  %441 = vmatmul.mubr.f32.gmra.mrb[0].mxu0 %v351
  %v442 = vpop.f32.mrb[0].mxu0
  %v443 = vadd.f32 0.0, %v442
  %v444 = vpop.f32.mrb[0].mxu0
  %445 = vdwg.mxu0
  %v446 = vmul.f32 %v428, 0.25
  %v447 = vmul.f32 %v433, 0.25
  %v448 = vmul.f32 %v438, 0.25
  %v449 = vmul.f32 %v443, 0.25
  %v450 = vadd.f32 %v446, %v21
  %v451 = vadd.f32 %v447, %v22
  %v452 = vadd.f32 %v448, %v23
  %v453 = vadd.f32 %v449, %v24
  %vm454 = vcmask 211968
  %v455 = vsel %vm454, %v450, -inf
  %456 = vmax.xlane.f32.xlu0 %v455
  %v457 = vpop.xlane.xlu0 %456
  %v458 = vsel %vm454, %v451, -inf
  %459 = vmax.xlane.f32.xlu0 %v458
  %v460 = vpop.xlane.xlu0 %459
  %v461 = vsel %vm454, %v452, -inf
  %462 = vmax.xlane.f32.xlu0 %v461
  %v463 = vpop.xlane.xlu0 %462
  %vm464 = vcmask 205824
  %v465 = vsel %vm464, %v453, -inf
  %466 = vmax.xlane.f32.xlu0 %v465
  %v467 = vpop.xlane.xlu0 %466
  %v468 = vsub.f32 %v450, %v457
  %v469 = vsub.f32 %v451, %v460
  %v470 = vsub.f32 %v452, %v463
  %v471 = vsub.f32 %v453, %v467
  %v472 = vmul.f32 %v468, 1.442695
  %v473 = vpow.pop %v472
  %v474 = vmul.f32 %v469, 1.442695
  %v475 = vpow.pop %v474
  %v476 = vmul.f32 %v470, 1.442695
  %v477 = vpow.pop %v476
  %v478 = vmul.f32 %v471, 1.442695
  %v479 = vpow.pop %v478
  %v480 = vsel %vm454, %v473, 0.0
  %481 = vadd.xlane.f32.xlu0 %v480
  %v482 = vpop.xlane.xlu0 %481
  %v483 = vsel %vm454, %v475, 0.0
  %484 = vadd.xlane.f32.xlu0 %v483
  %v485 = vpop.xlane.xlu0 %484
  %v486 = vsel %vm454, %v477, 0.0
  %487 = vadd.xlane.f32.xlu0 %v486
  %v488 = vpop.xlane.xlu0 %487
  %v489 = vsel %vm464, %v479, 0.0
  %490 = vadd.xlane.f32.xlu0 %v489
  %v491 = vpop.xlane.xlu0 %490
  %v492 = vrcp.pop %v482
  %v493 = vrcp.pop %v485
  %v494 = vrcp.pop %v488
  %v495 = vrcp.pop %v491
  %v496 = vmul.f32 %v473, %v492
  %v497 = vmul.f32 %v475, %v493
  %v498 = vmul.f32 %v477, %v494
  %v499 = vmul.f32 %v479, %v495
  %500 = vrot.lane.b32.xlu0 %v314, 64
  %v501 = vpop.permute.xlu0 %500
  %502 = vrot.lane.b32.xlu0 %v319, 64
  %v503 = vpop.permute.xlu0 %502
  %504 = vrot.lane.b32.xlu0 %v324, 64
  %v505 = vpop.permute.xlu0 %504
  %506 = vrot.lane.b32.xlu0 %v329, 64
  %v507 = vpop.permute.xlu0 %506
  %v512 = vsel %vm454, %v496, 0
  %v515 = vsel %vm454, %v497, 0
  %v518 = vsel %vm454, %v498, 0
  %v521 = vsel %vm454, %v499, 0
  %vm523 = vcmask 1041408
  %v524 = vsel %vm523, %v507, 0
  %526 = vmatprep.subr.mxu0 0.0
  %527 = vmatpush1.msra.mxu0 %v501
  %528 = vmatprep.subr.mxu0 0.0
  %529 = vmatpush1.msra.mxu0 %v503
  %530 = vmatprep.subr.mxu0 0.0
  %531 = vmatpush1.msra.mxu0 %v505
  %532 = vmatprep.subr.mxu0 0.0
  %533 = vmatpush1.msra.mxu0 %v524
  %534 = vmatprep.subr.mxu0 0.0
  %535 = vmatpush1.msra.mxu0 0.0
  %536 = vmatprep.subr.mxu0 0.0
  %537 = vmatpush1.msra.mxu0 0.0
  %538 = vmatprep.subr.mxu0 0.0
  %539 = vmatpush1.msra.mxu0 0.0
  %540 = vmatprep.subr.mxu0 0.0
  %541 = vmatpush1.msra.mxu0 0.0
  %542 = vmatprep.subr.mxu0 0.0
  %543 = vmatpush1.msra.mxu0 0.0
  %544 = vmatprep.subr.mxu0 0.0
  %545 = vmatpush1.msra.mxu0 0.0
  %546 = vmatprep.subr.mxu0 0.0
  %547 = vmatpush1.msra.mxu0 0.0
  %548 = vmatprep.subr.mxu0 0.0
  %549 = vmatpush1.msra.mxu0 0.0
  %550 = vmatprep.subr.mxu0 0.0
  %551 = vmatpush1.msra.mxu0 0.0
  %552 = vmatprep.subr.mxu0 0.0
  %553 = vmatpush1.msra.mxu0 0.0
  %554 = vmatprep.subr.mxu0 0.0
  %555 = vmatpush1.msra.mxu0 0.0
  %556 = vmatprep.subr.mxu0 0.0
  %557 = vmatpush1.msra.mxu0 0.0
  %558 = vmatprep.subr.mxu0 0.0
  %559 = vmatpush1.msra.mxu0 0.0
  %560 = vmatprep.subr.mxu0 0.0
  %561 = vmatpush1.msra.mxu0 0.0
  %562 = vmatprep.subr.mxu0 0.0
  %563 = vmatpush1.msra.mxu0 0.0
  %564 = vmatprep.subr.mxu0 0.0
  %565 = vmatpush1.msra.mxu0 0.0
  %566 = vmatprep.subr.mxu0 0.0
  %567 = vmatpush1.msra.mxu0 0.0
  %568 = vmatprep.subr.mxu0 0.0
  %569 = vmatpush1.msra.mxu0 0.0
  %570 = vmatprep.subr.mxu0 0.0
  %571 = vmatpush1.msra.mxu0 0.0
  %572 = vmatprep.subr.mxu0 0.0
  %573 = vmatpush1.msra.mxu0 0.0
  %574 = vmatprep.subr.mxu0 0.0
  %575 = vmatpush1.msra.mxu0 0.0
  %576 = vmatprep.subr.mxu0 0.0
  %577 = vmatpush1.msra.mxu0 0.0
  %578 = vmatprep.subr.mxu0 0.0
  %579 = vmatpush1.msra.mxu0 0.0
  %580 = vmatprep.subr.mxu0 0.0
  %581 = vmatpush1.msra.mxu0 0.0
  %582 = vmatprep.subr.mxu0 0.0
  %583 = vmatpush1.msra.mxu0 0.0
  %584 = vmatprep.subr.mxu0 0.0
  %585 = vmatpush1.msra.mxu0 0.0
  %586 = vmatprep.subr.mxu0 0.0
  %587 = vmatpush1.msra.mxu0 0.0
  %588 = vmatprep.subr.mxu0 0.0
  %589 = vmatpush1.msra.mxu0 0.0
  %590 = vmatprep.mubr.f32.mxu0 0.0
  %591 = vmatmul.mubr.f32.gmra.mrb[0].mxu0 %v512
  %v592 = vpop.f32.mrb[0].mxu0
  %v593 = vadd.f32 0.0, %v592
  %v594 = vpop.f32.mrb[0].mxu0
  %595 = vmatprep.mubr.f32.mxu0 0.0
  %596 = vmatmul.mubr.f32.gmra.mrb[0].mxu0 %v515
  %v597 = vpop.f32.mrb[0].mxu0
  %v598 = vadd.f32 0.0, %v597
  %v599 = vpop.f32.mrb[0].mxu0
  %600 = vmatprep.mubr.f32.mxu0 0.0
  %601 = vmatmul.mubr.f32.gmra.mrb[0].mxu0 %v518
  %v602 = vpop.f32.mrb[0].mxu0
  %v603 = vadd.f32 0.0, %v602
  %v604 = vpop.f32.mrb[0].mxu0
  %605 = vmatprep.mubr.f32.mxu0 0.0
  %606 = vmatmul.mubr.f32.gmra.mrb[0].mxu0 %v521
  %v607 = vpop.f32.mrb[0].mxu0
  %v608 = vadd.f32 0.0, %v607
  %v609 = vpop.f32.mrb[0].mxu0
  %610 = vdwg.mxu0
  %611 = vrot.lane.b32.xlu0 %v314, 112
  %v612 = vpop.permute.xlu0 %611
  %613 = vrot.lane.b32.xlu0 %v319, 112
  %v614 = vpop.permute.xlu0 %613
  %615 = vrot.lane.b32.xlu0 %v324, 112
  %v616 = vpop.permute.xlu0 %615
  %617 = vrot.lane.b32.xlu0 %v329, 112
  %v618 = vpop.permute.xlu0 %617
  %619 = vrot.lane.b32.xlu0 %v314, 80
  %v620 = vpop.permute.xlu0 %619
  %621 = vrot.lane.b32.xlu0 %v319, 80
  %v622 = vpop.permute.xlu0 %621
  %623 = vrot.lane.b32.xlu0 %v324, 80
  %v624 = vpop.permute.xlu0 %623
  %625 = vrot.lane.b32.xlu0 %v329, 80
  %v626 = vpop.permute.xlu0 %625
  %v627 = vsel %vm344, %v612, 0
  %v629 = vsel %vm344, %v614, 0
  %v631 = vsel %vm344, %v616, 0
  %v633 = vsel %vm344, %v618, 0
  %v635 = vsel %vm344, %v620, 0
  %v637 = vsel %vm344, %v622, 0
  %v639 = vsel %vm344, %v624, 0
  %v641 = vsel %vm344, %v626, 0
  %643 = vmatprep.subr.mxu0 0.0
  %644 = vmatpush1.xpose.msra.mxu0 %v635
  %645 = vmatprep.subr.mxu0 0.0
  %646 = vmatpush1.xpose.msra.mxu0 %v637
  %647 = vmatprep.subr.mxu0 0.0
  %648 = vmatpush1.xpose.msra.mxu0 %v639
  %649 = vmatprep.subr.mxu0 0.0
  %650 = vmatpush1.xpose.msra.mxu0 %v641
  %651 = vmatprep.subr.mxu0 0.0
  %652 = vmatpush1.xpose.msra.mxu0 0.0
  %653 = vmatprep.subr.mxu0 0.0
  %654 = vmatpush1.xpose.msra.mxu0 0.0
  %655 = vmatprep.subr.mxu0 0.0
  %656 = vmatpush1.xpose.msra.mxu0 0.0
  %657 = vmatprep.subr.mxu0 0.0
  %658 = vmatpush1.xpose.msra.mxu0 0.0
  %659 = vmatprep.subr.mxu0 0.0
  %660 = vmatpush1.xpose.msra.mxu0 0.0
  %661 = vmatprep.subr.mxu0 0.0
  %662 = vmatpush1.xpose.msra.mxu0 0.0
  %663 = vmatprep.subr.mxu0 0.0
  %664 = vmatpush1.xpose.msra.mxu0 0.0
  %665 = vmatprep.subr.mxu0 0.0
  %666 = vmatpush1.xpose.msra.mxu0 0.0
  %667 = vmatprep.subr.mxu0 0.0
  %668 = vmatpush1.xpose.msra.mxu0 0.0
  %669 = vmatprep.subr.mxu0 0.0
  %670 = vmatpush1.xpose.msra.mxu0 0.0
  %671 = vmatprep.subr.mxu0 0.0
  %672 = vmatpush1.xpose.msra.mxu0 0.0
  %673 = vmatprep.subr.mxu0 0.0
  %674 = vmatpush1.xpose.msra.mxu0 0.0
  %675 = vmatprep.subr.mxu0 0.0
  %676 = vmatpush1.xpose.msra.mxu0 0.0
  %677 = vmatprep.subr.mxu0 0.0
  %678 = vmatpush1.xpose.msra.mxu0 0.0
  %679 = vmatprep.subr.mxu0 0.0
  %680 = vmatpush1.xpose.msra.mxu0 0.0
  %681 = vmatprep.subr.mxu0 0.0
  %682 = vmatpush1.xpose.msra.mxu0 0.0
  %683 = vmatprep.subr.mxu0 0.0
  %684 = vmatpush1.xpose.msra.mxu0 0.0
  %685 = vmatprep.subr.mxu0 0.0
  %686 = vmatpush1.xpose.msra.mxu0 0.0
  %687 = vmatprep.subr.mxu0 0.0
  %688 = vmatpush1.xpose.msra.mxu0 0.0
  %689 = vmatprep.subr.mxu0 0.0
  %690 = vmatpush1.xpose.msra.mxu0 0.0
  %691 = vmatprep.subr.mxu0 0.0
  %692 = vmatpush1.xpose.msra.mxu0 0.0
  %693 = vmatprep.subr.mxu0 0.0
  %694 = vmatpush1.xpose.msra.mxu0 0.0
  %695 = vmatprep.subr.mxu0 0.0
  %696 = vmatpush1.xpose.msra.mxu0 0.0
  %697 = vmatprep.subr.mxu0 0.0
  %698 = vmatpush1.xpose.msra.mxu0 0.0
  %699 = vmatprep.subr.mxu0 0.0
  %700 = vmatpush1.xpose.msra.mxu0 0.0
  %701 = vmatprep.subr.mxu0 0.0
  %702 = vmatpush1.xpose.msra.mxu0 0.0
  %703 = vmatprep.subr.mxu0 0.0
  %704 = vmatpush1.xpose.msra.mxu0 0.0
  %705 = vmatprep.subr.mxu0 0.0
  %706 = vmatpush1.xpose.msra.mxu0 0.0
  %707 = vmatprep.mubr.f32.mxu0 0.0
  %708 = vmatmul.mubr.f32.gmra.mrb[0].mxu0 %v627
  %v709 = vpop.f32.mrb[0].mxu0
  %v710 = vadd.f32 0.0, %v709
  %v711 = vpop.f32.mrb[0].mxu0
  %712 = vmatprep.mubr.f32.mxu0 0.0
  %713 = vmatmul.mubr.f32.gmra.mrb[0].mxu0 %v629
  %v714 = vpop.f32.mrb[0].mxu0
  %v715 = vadd.f32 0.0, %v714
  %v716 = vpop.f32.mrb[0].mxu0
  %717 = vmatprep.mubr.f32.mxu0 0.0
  %718 = vmatmul.mubr.f32.gmra.mrb[0].mxu0 %v631
  %v719 = vpop.f32.mrb[0].mxu0
  %v720 = vadd.f32 0.0, %v719
  %v721 = vpop.f32.mrb[0].mxu0
  %722 = vmatprep.mubr.f32.mxu0 0.0
  %723 = vmatmul.mubr.f32.gmra.mrb[0].mxu0 %v633
  %v724 = vpop.f32.mrb[0].mxu0
  %v725 = vadd.f32 0.0, %v724
  %v726 = vpop.f32.mrb[0].mxu0
  %727 = vdwg.mxu0
  %v728 = vmul.f32 %v710, 0.25
  %v729 = vmul.f32 %v715, 0.25
  %v730 = vmul.f32 %v720, 0.25
  %v731 = vmul.f32 %v725, 0.25
  %v732 = vadd.f32 %v728, %v21
  %v733 = vadd.f32 %v729, %v22
  %v734 = vadd.f32 %v730, %v23
  %v735 = vadd.f32 %v731, %v24
  %v736 = vsel %vm454, %v732, -inf
  %737 = vmax.xlane.f32.xlu0 %v736
  %v738 = vpop.xlane.xlu0 %737
  %v739 = vsel %vm454, %v733, -inf
  %740 = vmax.xlane.f32.xlu0 %v739
  %v741 = vpop.xlane.xlu0 %740
  %v742 = vsel %vm454, %v734, -inf
  %743 = vmax.xlane.f32.xlu0 %v742
  %v744 = vpop.xlane.xlu0 %743
  %v745 = vsel %vm464, %v735, -inf
  %746 = vmax.xlane.f32.xlu0 %v745
  %v747 = vpop.xlane.xlu0 %746
  %v748 = vsub.f32 %v732, %v738
  %v749 = vsub.f32 %v733, %v741
  %v750 = vsub.f32 %v734, %v744
  %v751 = vsub.f32 %v735, %v747
  %v752 = vmul.f32 %v748, 1.442695
  %v753 = vpow.pop %v752
  %v754 = vmul.f32 %v749, 1.442695
  %v755 = vpow.pop %v754
  %v756 = vmul.f32 %v750, 1.442695
  %v757 = vpow.pop %v756
  %v758 = vmul.f32 %v751, 1.442695
  %v759 = vpow.pop %v758
  %v760 = vsel %vm454, %v753, 0.0
  %761 = vadd.xlane.f32.xlu0 %v760
  %v762 = vpop.xlane.xlu0 %761
  %v763 = vsel %vm454, %v755, 0.0
  %764 = vadd.xlane.f32.xlu0 %v763
  %v765 = vpop.xlane.xlu0 %764
  %v766 = vsel %vm454, %v757, 0.0
  %767 = vadd.xlane.f32.xlu0 %v766
  %v768 = vpop.xlane.xlu0 %767
  %v769 = vsel %vm464, %v759, 0.0
  %770 = vadd.xlane.f32.xlu0 %v769
  %v771 = vpop.xlane.xlu0 %770
  %v772 = vrcp.pop %v762
  %v773 = vrcp.pop %v765
  %v774 = vrcp.pop %v768
  %v775 = vrcp.pop %v771
  %v776 = vmul.f32 %v753, %v772
  %v777 = vmul.f32 %v755, %v773
  %v778 = vmul.f32 %v757, %v774
  %v779 = vmul.f32 %v759, %v775
  %780 = vrot.lane.b32.xlu0 %v314, 48
  %v781 = vpop.permute.xlu0 %780
  %782 = vrot.lane.b32.xlu0 %v319, 48
  %v783 = vpop.permute.xlu0 %782
  %784 = vrot.lane.b32.xlu0 %v324, 48
  %v785 = vpop.permute.xlu0 %784
  %786 = vrot.lane.b32.xlu0 %v329, 48
  %v787 = vpop.permute.xlu0 %786
  %v792 = vsel %vm454, %v776, 0
  %v795 = vsel %vm454, %v777, 0
  %v798 = vsel %vm454, %v778, 0
  %v801 = vsel %vm454, %v779, 0
  %v803 = vsel %vm523, %v787, 0
  %805 = vmatprep.subr.mxu0 0.0
  %806 = vmatpush1.msra.mxu0 %v781
  %807 = vmatprep.subr.mxu0 0.0
  %808 = vmatpush1.msra.mxu0 %v783
  %809 = vmatprep.subr.mxu0 0.0
  %810 = vmatpush1.msra.mxu0 %v785
  %811 = vmatprep.subr.mxu0 0.0
  %812 = vmatpush1.msra.mxu0 %v803
  %813 = vmatprep.subr.mxu0 0.0
  %814 = vmatpush1.msra.mxu0 0.0
  %815 = vmatprep.subr.mxu0 0.0
  %816 = vmatpush1.msra.mxu0 0.0
  %817 = vmatprep.subr.mxu0 0.0
  %818 = vmatpush1.msra.mxu0 0.0
  %819 = vmatprep.subr.mxu0 0.0
  %820 = vmatpush1.msra.mxu0 0.0
  %821 = vmatprep.subr.mxu0 0.0
  %822 = vmatpush1.msra.mxu0 0.0
  %823 = vmatprep.subr.mxu0 0.0
  %824 = vmatpush1.msra.mxu0 0.0
  %825 = vmatprep.subr.mxu0 0.0
  %826 = vmatpush1.msra.mxu0 0.0
  %827 = vmatprep.subr.mxu0 0.0
  %828 = vmatpush1.msra.mxu0 0.0
  %829 = vmatprep.subr.mxu0 0.0
  %830 = vmatpush1.msra.mxu0 0.0
  %831 = vmatprep.subr.mxu0 0.0
  %832 = vmatpush1.msra.mxu0 0.0
  %833 = vmatprep.subr.mxu0 0.0
  %834 = vmatpush1.msra.mxu0 0.0
  %835 = vmatprep.subr.mxu0 0.0
  %836 = vmatpush1.msra.mxu0 0.0
  %837 = vmatprep.subr.mxu0 0.0
  %838 = vmatpush1.msra.mxu0 0.0
  %839 = vmatprep.subr.mxu0 0.0
  %840 = vmatpush1.msra.mxu0 0.0
  %841 = vmatprep.subr.mxu0 0.0
  %842 = vmatpush1.msra.mxu0 0.0
  %843 = vmatprep.subr.mxu0 0.0
  %844 = vmatpush1.msra.mxu0 0.0
  %845 = vmatprep.subr.mxu0 0.0
  %846 = vmatpush1.msra.mxu0 0.0
  %847 = vmatprep.subr.mxu0 0.0
  %848 = vmatpush1.msra.mxu0 0.0
  %849 = vmatprep.subr.mxu0 0.0
  %850 = vmatpush1.msra.mxu0 0.0
  %851 = vmatprep.subr.mxu0 0.0
  %852 = vmatpush1.msra.mxu0 0.0
  %853 = vmatprep.subr.mxu0 0.0
  %854 = vmatpush1.msra.mxu0 0.0
  %855 = vmatprep.subr.mxu0 0.0
  %856 = vmatpush1.msra.mxu0 0.0
  %857 = vmatprep.subr.mxu0 0.0
  %858 = vmatpush1.msra.mxu0 0.0
  %859 = vmatprep.subr.mxu0 0.0
  %860 = vmatpush1.msra.mxu0 0.0
  %861 = vmatprep.subr.mxu0 0.0
  %862 = vmatpush1.msra.mxu0 0.0
  %863 = vmatprep.subr.mxu0 0.0
  %864 = vmatpush1.msra.mxu0 0.0
  %865 = vmatprep.subr.mxu0 0.0
  %866 = vmatpush1.msra.mxu0 0.0
  %867 = vmatprep.subr.mxu0 0.0
  %868 = vmatpush1.msra.mxu0 0.0
  %869 = vmatprep.mubr.f32.mxu0 0.0
  %870 = vmatmul.mubr.f32.gmra.mrb[0].mxu0 %v792
  %v871 = vpop.f32.mrb[0].mxu0
  %v872 = vadd.f32 0.0, %v871
  %v873 = vpop.f32.mrb[0].mxu0
  %874 = vmatprep.mubr.f32.mxu0 0.0
  %875 = vmatmul.mubr.f32.gmra.mrb[0].mxu0 %v795
  %v876 = vpop.f32.mrb[0].mxu0
  %v877 = vadd.f32 0.0, %v876
  %v878 = vpop.f32.mrb[0].mxu0
  %879 = vmatprep.mubr.f32.mxu0 0.0
  %880 = vmatmul.mubr.f32.gmra.mrb[0].mxu0 %v798
  %v881 = vpop.f32.mrb[0].mxu0
  %v882 = vadd.f32 0.0, %v881
  %v883 = vpop.f32.mrb[0].mxu0
  %884 = vmatprep.mubr.f32.mxu0 0.0
  %885 = vmatmul.mubr.f32.gmra.mrb[0].mxu0 %v801
  %v886 = vpop.f32.mrb[0].mxu0
  %v887 = vadd.f32 0.0, %v886
  %v888 = vpop.f32.mrb[0].mxu0
  %889 = vdwg.mxu0
  %894 = vrot.lane.b32.xlu0 %v872, 16
  %v895 = vpop.permute.xlu0 %894
  %896 = vrot.lane.b32.xlu0 %v877, 16
  %v897 = vpop.permute.xlu0 %896
  %898 = vrot.lane.b32.xlu0 %v882, 16
  %v899 = vpop.permute.xlu0 %898
  %900 = vrot.lane.b32.xlu0 %v887, 16
  %v901 = vpop.permute.xlu0 %900
  %v906 = vsel %vm344, %v593, %v895
  %v907 = vsel %vm344, %v598, %v897
  %v908 = vsel %vm344, %v603, %v899
  %v909 = vsel %vm344, %v608, %v901
  %914 = vrot.lane.b32.xlu0 %v227, 32
  %v915 = vpop.permute.xlu0 %914
  %916 = vrot.lane.b32.xlu0 %v228, 32
  %v917 = vpop.permute.xlu0 %916
  %918 = vrot.lane.b32.xlu0 %v229, 32
  %v919 = vpop.permute.xlu0 %918
  %920 = vrot.lane.b32.xlu0 %v230, 32
  %v921 = vpop.permute.xlu0 %920
  %927 = vrot.lane.b32.xlu0 %v234, 32
  %v928 = vpop.permute.xlu0 %927
  %v931 = vsel %vm34, %v906, 0
  %v934 = vsel %vm34, %v907, 0
  %v937 = vsel %vm34, %v908, 0
  %v940 = vsel %vm34, %v909, 0
  %942 = vmatprep.subr.mxu0 0.0
  %943 = vmatpush1.msra.mxu0 %v915
  %944 = vmatprep.subr.mxu0 0.0
  %945 = vmatpush1.msra.mxu0 %v917
  %946 = vmatprep.subr.mxu0 0.0
  %947 = vmatpush1.msra.mxu0 %v919
  %948 = vmatprep.subr.mxu0 0.0
  %949 = vmatpush1.msra.mxu0 %v921
  %950 = vmatprep.subr.mxu0 0.0
  %951 = vmatpush1.msra.mxu0 0.0
  %952 = vmatprep.subr.mxu0 0.0
  %953 = vmatpush1.msra.mxu0 0.0
  %954 = vmatprep.subr.mxu0 0.0
  %955 = vmatpush1.msra.mxu0 0.0
  %956 = vmatprep.subr.mxu0 0.0
  %957 = vmatpush1.msra.mxu0 0.0
  %958 = vmatprep.subr.mxu0 0.0
  %959 = vmatpush1.msra.mxu0 0.0
  %960 = vmatprep.subr.mxu0 0.0
  %961 = vmatpush1.msra.mxu0 0.0
  %962 = vmatprep.subr.mxu0 0.0
  %963 = vmatpush1.msra.mxu0 0.0
  %964 = vmatprep.subr.mxu0 0.0
  %965 = vmatpush1.msra.mxu0 0.0
  %966 = vmatprep.subr.mxu0 0.0
  %967 = vmatpush1.msra.mxu0 0.0
  %968 = vmatprep.subr.mxu0 0.0
  %969 = vmatpush1.msra.mxu0 0.0
  %970 = vmatprep.subr.mxu0 0.0
  %971 = vmatpush1.msra.mxu0 0.0
  %972 = vmatprep.subr.mxu0 0.0
  %973 = vmatpush1.msra.mxu0 0.0
  %974 = vmatprep.subr.mxu0 0.0
  %975 = vmatpush1.msra.mxu0 0.0
  %976 = vmatprep.subr.mxu0 0.0
  %977 = vmatpush1.msra.mxu0 0.0
  %978 = vmatprep.subr.mxu0 0.0
  %979 = vmatpush1.msra.mxu0 0.0
  %980 = vmatprep.subr.mxu0 0.0
  %981 = vmatpush1.msra.mxu0 0.0
  %982 = vmatprep.subr.mxu0 0.0
  %983 = vmatpush1.msra.mxu0 0.0
  %984 = vmatprep.subr.mxu0 0.0
  %985 = vmatpush1.msra.mxu0 0.0
  %986 = vmatprep.subr.mxu0 0.0
  %987 = vmatpush1.msra.mxu0 0.0
  %988 = vmatprep.subr.mxu0 0.0
  %989 = vmatpush1.msra.mxu0 0.0
  %990 = vmatprep.subr.mxu0 0.0
  %991 = vmatpush1.msra.mxu0 0.0
  %992 = vmatprep.subr.mxu0 0.0
  %993 = vmatpush1.msra.mxu0 0.0
  %994 = vmatprep.subr.mxu0 0.0
  %995 = vmatpush1.msra.mxu0 0.0
  %996 = vmatprep.subr.mxu0 0.0
  %997 = vmatpush1.msra.mxu0 0.0
  %998 = vmatprep.subr.mxu0 0.0
  %999 = vmatpush1.msra.mxu0 0.0
  %1000 = vmatprep.subr.mxu0 0.0
  %1001 = vmatpush1.msra.mxu0 0.0
  %1002 = vmatprep.subr.mxu0 0.0
  %1003 = vmatpush1.msra.mxu0 0.0
  %1004 = vmatprep.subr.mxu0 0.0
  %1005 = vmatpush1.msra.mxu0 0.0
  %1006 = vmatprep.mubr.f32.mxu0 0.0
  %1007 = vmatmul.mubr.f32.gmra.mrb[0].mxu0 %v931
  %v1008 = vpop.f32.mrb[0].mxu0
  %v1009 = vadd.f32 %v928, %v1008
  %v1010 = vpop.f32.mrb[0].mxu0
  %1011 = vmatprep.mubr.f32.mxu0 0.0
  %1012 = vmatmul.mubr.f32.gmra.mrb[0].mxu0 %v934
  %v1013 = vpop.f32.mrb[0].mxu0
  %v1014 = vadd.f32 %v928, %v1013
  %v1015 = vpop.f32.mrb[0].mxu0
  %1016 = vmatprep.mubr.f32.mxu0 0.0
  %1017 = vmatmul.mubr.f32.gmra.mrb[0].mxu0 %v937
  %v1018 = vpop.f32.mrb[0].mxu0
  %v1019 = vadd.f32 %v928, %v1018
  %v1020 = vpop.f32.mrb[0].mxu0
  %1021 = vmatprep.mubr.f32.mxu0 0.0
  %1022 = vmatmul.mubr.f32.gmra.mrb[0].mxu0 %v940
  %v1023 = vpop.f32.mrb[0].mxu0
  %v1024 = vadd.f32 %v928, %v1023
  %v1025 = vpop.f32.mrb[0].mxu0
  %1026 = vdwg.mxu0
  %v1027 = vmul.f32 %v142, %v1009
  %v1028 = vmul.f32 %v143, %v1014
  %v1029 = vmul.f32 %v144, %v1019
  %v1030 = vmul.f32 %v145, %v1024
  %v1031 = vadd.f32 %v114, %v1027
  %v1032 = vadd.f32 %v119, %v1028
  %v1033 = vadd.f32 %v124, %v1029
  %v1034 = vadd.f32 %v129, %v1030
  %v1035 = vsel %vm34, %v1031, 0.0
  %1036 = vadd.xlane.f32.xlu0 %v1035
  %v1037 = vpop.xlane.xlu0 %1036
  %v1038 = vsel %vm34, %v1032, 0.0
  %1039 = vadd.xlane.f32.xlu0 %v1038
  %v1040 = vpop.xlane.xlu0 %1039
  %v1041 = vsel %vm34, %v1033, 0.0
  %1042 = vadd.xlane.f32.xlu0 %v1041
  %v1043 = vpop.xlane.xlu0 %1042
  %v1044 = vsel %vm170, %v1034, 0.0
  %1045 = vadd.xlane.f32.xlu0 %v1044
  %v1046 = vpop.xlane.xlu0 %1045
  %v1047 = vmul.f32 %v1037, %v174
  %v1048 = vmul.f32 %v1040, %v174
  %v1049 = vmul.f32 %v1043, %v174
  %v1050 = vmul.f32 %v1046, %v174
  %v1051 = vsub.f32 %v1031, %v1047
  %v1052 = vsub.f32 %v1032, %v1048
  %v1053 = vsub.f32 %v1033, %v1049
  %v1054 = vsub.f32 %v1034, %v1050
  %v1055 = vmul.f32 %v1051, %v1051
  %v1056 = vmul.f32 %v1052, %v1052
  %v1057 = vmul.f32 %v1053, %v1053
  %v1058 = vmul.f32 %v1054, %v1054
  %v1059 = vsel %vm34, %v1055, 0.0
  %1060 = vadd.xlane.f32.xlu0 %v1059
  %v1061 = vpop.xlane.xlu0 %1060
  %v1062 = vsel %vm34, %v1056, 0.0
  %1063 = vadd.xlane.f32.xlu0 %v1062
  %v1064 = vpop.xlane.xlu0 %1063
  %v1065 = vsel %vm34, %v1057, 0.0
  %1066 = vadd.xlane.f32.xlu0 %v1065
  %v1067 = vpop.xlane.xlu0 %1066
  %v1068 = vsel %vm170, %v1058, 0.0
  %1069 = vadd.xlane.f32.xlu0 %v1068
  %v1070 = vpop.xlane.xlu0 %1069
  %v1071 = vmul.f32 %v1061, %v174
  %v1072 = vmul.f32 %v1064, %v174
  %v1073 = vmul.f32 %v1067, %v174
  %v1074 = vmul.f32 %v1070, %v174
  %v1075 = vadd.f32 %v1071, 1e-06
  %v1076 = vadd.f32 %v1072, 1e-06
  %v1077 = vadd.f32 %v1073, 1e-06
  %v1078 = vadd.f32 %v1074, 1e-06
  %v1079 = vrsqrt.pop %v1075
  %v1080 = vrsqrt.pop %v1076
  %v1081 = vrsqrt.pop %v1077
  %v1082 = vrsqrt.pop %v1078
  %v1083 = vmul.f32 %v1051, %v1079
  %v1084 = vmul.f32 %v1052, %v1080
  %v1085 = vmul.f32 %v1053, %v1081
  %v1086 = vmul.f32 %v1054, %v1082
  %v1087 = vadd.f32 %v152, 1.0
  %v1088 = vadd.f32 %v153, 1.0
  %v1089 = vadd.f32 %v154, 1.0
  %v1090 = vadd.f32 %v155, 1.0
  %v1091 = vmul.f32 %v1083, %v1087
  %v1092 = vmul.f32 %v1084, %v1088
  %v1093 = vmul.f32 %v1085, %v1089
  %v1094 = vmul.f32 %v1086, %v1090
  %v1095 = vadd.f32 %v1091, %v147
  %v1096 = vadd.f32 %v1092, %v148
  %v1097 = vadd.f32 %v1093, %v149
  %v1098 = vadd.f32 %v1094, %v150
  %v1099 = vld [vmem:[%s3 + $0x88] sm:$0xff]
  %v1100 = vld [vmem:[%s3 + $0x90] sm:$0xff]
  %v1101 = vld [vmem:[%s3 + $0x98] sm:$0xff]
  %v1102 = vld [vmem:[%s3 + $0xa0] sm:$0xff]
  %v1103 = vlaneseq
  %v1104 = vshrl.u32 %v1103, 7
  %v1105 = vsub.s32 1, %v1104
  %v1106 = vrot.slane %v25, %v1105
  %v1108 = vsel %vm34, %v1095, 0
  %v1111 = vsel %vm34, %v1096, 0
  %v1114 = vsel %vm34, %v1097, 0
  %v1117 = vsel %vm34, %v1098, 0
  %1119 = vmatprep.subr.mxu0 0.0
  %1120 = vmatpush1.msra.mxu0 %v1099
  %1121 = vmatprep.subr.mxu0 0.0
  %1122 = vmatpush1.msra.mxu0 %v1100
  %1123 = vmatprep.subr.mxu0 0.0
  %1124 = vmatpush1.msra.mxu0 %v1101
  %1125 = vmatprep.subr.mxu0 0.0
  %1126 = vmatpush1.msra.mxu0 %v1102
  %1127 = vmatprep.subr.mxu0 0.0
  %1128 = vmatpush1.msra.mxu0 0.0
  %1129 = vmatprep.subr.mxu0 0.0
  %1130 = vmatpush1.msra.mxu0 0.0
  %1131 = vmatprep.subr.mxu0 0.0
  %1132 = vmatpush1.msra.mxu0 0.0
  %1133 = vmatprep.subr.mxu0 0.0
  %1134 = vmatpush1.msra.mxu0 0.0
  %1135 = vmatprep.subr.mxu0 0.0
  %1136 = vmatpush1.msra.mxu0 0.0
  %1137 = vmatprep.subr.mxu0 0.0
  %1138 = vmatpush1.msra.mxu0 0.0
  %1139 = vmatprep.subr.mxu0 0.0
  %1140 = vmatpush1.msra.mxu0 0.0
  %1141 = vmatprep.subr.mxu0 0.0
  %1142 = vmatpush1.msra.mxu0 0.0
  %1143 = vmatprep.subr.mxu0 0.0
  %1144 = vmatpush1.msra.mxu0 0.0
  %1145 = vmatprep.subr.mxu0 0.0
  %1146 = vmatpush1.msra.mxu0 0.0
  %1147 = vmatprep.subr.mxu0 0.0
  %1148 = vmatpush1.msra.mxu0 0.0
  %1149 = vmatprep.subr.mxu0 0.0
  %1150 = vmatpush1.msra.mxu0 0.0
  %1151 = vmatprep.subr.mxu0 0.0
  %1152 = vmatpush1.msra.mxu0 0.0
  %1153 = vmatprep.subr.mxu0 0.0
  %1154 = vmatpush1.msra.mxu0 0.0
  %1155 = vmatprep.subr.mxu0 0.0
  %1156 = vmatpush1.msra.mxu0 0.0
  %1157 = vmatprep.subr.mxu0 0.0
  %1158 = vmatpush1.msra.mxu0 0.0
  %1159 = vmatprep.subr.mxu0 0.0
  %1160 = vmatpush1.msra.mxu0 0.0
  %1161 = vmatprep.subr.mxu0 0.0
  %1162 = vmatpush1.msra.mxu0 0.0
  %1163 = vmatprep.subr.mxu0 0.0
  %1164 = vmatpush1.msra.mxu0 0.0
  %1165 = vmatprep.subr.mxu0 0.0
  %1166 = vmatpush1.msra.mxu0 0.0
  %1167 = vmatprep.subr.mxu0 0.0
  %1168 = vmatpush1.msra.mxu0 0.0
  %1169 = vmatprep.subr.mxu0 0.0
  %1170 = vmatpush1.msra.mxu0 0.0
  %1171 = vmatprep.subr.mxu0 0.0
  %1172 = vmatpush1.msra.mxu0 0.0
  %1173 = vmatprep.subr.mxu0 0.0
  %1174 = vmatpush1.msra.mxu0 0.0
  %1175 = vmatprep.subr.mxu0 0.0
  %1176 = vmatpush1.msra.mxu0 0.0
  %1177 = vmatprep.subr.mxu0 0.0
  %1178 = vmatpush1.msra.mxu0 0.0
  %1179 = vmatprep.subr.mxu0 0.0
  %1180 = vmatpush1.msra.mxu0 0.0
  %1181 = vmatprep.subr.mxu0 0.0
  %1182 = vmatpush1.msra.mxu0 0.0
  %1183 = vmatprep.mubr.f32.mxu0 0.0
  %1184 = vmatmul.mubr.f32.gmra.mrb[0].mxu0 %v1108
  %v1185 = vpop.f32.mrb[0].mxu0
  %v1186 = vadd.f32 %v1106, %v1185
  %v1187 = vpop.f32.mrb[0].mxu0
  %1188 = vmatprep.mubr.f32.mxu0 0.0
  %1189 = vmatmul.mubr.f32.gmra.mrb[0].mxu0 %v1111
  %v1190 = vpop.f32.mrb[0].mxu0
  %v1191 = vadd.f32 %v1106, %v1190
  %v1192 = vpop.f32.mrb[0].mxu0
  %1193 = vmatprep.mubr.f32.mxu0 0.0
  %1194 = vmatmul.mubr.f32.gmra.mrb[0].mxu0 %v1114
  %v1195 = vpop.f32.mrb[0].mxu0
  %v1196 = vadd.f32 %v1106, %v1195
  %v1197 = vpop.f32.mrb[0].mxu0
  %1198 = vmatprep.mubr.f32.mxu0 0.0
  %1199 = vmatmul.mubr.f32.gmra.mrb[0].mxu0 %v1117
  %v1200 = vpop.f32.mrb[0].mxu0
  %v1201 = vadd.f32 %v1106, %v1200
  %v1202 = vpop.f32.mrb[0].mxu0
  %1203 = vdwg.mxu0
  %v1204 = vmul.f32 %v1186, %v1186
  %v1205 = vmul.f32 %v1191, %v1191
  %v1206 = vmul.f32 %v1196, %v1196
  %v1207 = vmul.f32 %v1201, %v1201
  %v1208 = vmul.f32 %v1186, %v1204
  %v1209 = vmul.f32 %v1191, %v1205
  %v1210 = vmul.f32 %v1196, %v1206
  %v1211 = vmul.f32 %v1201, %v1207
  %v1212 = vmul.f32 %v1208, 0.044715
  %v1213 = vmul.f32 %v1209, 0.044715
  %v1214 = vmul.f32 %v1210, 0.044715
  %v1215 = vmul.f32 %v1211, 0.044715
  %v1216 = vadd.f32 %v1186, %v1212
  %v1217 = vadd.f32 %v1191, %v1213
  %v1218 = vadd.f32 %v1196, %v1214
  %v1219 = vadd.f32 %v1201, %v1215
  %v1220 = vmul.f32 %v1216, 0.7978846
  %v1221 = vmul.f32 %v1217, 0.7978846
  %v1222 = vmul.f32 %v1218, 0.7978846
  %v1223 = vmul.f32 %v1219, 0.7978846
  %v1224 = vtanh.pop %v1220
  %v1225 = vtanh.pop %v1221
  %v1226 = vtanh.pop %v1222
  %v1227 = vtanh.pop %v1223
  %v1228 = vadd.f32 %v1224, 1.0
  %v1229 = vadd.f32 %v1225, 1.0
  %v1230 = vadd.f32 %v1226, 1.0
  %v1231 = vadd.f32 %v1227, 1.0
  %v1232 = vmul.f32 %v1228, 0.5
  %v1233 = vmul.f32 %v1229, 0.5
  %v1234 = vmul.f32 %v1230, 0.5
  %v1235 = vmul.f32 %v1231, 0.5
  %v1236 = vmul.f32 %v1186, %v1232
  %v1237 = vmul.f32 %v1191, %v1233
  %v1238 = vmul.f32 %v1196, %v1234
  %v1239 = vmul.f32 %v1201, %v1235
  %v1240 = vld [vmem:[%s3 + $0xc8] sm:$0xff]
  %v1241 = vld [vmem:[%s3 + $0xd0] sm:$0xff]
  %v1242 = vld [vmem:[%s3 + $0xd8] sm:$0xff]
  %v1243 = vld [vmem:[%s3 + $0xe0] sm:$0xff]
  %v1244 = vld [vmem:[%s3 + $0xe8] sm:$0xff]
  %v1245 = vld [vmem:[%s3 + $0xf0] sm:$0xff]
  %v1246 = vld [vmem:[%s3 + $0xf8] sm:$0xff]
  %v1247 = vld [vmem:[%s3 + $0x100] sm:$0xff]
  %v1248 = vld [vmem:[%s3 + $0x108] sm:$0xff]
  %v1249 = vld [vmem:[%s3 + $0x110] sm:$0xff]
  %v1250 = vld [vmem:[%s3 + $0x118] sm:$0xff]
  %v1251 = vld [vmem:[%s3 + $0x120] sm:$0xff]
  %v1252 = vld [vmem:[%s3 + $0x128] sm:$0xff]
  %v1253 = vld [vmem:[%s3 + $0x130] sm:$0xff]
  %v1254 = vld [vmem:[%s3 + $0x138] sm:$0xff]
  %v1255 = vld [vmem:[%s3 + $0x140] sm:$0xff]
  %v1256 = vlaneseq
  %v1257 = vshrl.u32 %v1256, 7
  %v1258 = vsub.s32 2, %v1257
  %v1259 = vrot.slane %v25, %v1258
  %1260 = vmatprep.subr.mxu0 0.0
  %1261 = vmatpush1.msra.mxu0 %v1240
  %1262 = vmatprep.subr.mxu0 0.0
  %1263 = vmatpush1.msra.mxu0 %v1241
  %1264 = vmatprep.subr.mxu0 0.0
  %1265 = vmatpush1.msra.mxu0 %v1242
  %1266 = vmatprep.subr.mxu0 0.0
  %1267 = vmatpush1.msra.mxu0 %v1243
  %1268 = vmatprep.subr.mxu0 0.0
  %1269 = vmatpush1.msra.mxu0 %v1244
  %1270 = vmatprep.subr.mxu0 0.0
  %1271 = vmatpush1.msra.mxu0 %v1245
  %1272 = vmatprep.subr.mxu0 0.0
  %1273 = vmatpush1.msra.mxu0 %v1246
  %1274 = vmatprep.subr.mxu0 0.0
  %1275 = vmatpush1.msra.mxu0 %v1247
  %1276 = vmatprep.subr.mxu0 0.0
  %1277 = vmatpush1.msra.mxu0 %v1248
  %1278 = vmatprep.subr.mxu0 0.0
  %1279 = vmatpush1.msra.mxu0 %v1249
  %1280 = vmatprep.subr.mxu0 0.0
  %1281 = vmatpush1.msra.mxu0 %v1250
  %1282 = vmatprep.subr.mxu0 0.0
  %1283 = vmatpush1.msra.mxu0 %v1251
  %1284 = vmatprep.subr.mxu0 0.0
  %1285 = vmatpush1.msra.mxu0 %v1252
  %1286 = vmatprep.subr.mxu0 0.0
  %1287 = vmatpush1.msra.mxu0 %v1253
  %1288 = vmatprep.subr.mxu0 0.0
  %1289 = vmatpush1.msra.mxu0 %v1254
  %1290 = vmatprep.subr.mxu0 0.0
  %1291 = vmatpush1.msra.mxu0 %v1255
  %1292 = vmatprep.subr.mxu0 0.0
  %1293 = vmatpush1.msra.mxu0 0.0
  %1294 = vmatprep.subr.mxu0 0.0
  %1295 = vmatpush1.msra.mxu0 0.0
  %1296 = vmatprep.subr.mxu0 0.0
  %1297 = vmatpush1.msra.mxu0 0.0
  %1298 = vmatprep.subr.mxu0 0.0
  %1299 = vmatpush1.msra.mxu0 0.0
  %1300 = vmatprep.subr.mxu0 0.0
  %1301 = vmatpush1.msra.mxu0 0.0
  %1302 = vmatprep.subr.mxu0 0.0
  %1303 = vmatpush1.msra.mxu0 0.0
  %1304 = vmatprep.subr.mxu0 0.0
  %1305 = vmatpush1.msra.mxu0 0.0
  %1306 = vmatprep.subr.mxu0 0.0
  %1307 = vmatpush1.msra.mxu0 0.0
  %1308 = vmatprep.subr.mxu0 0.0
  %1309 = vmatpush1.msra.mxu0 0.0
  %1310 = vmatprep.subr.mxu0 0.0
  %1311 = vmatpush1.msra.mxu0 0.0
  %1312 = vmatprep.subr.mxu0 0.0
  %1313 = vmatpush1.msra.mxu0 0.0
  %1314 = vmatprep.subr.mxu0 0.0
  %1315 = vmatpush1.msra.mxu0 0.0
  %1316 = vmatprep.subr.mxu0 0.0
  %1317 = vmatpush1.msra.mxu0 0.0
  %1318 = vmatprep.subr.mxu0 0.0
  %1319 = vmatpush1.msra.mxu0 0.0
  %1320 = vmatprep.subr.mxu0 0.0
  %1321 = vmatpush1.msra.mxu0 0.0
  %1322 = vmatprep.subr.mxu0 0.0
  %1323 = vmatpush1.msra.mxu0 0.0
  %1324 = vmatprep.mubr.f32.mxu0 0.0
  %1325 = vmatmul.mubr.f32.gmra.mrb[0].mxu0 %v1236
  %v1326 = vpop.f32.mrb[0].mxu0
  %v1327 = vadd.f32 %v1259, %v1326
  %v1328 = vpop.f32.mrb[0].mxu0
  %1329 = vmatprep.mubr.f32.mxu0 0.0
  %1330 = vmatmul.mubr.f32.gmra.mrb[0].mxu0 %v1237
  %v1331 = vpop.f32.mrb[0].mxu0
  %v1332 = vadd.f32 %v1259, %v1331
  %v1333 = vpop.f32.mrb[0].mxu0
  %1334 = vmatprep.mubr.f32.mxu0 0.0
  %1335 = vmatmul.mubr.f32.gmra.mrb[0].mxu0 %v1238
  %v1336 = vpop.f32.mrb[0].mxu0
  %v1337 = vadd.f32 %v1259, %v1336
  %v1338 = vpop.f32.mrb[0].mxu0
  %1339 = vmatprep.mubr.f32.mxu0 0.0
  %1340 = vmatmul.mubr.f32.gmra.mrb[0].mxu0 %v1239
  %v1341 = vpop.f32.mrb[0].mxu0
  %v1342 = vadd.f32 %v1259, %v1341
  %v1343 = vpop.f32.mrb[0].mxu0
  %1344 = vdwg.mxu0
  %v1345 = vmul.f32 %v157, %v1327
  %v1346 = vmul.f32 %v158, %v1332
  %v1347 = vmul.f32 %v159, %v1337
  %v1348 = vmul.f32 %v160, %v1342
  %v1349 = vadd.f32 %v1031, %v1345
  %v1350 = vadd.f32 %v1032, %v1346
  %v1351 = vadd.f32 %v1033, %v1347
  %v1352 = vadd.f32 %v1034, %v1348
  %s1353 = scalar_lea.vmem %s1, 192
  %v1354 = vld [vmem:[%s1353] sm:$0xff]
  %v1355 = vld [vmem:[%s1353 + $0x8] sm:$0xff]
  %v1356 = vld [vmem:[%s1353 + $0x10] sm:$0xff]
  %v1357 = vld [vmem:[%s1353 + $0x18] sm:$0x3]
  %s1358 = scalar_lea.vmem %s1, 224
  %v1359 = vld [vmem:[%s1358] sm:$0xff]
  %v1360 = vld [vmem:[%s1358 + $0x8] sm:$0xff]
  %v1361 = vld [vmem:[%s1358 + $0x10] sm:$0xff]
  %v1362 = vld [vmem:[%s1358 + $0x18] sm:$0x3]
  %s1363 = scalar_lea.vmem %s1, 256
  %v1364 = vld [vmem:[%s1363] sm:$0xff]
  %v1365 = vld [vmem:[%s1363 + $0x8] sm:$0xff]
  %v1366 = vld [vmem:[%s1363 + $0x10] sm:$0xff]
  %v1367 = vld [vmem:[%s1363 + $0x18] sm:$0x3]
  %s1368 = scalar_lea.vmem %s1, 288
  %v1369 = vld [vmem:[%s1368] sm:$0xff]
  %v1370 = vld [vmem:[%s1368 + $0x8] sm:$0xff]
  %v1371 = vld [vmem:[%s1368 + $0x10] sm:$0xff]
  %v1372 = vld [vmem:[%s1368 + $0x18] sm:$0x3]
  %s1373 = scalar_lea.vmem %s1, 320
  %v1374 = vld [vmem:[%s1373] sm:$0xff]
  %v1375 = vld [vmem:[%s1373 + $0x8] sm:$0xff]
  %v1376 = vld [vmem:[%s1373 + $0x10] sm:$0xff]
  %v1377 = vld [vmem:[%s1373 + $0x18] sm:$0x3]
  %s1378 = scalar_lea.vmem %s1, 352
  %v1379 = vld [vmem:[%s1378] sm:$0xff]
  %v1380 = vld [vmem:[%s1378 + $0x8] sm:$0xff]
  %v1381 = vld [vmem:[%s1378 + $0x10] sm:$0xff]
  %v1382 = vld [vmem:[%s1378 + $0x18] sm:$0x3]
  %v1383 = vsel %vm34, %v1349, 0.0
  %1384 = vadd.xlane.f32.xlu0 %v1383
  %v1385 = vpop.xlane.xlu0 %1384
  %v1386 = vsel %vm34, %v1350, 0.0
  %1387 = vadd.xlane.f32.xlu0 %v1386
  %v1388 = vpop.xlane.xlu0 %1387
  %v1389 = vsel %vm34, %v1351, 0.0
  %1390 = vadd.xlane.f32.xlu0 %v1389
  %v1391 = vpop.xlane.xlu0 %1390
  %v1392 = vsel %vm170, %v1352, 0.0
  %1393 = vadd.xlane.f32.xlu0 %v1392
  %v1394 = vpop.xlane.xlu0 %1393
  %v1395 = vmul.f32 %v1385, %v174
  %v1396 = vmul.f32 %v1388, %v174
  %v1397 = vmul.f32 %v1391, %v174
  %v1398 = vmul.f32 %v1394, %v174
  %v1399 = vsub.f32 %v1349, %v1395
  %v1400 = vsub.f32 %v1350, %v1396
  %v1401 = vsub.f32 %v1351, %v1397
  %v1402 = vsub.f32 %v1352, %v1398
  %v1403 = vmul.f32 %v1399, %v1399
  %v1404 = vmul.f32 %v1400, %v1400
  %v1405 = vmul.f32 %v1401, %v1401
  %v1406 = vmul.f32 %v1402, %v1402
  %v1407 = vsel %vm34, %v1403, 0.0
  %1408 = vadd.xlane.f32.xlu0 %v1407
  %v1409 = vpop.xlane.xlu0 %1408
  %v1410 = vsel %vm34, %v1404, 0.0
  %1411 = vadd.xlane.f32.xlu0 %v1410
  %v1412 = vpop.xlane.xlu0 %1411
  %v1413 = vsel %vm34, %v1405, 0.0
  %1414 = vadd.xlane.f32.xlu0 %v1413
  %v1415 = vpop.xlane.xlu0 %1414
  %v1416 = vsel %vm170, %v1406, 0.0
  %1417 = vadd.xlane.f32.xlu0 %v1416
  %v1418 = vpop.xlane.xlu0 %1417
  %v1419 = vmul.f32 %v1409, %v174
  %v1420 = vmul.f32 %v1412, %v174
  %v1421 = vmul.f32 %v1415, %v174
  %v1422 = vmul.f32 %v1418, %v174
  %v1423 = vadd.f32 %v1419, 1e-06
  %v1424 = vadd.f32 %v1420, 1e-06
  %v1425 = vadd.f32 %v1421, 1e-06
  %v1426 = vadd.f32 %v1422, 1e-06
  %v1427 = vrsqrt.pop %v1423
  %v1428 = vrsqrt.pop %v1424
  %v1429 = vrsqrt.pop %v1425
  %v1430 = vrsqrt.pop %v1426
  %v1431 = vmul.f32 %v1399, %v1427
  %v1432 = vmul.f32 %v1400, %v1428
  %v1433 = vmul.f32 %v1401, %v1429
  %v1434 = vmul.f32 %v1402, %v1430
  %v1435 = vadd.f32 %v1359, 1.0
  %v1436 = vadd.f32 %v1360, 1.0
  %v1437 = vadd.f32 %v1361, 1.0
  %v1438 = vadd.f32 %v1362, 1.0
  %v1439 = vmul.f32 %v1431, %v1435
  %v1440 = vmul.f32 %v1432, %v1436
  %v1441 = vmul.f32 %v1433, %v1437
  %v1442 = vmul.f32 %v1434, %v1438
  %v1443 = vadd.f32 %v1439, %v1354
  %v1444 = vadd.f32 %v1440, %v1355
  %v1445 = vadd.f32 %v1441, %v1356
  %v1446 = vadd.f32 %v1442, %v1357
  %v1447 = vld [vmem:[%s3 + $0x68] sm:$0xff]
  %v1448 = vld [vmem:[%s3 + $0x70] sm:$0xff]
  %v1449 = vld [vmem:[%s3 + $0x78] sm:$0xff]
  %v1450 = vld [vmem:[%s3 + $0x80] sm:$0xff]
  %v1451 = vlaneseq
  %v1452 = vshrl.u32 %v1451, 7
  %v1453 = vsub.s32 3, %v1452
  %v1454 = vrot.slane %v25, %v1453
  %v1456 = vsel %vm34, %v1443, 0
  %v1459 = vsel %vm34, %v1444, 0
  %v1462 = vsel %vm34, %v1445, 0
  %v1465 = vsel %vm34, %v1446, 0
  %1467 = vmatprep.subr.mxu0 0.0
  %1468 = vmatpush1.msra.mxu0 %v1447
  %1469 = vmatprep.subr.mxu0 0.0
  %1470 = vmatpush1.msra.mxu0 %v1448
  %1471 = vmatprep.subr.mxu0 0.0
  %1472 = vmatpush1.msra.mxu0 %v1449
  %1473 = vmatprep.subr.mxu0 0.0
  %1474 = vmatpush1.msra.mxu0 %v1450
  %1475 = vmatprep.subr.mxu0 0.0
  %1476 = vmatpush1.msra.mxu0 0.0
  %1477 = vmatprep.subr.mxu0 0.0
  %1478 = vmatpush1.msra.mxu0 0.0
  %1479 = vmatprep.subr.mxu0 0.0
  %1480 = vmatpush1.msra.mxu0 0.0
  %1481 = vmatprep.subr.mxu0 0.0
  %1482 = vmatpush1.msra.mxu0 0.0
  %1483 = vmatprep.subr.mxu0 0.0
  %1484 = vmatpush1.msra.mxu0 0.0
  %1485 = vmatprep.subr.mxu0 0.0
  %1486 = vmatpush1.msra.mxu0 0.0
  %1487 = vmatprep.subr.mxu0 0.0
  %1488 = vmatpush1.msra.mxu0 0.0
  %1489 = vmatprep.subr.mxu0 0.0
  %1490 = vmatpush1.msra.mxu0 0.0
  %1491 = vmatprep.subr.mxu0 0.0
  %1492 = vmatpush1.msra.mxu0 0.0
  %1493 = vmatprep.subr.mxu0 0.0
  %1494 = vmatpush1.msra.mxu0 0.0
  %1495 = vmatprep.subr.mxu0 0.0
  %1496 = vmatpush1.msra.mxu0 0.0
  %1497 = vmatprep.subr.mxu0 0.0
  %1498 = vmatpush1.msra.mxu0 0.0
  %1499 = vmatprep.subr.mxu0 0.0
  %1500 = vmatpush1.msra.mxu0 0.0
  %1501 = vmatprep.subr.mxu0 0.0
  %1502 = vmatpush1.msra.mxu0 0.0
  %1503 = vmatprep.subr.mxu0 0.0
  %1504 = vmatpush1.msra.mxu0 0.0
  %1505 = vmatprep.subr.mxu0 0.0
  %1506 = vmatpush1.msra.mxu0 0.0
  %1507 = vmatprep.subr.mxu0 0.0
  %1508 = vmatpush1.msra.mxu0 0.0
  %1509 = vmatprep.subr.mxu0 0.0
  %1510 = vmatpush1.msra.mxu0 0.0
  %1511 = vmatprep.subr.mxu0 0.0
  %1512 = vmatpush1.msra.mxu0 0.0
  %1513 = vmatprep.subr.mxu0 0.0
  %1514 = vmatpush1.msra.mxu0 0.0
  %1515 = vmatprep.subr.mxu0 0.0
  %1516 = vmatpush1.msra.mxu0 0.0
  %1517 = vmatprep.subr.mxu0 0.0
  %1518 = vmatpush1.msra.mxu0 0.0
  %1519 = vmatprep.subr.mxu0 0.0
  %1520 = vmatpush1.msra.mxu0 0.0
  %1521 = vmatprep.subr.mxu0 0.0
  %1522 = vmatpush1.msra.mxu0 0.0
  %1523 = vmatprep.subr.mxu0 0.0
  %1524 = vmatpush1.msra.mxu0 0.0
  %1525 = vmatprep.subr.mxu0 0.0
  %1526 = vmatpush1.msra.mxu0 0.0
  %1527 = vmatprep.subr.mxu0 0.0
  %1528 = vmatpush1.msra.mxu0 0.0
  %1529 = vmatprep.subr.mxu0 0.0
  %1530 = vmatpush1.msra.mxu0 0.0
  %1531 = vmatprep.mubr.f32.mxu0 0.0
  %1532 = vmatmul.mubr.f32.gmra.mrb[0].mxu0 %v1456
  %v1533 = vpop.f32.mrb[0].mxu0
  %v1534 = vadd.f32 %v1454, %v1533
  %v1535 = vpop.f32.mrb[0].mxu0
  %1536 = vmatprep.mubr.f32.mxu0 0.0
  %1537 = vmatmul.mubr.f32.gmra.mrb[0].mxu0 %v1459
  %v1538 = vpop.f32.mrb[0].mxu0
  %v1539 = vadd.f32 %v1454, %v1538
  %v1540 = vpop.f32.mrb[0].mxu0
  %1541 = vmatprep.mubr.f32.mxu0 0.0
  %1542 = vmatmul.mubr.f32.gmra.mrb[0].mxu0 %v1462
  %v1543 = vpop.f32.mrb[0].mxu0
  %v1544 = vadd.f32 %v1454, %v1543
  %v1545 = vpop.f32.mrb[0].mxu0
  %1546 = vmatprep.mubr.f32.mxu0 0.0
  %1547 = vmatmul.mubr.f32.gmra.mrb[0].mxu0 %v1465
  %v1548 = vpop.f32.mrb[0].mxu0
  %v1549 = vadd.f32 %v1454, %v1548
  %v1550 = vpop.f32.mrb[0].mxu0
  %1551 = vdwg.mxu0
  %1556 = vrot.lane.b32.xlu0 %v1534, 96
  %v1557 = vpop.permute.xlu0 %1556
  %1558 = vrot.lane.b32.xlu0 %v1539, 96
  %v1559 = vpop.permute.xlu0 %1558
  %1560 = vrot.lane.b32.xlu0 %v1544, 96
  %v1561 = vpop.permute.xlu0 %1560
  %1562 = vrot.lane.b32.xlu0 %v1549, 96
  %v1563 = vpop.permute.xlu0 %1562
  %v1564 = vsel %vm344, %v1534, 0
  %v1566 = vsel %vm344, %v1539, 0
  %v1568 = vsel %vm344, %v1544, 0
  %v1570 = vsel %vm344, %v1549, 0
  %v1572 = vsel %vm344, %v1557, 0
  %v1574 = vsel %vm344, %v1559, 0
  %v1576 = vsel %vm344, %v1561, 0
  %v1578 = vsel %vm344, %v1563, 0
  %1580 = vmatprep.subr.mxu0 0.0
  %1581 = vmatpush1.xpose.msra.mxu0 %v1572
  %1582 = vmatprep.subr.mxu0 0.0
  %1583 = vmatpush1.xpose.msra.mxu0 %v1574
  %1584 = vmatprep.subr.mxu0 0.0
  %1585 = vmatpush1.xpose.msra.mxu0 %v1576
  %1586 = vmatprep.subr.mxu0 0.0
  %1587 = vmatpush1.xpose.msra.mxu0 %v1578
  %1588 = vmatprep.subr.mxu0 0.0
  %1589 = vmatpush1.xpose.msra.mxu0 0.0
  %1590 = vmatprep.subr.mxu0 0.0
  %1591 = vmatpush1.xpose.msra.mxu0 0.0
  %1592 = vmatprep.subr.mxu0 0.0
  %1593 = vmatpush1.xpose.msra.mxu0 0.0
  %1594 = vmatprep.subr.mxu0 0.0
  %1595 = vmatpush1.xpose.msra.mxu0 0.0
  %1596 = vmatprep.subr.mxu0 0.0
  %1597 = vmatpush1.xpose.msra.mxu0 0.0
  %1598 = vmatprep.subr.mxu0 0.0
  %1599 = vmatpush1.xpose.msra.mxu0 0.0
  %1600 = vmatprep.subr.mxu0 0.0
  %1601 = vmatpush1.xpose.msra.mxu0 0.0
  %1602 = vmatprep.subr.mxu0 0.0
  %1603 = vmatpush1.xpose.msra.mxu0 0.0
  %1604 = vmatprep.subr.mxu0 0.0
  %1605 = vmatpush1.xpose.msra.mxu0 0.0
  %1606 = vmatprep.subr.mxu0 0.0
  %1607 = vmatpush1.xpose.msra.mxu0 0.0
  %1608 = vmatprep.subr.mxu0 0.0
  %1609 = vmatpush1.xpose.msra.mxu0 0.0
  %1610 = vmatprep.subr.mxu0 0.0
  %1611 = vmatpush1.xpose.msra.mxu0 0.0
  %1612 = vmatprep.subr.mxu0 0.0
  %1613 = vmatpush1.xpose.msra.mxu0 0.0
  %1614 = vmatprep.subr.mxu0 0.0
  %1615 = vmatpush1.xpose.msra.mxu0 0.0
  %1616 = vmatprep.subr.mxu0 0.0
  %1617 = vmatpush1.xpose.msra.mxu0 0.0
  %1618 = vmatprep.subr.mxu0 0.0
  %1619 = vmatpush1.xpose.msra.mxu0 0.0
  %1620 = vmatprep.subr.mxu0 0.0
  %1621 = vmatpush1.xpose.msra.mxu0 0.0
  %1622 = vmatprep.subr.mxu0 0.0
  %1623 = vmatpush1.xpose.msra.mxu0 0.0
  %1624 = vmatprep.subr.mxu0 0.0
  %1625 = vmatpush1.xpose.msra.mxu0 0.0
  %1626 = vmatprep.subr.mxu0 0.0
  %1627 = vmatpush1.xpose.msra.mxu0 0.0
  %1628 = vmatprep.subr.mxu0 0.0
  %1629 = vmatpush1.xpose.msra.mxu0 0.0
  %1630 = vmatprep.subr.mxu0 0.0
  %1631 = vmatpush1.xpose.msra.mxu0 0.0
  %1632 = vmatprep.subr.mxu0 0.0
  %1633 = vmatpush1.xpose.msra.mxu0 0.0
  %1634 = vmatprep.subr.mxu0 0.0
  %1635 = vmatpush1.xpose.msra.mxu0 0.0
  %1636 = vmatprep.subr.mxu0 0.0
  %1637 = vmatpush1.xpose.msra.mxu0 0.0
  %1638 = vmatprep.subr.mxu0 0.0
  %1639 = vmatpush1.xpose.msra.mxu0 0.0
  %1640 = vmatprep.subr.mxu0 0.0
  %1641 = vmatpush1.xpose.msra.mxu0 0.0
  %1642 = vmatprep.subr.mxu0 0.0
  %1643 = vmatpush1.xpose.msra.mxu0 0.0
  %1644 = vmatprep.mubr.f32.mxu0 0.0
  %1645 = vmatmul.mubr.f32.gmra.mrb[0].mxu0 %v1564
  %v1646 = vpop.f32.mrb[0].mxu0
  %v1647 = vadd.f32 0.0, %v1646
  %v1648 = vpop.f32.mrb[0].mxu0
  %1649 = vmatprep.mubr.f32.mxu0 0.0
  %1650 = vmatmul.mubr.f32.gmra.mrb[0].mxu0 %v1566
  %v1651 = vpop.f32.mrb[0].mxu0
  %v1652 = vadd.f32 0.0, %v1651
  %v1653 = vpop.f32.mrb[0].mxu0
  %1654 = vmatprep.mubr.f32.mxu0 0.0
  %1655 = vmatmul.mubr.f32.gmra.mrb[0].mxu0 %v1568
  %v1656 = vpop.f32.mrb[0].mxu0
  %v1657 = vadd.f32 0.0, %v1656
  %v1658 = vpop.f32.mrb[0].mxu0
  %1659 = vmatprep.mubr.f32.mxu0 0.0
  %1660 = vmatmul.mubr.f32.gmra.mrb[0].mxu0 %v1570
  %v1661 = vpop.f32.mrb[0].mxu0
  %v1662 = vadd.f32 0.0, %v1661
  %v1663 = vpop.f32.mrb[0].mxu0
  %1664 = vdwg.mxu0
  %v1665 = vmul.f32 %v1647, 0.25
  %v1666 = vmul.f32 %v1652, 0.25
  %v1667 = vmul.f32 %v1657, 0.25
  %v1668 = vmul.f32 %v1662, 0.25
  %v1669 = vadd.f32 %v1665, %v21
  %v1670 = vadd.f32 %v1666, %v22
  %v1671 = vadd.f32 %v1667, %v23
  %v1672 = vadd.f32 %v1668, %v24
  %v1673 = vsel %vm454, %v1669, -inf
  %1674 = vmax.xlane.f32.xlu0 %v1673
  %v1675 = vpop.xlane.xlu0 %1674
  %v1676 = vsel %vm454, %v1670, -inf
  %1677 = vmax.xlane.f32.xlu0 %v1676
  %v1678 = vpop.xlane.xlu0 %1677
  %v1679 = vsel %vm454, %v1671, -inf
  %1680 = vmax.xlane.f32.xlu0 %v1679
  %v1681 = vpop.xlane.xlu0 %1680
  %v1682 = vsel %vm464, %v1672, -inf
  %1683 = vmax.xlane.f32.xlu0 %v1682
  %v1684 = vpop.xlane.xlu0 %1683
  %v1685 = vsub.f32 %v1669, %v1675
  %v1686 = vsub.f32 %v1670, %v1678
  %v1687 = vsub.f32 %v1671, %v1681
  %v1688 = vsub.f32 %v1672, %v1684
  %v1689 = vmul.f32 %v1685, 1.442695
  %v1690 = vpow.pop %v1689
  %v1691 = vmul.f32 %v1686, 1.442695
  %v1692 = vpow.pop %v1691
  %v1693 = vmul.f32 %v1687, 1.442695
  %v1694 = vpow.pop %v1693
  %v1695 = vmul.f32 %v1688, 1.442695
  %v1696 = vpow.pop %v1695
  %v1697 = vsel %vm454, %v1690, 0.0
  %1698 = vadd.xlane.f32.xlu0 %v1697
  %v1699 = vpop.xlane.xlu0 %1698
  %v1700 = vsel %vm454, %v1692, 0.0
  %1701 = vadd.xlane.f32.xlu0 %v1700
  %v1702 = vpop.xlane.xlu0 %1701
  %v1703 = vsel %vm454, %v1694, 0.0
  %1704 = vadd.xlane.f32.xlu0 %v1703
  %v1705 = vpop.xlane.xlu0 %1704
  %v1706 = vsel %vm464, %v1696, 0.0
  %1707 = vadd.xlane.f32.xlu0 %v1706
  %v1708 = vpop.xlane.xlu0 %1707
  %v1709 = vrcp.pop %v1699
  %v1710 = vrcp.pop %v1702
  %v1711 = vrcp.pop %v1705
  %v1712 = vrcp.pop %v1708
  %v1713 = vmul.f32 %v1690, %v1709
  %v1714 = vmul.f32 %v1692, %v1710
  %v1715 = vmul.f32 %v1694, %v1711
  %v1716 = vmul.f32 %v1696, %v1712
  %1717 = vrot.lane.b32.xlu0 %v1534, 64
  %v1718 = vpop.permute.xlu0 %1717
  %1719 = vrot.lane.b32.xlu0 %v1539, 64
  %v1720 = vpop.permute.xlu0 %1719
  %1721 = vrot.lane.b32.xlu0 %v1544, 64
  %v1722 = vpop.permute.xlu0 %1721
  %1723 = vrot.lane.b32.xlu0 %v1549, 64
  %v1724 = vpop.permute.xlu0 %1723
  %v1729 = vsel %vm454, %v1713, 0
  %v1732 = vsel %vm454, %v1714, 0
  %v1735 = vsel %vm454, %v1715, 0
  %v1738 = vsel %vm454, %v1716, 0
  %v1740 = vsel %vm523, %v1724, 0
  %1742 = vmatprep.subr.mxu0 0.0
  %1743 = vmatpush1.msra.mxu0 %v1718
  %1744 = vmatprep.subr.mxu0 0.0
  %1745 = vmatpush1.msra.mxu0 %v1720
  %1746 = vmatprep.subr.mxu0 0.0
  %1747 = vmatpush1.msra.mxu0 %v1722
  %1748 = vmatprep.subr.mxu0 0.0
  %1749 = vmatpush1.msra.mxu0 %v1740
  %1750 = vmatprep.subr.mxu0 0.0
  %1751 = vmatpush1.msra.mxu0 0.0
  %1752 = vmatprep.subr.mxu0 0.0
  %1753 = vmatpush1.msra.mxu0 0.0
  %1754 = vmatprep.subr.mxu0 0.0
  %1755 = vmatpush1.msra.mxu0 0.0
  %1756 = vmatprep.subr.mxu0 0.0
  %1757 = vmatpush1.msra.mxu0 0.0
  %1758 = vmatprep.subr.mxu0 0.0
  %1759 = vmatpush1.msra.mxu0 0.0
  %1760 = vmatprep.subr.mxu0 0.0
  %1761 = vmatpush1.msra.mxu0 0.0
  %1762 = vmatprep.subr.mxu0 0.0
  %1763 = vmatpush1.msra.mxu0 0.0
  %1764 = vmatprep.subr.mxu0 0.0
  %1765 = vmatpush1.msra.mxu0 0.0
  %1766 = vmatprep.subr.mxu0 0.0
  %1767 = vmatpush1.msra.mxu0 0.0
  %1768 = vmatprep.subr.mxu0 0.0
  %1769 = vmatpush1.msra.mxu0 0.0
  %1770 = vmatprep.subr.mxu0 0.0
  %1771 = vmatpush1.msra.mxu0 0.0
  %1772 = vmatprep.subr.mxu0 0.0
  %1773 = vmatpush1.msra.mxu0 0.0
  %1774 = vmatprep.subr.mxu0 0.0
  %1775 = vmatpush1.msra.mxu0 0.0
  %1776 = vmatprep.subr.mxu0 0.0
  %1777 = vmatpush1.msra.mxu0 0.0
  %1778 = vmatprep.subr.mxu0 0.0
  %1779 = vmatpush1.msra.mxu0 0.0
  %1780 = vmatprep.subr.mxu0 0.0
  %1781 = vmatpush1.msra.mxu0 0.0
  %1782 = vmatprep.subr.mxu0 0.0
  %1783 = vmatpush1.msra.mxu0 0.0
  %1784 = vmatprep.subr.mxu0 0.0
  %1785 = vmatpush1.msra.mxu0 0.0
  %1786 = vmatprep.subr.mxu0 0.0
  %1787 = vmatpush1.msra.mxu0 0.0
  %1788 = vmatprep.subr.mxu0 0.0
  %1789 = vmatpush1.msra.mxu0 0.0
  %1790 = vmatprep.subr.mxu0 0.0
  %1791 = vmatpush1.msra.mxu0 0.0
  %1792 = vmatprep.subr.mxu0 0.0
  %1793 = vmatpush1.msra.mxu0 0.0
  %1794 = vmatprep.subr.mxu0 0.0
  %1795 = vmatpush1.msra.mxu0 0.0
  %1796 = vmatprep.subr.mxu0 0.0
  %1797 = vmatpush1.msra.mxu0 0.0
  %1798 = vmatprep.subr.mxu0 0.0
  %1799 = vmatpush1.msra.mxu0 0.0
  %1800 = vmatprep.subr.mxu0 0.0
  %1801 = vmatpush1.msra.mxu0 0.0
  %1802 = vmatprep.subr.mxu0 0.0
  %1803 = vmatpush1.msra.mxu0 0.0
  %1804 = vmatprep.subr.mxu0 0.0
  %1805 = vmatpush1.msra.mxu0 0.0
  %1806 = vmatprep.mubr.f32.mxu0 0.0
  %1807 = vmatmul.mubr.f32.gmra.mrb[0].mxu0 %v1729
  %v1808 = vpop.f32.mrb[0].mxu0
  %v1809 = vadd.f32 0.0, %v1808
  %v1810 = vpop.f32.mrb[0].mxu0
  %1811 = vmatprep.mubr.f32.mxu0 0.0
  %1812 = vmatmul.mubr.f32.gmra.mrb[0].mxu0 %v1732
  %v1813 = vpop.f32.mrb[0].mxu0
  %v1814 = vadd.f32 0.0, %v1813
  %v1815 = vpop.f32.mrb[0].mxu0
  %1816 = vmatprep.mubr.f32.mxu0 0.0
  %1817 = vmatmul.mubr.f32.gmra.mrb[0].mxu0 %v1735
  %v1818 = vpop.f32.mrb[0].mxu0
  %v1819 = vadd.f32 0.0, %v1818
  %v1820 = vpop.f32.mrb[0].mxu0
  %1821 = vmatprep.mubr.f32.mxu0 0.0
  %1822 = vmatmul.mubr.f32.gmra.mrb[0].mxu0 %v1738
  %v1823 = vpop.f32.mrb[0].mxu0
  %v1824 = vadd.f32 0.0, %v1823
  %v1825 = vpop.f32.mrb[0].mxu0
  %1826 = vdwg.mxu0
  %1827 = vrot.lane.b32.xlu0 %v1534, 112
  %v1828 = vpop.permute.xlu0 %1827
  %1829 = vrot.lane.b32.xlu0 %v1539, 112
  %v1830 = vpop.permute.xlu0 %1829
  %1831 = vrot.lane.b32.xlu0 %v1544, 112
  %v1832 = vpop.permute.xlu0 %1831
  %1833 = vrot.lane.b32.xlu0 %v1549, 112
  %v1834 = vpop.permute.xlu0 %1833
  %1835 = vrot.lane.b32.xlu0 %v1534, 80
  %v1836 = vpop.permute.xlu0 %1835
  %1837 = vrot.lane.b32.xlu0 %v1539, 80
  %v1838 = vpop.permute.xlu0 %1837
  %1839 = vrot.lane.b32.xlu0 %v1544, 80
  %v1840 = vpop.permute.xlu0 %1839
  %1841 = vrot.lane.b32.xlu0 %v1549, 80
  %v1842 = vpop.permute.xlu0 %1841
  %v1843 = vsel %vm344, %v1828, 0
  %v1845 = vsel %vm344, %v1830, 0
  %v1847 = vsel %vm344, %v1832, 0
  %v1849 = vsel %vm344, %v1834, 0
  %v1851 = vsel %vm344, %v1836, 0
  %v1853 = vsel %vm344, %v1838, 0
  %v1855 = vsel %vm344, %v1840, 0
  %v1857 = vsel %vm344, %v1842, 0
  %1859 = vmatprep.subr.mxu0 0.0
  %1860 = vmatpush1.xpose.msra.mxu0 %v1851
  %1861 = vmatprep.subr.mxu0 0.0
  %1862 = vmatpush1.xpose.msra.mxu0 %v1853
  %1863 = vmatprep.subr.mxu0 0.0
  %1864 = vmatpush1.xpose.msra.mxu0 %v1855
  %1865 = vmatprep.subr.mxu0 0.0
  %1866 = vmatpush1.xpose.msra.mxu0 %v1857
  %1867 = vmatprep.subr.mxu0 0.0
  %1868 = vmatpush1.xpose.msra.mxu0 0.0
  %1869 = vmatprep.subr.mxu0 0.0
  %1870 = vmatpush1.xpose.msra.mxu0 0.0
  %1871 = vmatprep.subr.mxu0 0.0
  %1872 = vmatpush1.xpose.msra.mxu0 0.0
  %1873 = vmatprep.subr.mxu0 0.0
  %1874 = vmatpush1.xpose.msra.mxu0 0.0
  %1875 = vmatprep.subr.mxu0 0.0
  %1876 = vmatpush1.xpose.msra.mxu0 0.0
  %1877 = vmatprep.subr.mxu0 0.0
  %1878 = vmatpush1.xpose.msra.mxu0 0.0
  %1879 = vmatprep.subr.mxu0 0.0
  %1880 = vmatpush1.xpose.msra.mxu0 0.0
  %1881 = vmatprep.subr.mxu0 0.0
  %1882 = vmatpush1.xpose.msra.mxu0 0.0
  %1883 = vmatprep.subr.mxu0 0.0
  %1884 = vmatpush1.xpose.msra.mxu0 0.0
  %1885 = vmatprep.subr.mxu0 0.0
  %1886 = vmatpush1.xpose.msra.mxu0 0.0
  %1887 = vmatprep.subr.mxu0 0.0
  %1888 = vmatpush1.xpose.msra.mxu0 0.0
  %1889 = vmatprep.subr.mxu0 0.0
  %1890 = vmatpush1.xpose.msra.mxu0 0.0
  %1891 = vmatprep.subr.mxu0 0.0
  %1892 = vmatpush1.xpose.msra.mxu0 0.0
  %1893 = vmatprep.subr.mxu0 0.0
  %1894 = vmatpush1.xpose.msra.mxu0 0.0
  %1895 = vmatprep.subr.mxu0 0.0
  %1896 = vmatpush1.xpose.msra.mxu0 0.0
  %1897 = vmatprep.subr.mxu0 0.0
  %1898 = vmatpush1.xpose.msra.mxu0 0.0
  %1899 = vmatprep.subr.mxu0 0.0
  %1900 = vmatpush1.xpose.msra.mxu0 0.0
  %1901 = vmatprep.subr.mxu0 0.0
  %1902 = vmatpush1.xpose.msra.mxu0 0.0
  %1903 = vmatprep.subr.mxu0 0.0
  %1904 = vmatpush1.xpose.msra.mxu0 0.0
  %1905 = vmatprep.subr.mxu0 0.0
  %1906 = vmatpush1.xpose.msra.mxu0 0.0
  %1907 = vmatprep.subr.mxu0 0.0
  %1908 = vmatpush1.xpose.msra.mxu0 0.0
  %1909 = vmatprep.subr.mxu0 0.0
  %1910 = vmatpush1.xpose.msra.mxu0 0.0
  %1911 = vmatprep.subr.mxu0 0.0
  %1912 = vmatpush1.xpose.msra.mxu0 0.0
  %1913 = vmatprep.subr.mxu0 0.0
  %1914 = vmatpush1.xpose.msra.mxu0 0.0
  %1915 = vmatprep.subr.mxu0 0.0
  %1916 = vmatpush1.xpose.msra.mxu0 0.0
  %1917 = vmatprep.subr.mxu0 0.0
  %1918 = vmatpush1.xpose.msra.mxu0 0.0
  %1919 = vmatprep.subr.mxu0 0.0
  %1920 = vmatpush1.xpose.msra.mxu0 0.0
  %1921 = vmatprep.subr.mxu0 0.0
  %1922 = vmatpush1.xpose.msra.mxu0 0.0
  %1923 = vmatprep.mubr.f32.mxu0 0.0
  %1924 = vmatmul.mubr.f32.gmra.mrb[0].mxu0 %v1843
  %v1925 = vpop.f32.mrb[0].mxu0
  %v1926 = vadd.f32 0.0, %v1925
  %v1927 = vpop.f32.mrb[0].mxu0
  %1928 = vmatprep.mubr.f32.mxu0 0.0
  %1929 = vmatmul.mubr.f32.gmra.mrb[0].mxu0 %v1845
  %v1930 = vpop.f32.mrb[0].mxu0
  %v1931 = vadd.f32 0.0, %v1930
  %v1932 = vpop.f32.mrb[0].mxu0
  %1933 = vmatprep.mubr.f32.mxu0 0.0
  %1934 = vmatmul.mubr.f32.gmra.mrb[0].mxu0 %v1847
  %v1935 = vpop.f32.mrb[0].mxu0
  %v1936 = vadd.f32 0.0, %v1935
  %v1937 = vpop.f32.mrb[0].mxu0
  %1938 = vmatprep.mubr.f32.mxu0 0.0
  %1939 = vmatmul.mubr.f32.gmra.mrb[0].mxu0 %v1849
  %v1940 = vpop.f32.mrb[0].mxu0
  %v1941 = vadd.f32 0.0, %v1940
  %v1942 = vpop.f32.mrb[0].mxu0
  %1943 = vdwg.mxu0
  %v1944 = vmul.f32 %v1926, 0.25
  %v1945 = vmul.f32 %v1931, 0.25
  %v1946 = vmul.f32 %v1936, 0.25
  %v1947 = vmul.f32 %v1941, 0.25
  %v1948 = vadd.f32 %v1944, %v21
  %v1949 = vadd.f32 %v1945, %v22
  %v1950 = vadd.f32 %v1946, %v23
  %v1951 = vadd.f32 %v1947, %v24
  %v1952 = vsel %vm454, %v1948, -inf
  %1953 = vmax.xlane.f32.xlu0 %v1952
  %v1954 = vpop.xlane.xlu0 %1953
  %v1955 = vsel %vm454, %v1949, -inf
  %1956 = vmax.xlane.f32.xlu0 %v1955
  %v1957 = vpop.xlane.xlu0 %1956
  %v1958 = vsel %vm454, %v1950, -inf
  %1959 = vmax.xlane.f32.xlu0 %v1958
  %v1960 = vpop.xlane.xlu0 %1959
  %v1961 = vsel %vm464, %v1951, -inf
  %1962 = vmax.xlane.f32.xlu0 %v1961
  %v1963 = vpop.xlane.xlu0 %1962
  %v1964 = vsub.f32 %v1948, %v1954
  %v1965 = vsub.f32 %v1949, %v1957
  %v1966 = vsub.f32 %v1950, %v1960
  %v1967 = vsub.f32 %v1951, %v1963
  %v1968 = vmul.f32 %v1964, 1.442695
  %v1969 = vpow.pop %v1968
  %v1970 = vmul.f32 %v1965, 1.442695
  %v1971 = vpow.pop %v1970
  %v1972 = vmul.f32 %v1966, 1.442695
  %v1973 = vpow.pop %v1972
  %v1974 = vmul.f32 %v1967, 1.442695
  %v1975 = vpow.pop %v1974
  %v1976 = vsel %vm454, %v1969, 0.0
  %1977 = vadd.xlane.f32.xlu0 %v1976
  %v1978 = vpop.xlane.xlu0 %1977
  %v1979 = vsel %vm454, %v1971, 0.0
  %1980 = vadd.xlane.f32.xlu0 %v1979
  %v1981 = vpop.xlane.xlu0 %1980
  %v1982 = vsel %vm454, %v1973, 0.0
  %1983 = vadd.xlane.f32.xlu0 %v1982
  %v1984 = vpop.xlane.xlu0 %1983
  %v1985 = vsel %vm464, %v1975, 0.0
  %1986 = vadd.xlane.f32.xlu0 %v1985
  %v1987 = vpop.xlane.xlu0 %1986
  %v1988 = vrcp.pop %v1978
  %v1989 = vrcp.pop %v1981
  %v1990 = vrcp.pop %v1984
  %v1991 = vrcp.pop %v1987
  %v1992 = vmul.f32 %v1969, %v1988
  %v1993 = vmul.f32 %v1971, %v1989
  %v1994 = vmul.f32 %v1973, %v1990
  %v1995 = vmul.f32 %v1975, %v1991
  %1996 = vrot.lane.b32.xlu0 %v1534, 48
  %v1997 = vpop.permute.xlu0 %1996
  %1998 = vrot.lane.b32.xlu0 %v1539, 48
  %v1999 = vpop.permute.xlu0 %1998
  %2000 = vrot.lane.b32.xlu0 %v1544, 48
  %v2001 = vpop.permute.xlu0 %2000
  %2002 = vrot.lane.b32.xlu0 %v1549, 48
  %v2003 = vpop.permute.xlu0 %2002
  %v2008 = vsel %vm454, %v1992, 0
  %v2011 = vsel %vm454, %v1993, 0
  %v2014 = vsel %vm454, %v1994, 0
  %v2017 = vsel %vm454, %v1995, 0
  %v2019 = vsel %vm523, %v2003, 0
  %2021 = vmatprep.subr.mxu0 0.0
  %2022 = vmatpush1.msra.mxu0 %v1997
  %2023 = vmatprep.subr.mxu0 0.0
  %2024 = vmatpush1.msra.mxu0 %v1999
  %2025 = vmatprep.subr.mxu0 0.0
  %2026 = vmatpush1.msra.mxu0 %v2001
  %2027 = vmatprep.subr.mxu0 0.0
  %2028 = vmatpush1.msra.mxu0 %v2019
  %2029 = vmatprep.subr.mxu0 0.0
  %2030 = vmatpush1.msra.mxu0 0.0
  %2031 = vmatprep.subr.mxu0 0.0
  %2032 = vmatpush1.msra.mxu0 0.0
  %2033 = vmatprep.subr.mxu0 0.0
  %2034 = vmatpush1.msra.mxu0 0.0
  %2035 = vmatprep.subr.mxu0 0.0
  %2036 = vmatpush1.msra.mxu0 0.0
  %2037 = vmatprep.subr.mxu0 0.0
  %2038 = vmatpush1.msra.mxu0 0.0
  %2039 = vmatprep.subr.mxu0 0.0
  %2040 = vmatpush1.msra.mxu0 0.0
  %2041 = vmatprep.subr.mxu0 0.0
  %2042 = vmatpush1.msra.mxu0 0.0
  %2043 = vmatprep.subr.mxu0 0.0
  %2044 = vmatpush1.msra.mxu0 0.0
  %2045 = vmatprep.subr.mxu0 0.0
  %2046 = vmatpush1.msra.mxu0 0.0
  %2047 = vmatprep.subr.mxu0 0.0
  %2048 = vmatpush1.msra.mxu0 0.0
  %2049 = vmatprep.subr.mxu0 0.0
  %2050 = vmatpush1.msra.mxu0 0.0
  %2051 = vmatprep.subr.mxu0 0.0
  %2052 = vmatpush1.msra.mxu0 0.0
  %2053 = vmatprep.subr.mxu0 0.0
  %2054 = vmatpush1.msra.mxu0 0.0
  %2055 = vmatprep.subr.mxu0 0.0
  %2056 = vmatpush1.msra.mxu0 0.0
  %2057 = vmatprep.subr.mxu0 0.0
  %2058 = vmatpush1.msra.mxu0 0.0
  %2059 = vmatprep.subr.mxu0 0.0
  %2060 = vmatpush1.msra.mxu0 0.0
  %2061 = vmatprep.subr.mxu0 0.0
  %2062 = vmatpush1.msra.mxu0 0.0
  %2063 = vmatprep.subr.mxu0 0.0
  %2064 = vmatpush1.msra.mxu0 0.0
  %2065 = vmatprep.subr.mxu0 0.0
  %2066 = vmatpush1.msra.mxu0 0.0
  %2067 = vmatprep.subr.mxu0 0.0
  %2068 = vmatpush1.msra.mxu0 0.0
  %2069 = vmatprep.subr.mxu0 0.0
  %2070 = vmatpush1.msra.mxu0 0.0
  %2071 = vmatprep.subr.mxu0 0.0
  %2072 = vmatpush1.msra.mxu0 0.0
  %2073 = vmatprep.subr.mxu0 0.0
  %2074 = vmatpush1.msra.mxu0 0.0
  %2075 = vmatprep.subr.mxu0 0.0
  %2076 = vmatpush1.msra.mxu0 0.0
  %2077 = vmatprep.subr.mxu0 0.0
  %2078 = vmatpush1.msra.mxu0 0.0
  %2079 = vmatprep.subr.mxu0 0.0
  %2080 = vmatpush1.msra.mxu0 0.0
  %2081 = vmatprep.subr.mxu0 0.0
  %2082 = vmatpush1.msra.mxu0 0.0
  %2083 = vmatprep.subr.mxu0 0.0
  %2084 = vmatpush1.msra.mxu0 0.0
  %2085 = vmatprep.mubr.f32.mxu0 0.0
  %2086 = vmatmul.mubr.f32.gmra.mrb[0].mxu0 %v2008
  %v2087 = vpop.f32.mrb[0].mxu0
  %v2088 = vadd.f32 0.0, %v2087
  %v2089 = vpop.f32.mrb[0].mxu0
  %2090 = vmatprep.mubr.f32.mxu0 0.0
  %2091 = vmatmul.mubr.f32.gmra.mrb[0].mxu0 %v2011
  %v2092 = vpop.f32.mrb[0].mxu0
  %v2093 = vadd.f32 0.0, %v2092
  %v2094 = vpop.f32.mrb[0].mxu0
  %2095 = vmatprep.mubr.f32.mxu0 0.0
  %2096 = vmatmul.mubr.f32.gmra.mrb[0].mxu0 %v2014
  %v2097 = vpop.f32.mrb[0].mxu0
  %v2098 = vadd.f32 0.0, %v2097
  %v2099 = vpop.f32.mrb[0].mxu0
  %2100 = vmatprep.mubr.f32.mxu0 0.0
  %2101 = vmatmul.mubr.f32.gmra.mrb[0].mxu0 %v2017
  %v2102 = vpop.f32.mrb[0].mxu0
  %v2103 = vadd.f32 0.0, %v2102
  %v2104 = vpop.f32.mrb[0].mxu0
  %2105 = vdwg.mxu0
  %2110 = vrot.lane.b32.xlu0 %v2088, 16
  %v2111 = vpop.permute.xlu0 %2110
  %2112 = vrot.lane.b32.xlu0 %v2093, 16
  %v2113 = vpop.permute.xlu0 %2112
  %2114 = vrot.lane.b32.xlu0 %v2098, 16
  %v2115 = vpop.permute.xlu0 %2114
  %2116 = vrot.lane.b32.xlu0 %v2103, 16
  %v2117 = vpop.permute.xlu0 %2116
  %v2122 = vsel %vm344, %v1809, %v2111
  %v2123 = vsel %vm344, %v1814, %v2113
  %v2124 = vsel %vm344, %v1819, %v2115
  %v2125 = vsel %vm344, %v1824, %v2117
  %2130 = vrot.lane.b32.xlu0 %v1447, 32
  %v2131 = vpop.permute.xlu0 %2130
  %2132 = vrot.lane.b32.xlu0 %v1448, 32
  %v2133 = vpop.permute.xlu0 %2132
  %2134 = vrot.lane.b32.xlu0 %v1449, 32
  %v2135 = vpop.permute.xlu0 %2134
  %2136 = vrot.lane.b32.xlu0 %v1450, 32
  %v2137 = vpop.permute.xlu0 %2136
  %2143 = vrot.lane.b32.xlu0 %v1454, 32
  %v2144 = vpop.permute.xlu0 %2143
  %v2147 = vsel %vm34, %v2122, 0
  %v2150 = vsel %vm34, %v2123, 0
  %v2153 = vsel %vm34, %v2124, 0
  %v2156 = vsel %vm34, %v2125, 0
  %2158 = vmatprep.subr.mxu0 0.0
  %2159 = vmatpush1.msra.mxu0 %v2131
  %2160 = vmatprep.subr.mxu0 0.0
  %2161 = vmatpush1.msra.mxu0 %v2133
  %2162 = vmatprep.subr.mxu0 0.0
  %2163 = vmatpush1.msra.mxu0 %v2135
  %2164 = vmatprep.subr.mxu0 0.0
  %2165 = vmatpush1.msra.mxu0 %v2137
  %2166 = vmatprep.subr.mxu0 0.0
  %2167 = vmatpush1.msra.mxu0 0.0
  %2168 = vmatprep.subr.mxu0 0.0
  %2169 = vmatpush1.msra.mxu0 0.0
  %2170 = vmatprep.subr.mxu0 0.0
  %2171 = vmatpush1.msra.mxu0 0.0
  %2172 = vmatprep.subr.mxu0 0.0
  %2173 = vmatpush1.msra.mxu0 0.0
  %2174 = vmatprep.subr.mxu0 0.0
  %2175 = vmatpush1.msra.mxu0 0.0
  %2176 = vmatprep.subr.mxu0 0.0
  %2177 = vmatpush1.msra.mxu0 0.0
  %2178 = vmatprep.subr.mxu0 0.0
  %2179 = vmatpush1.msra.mxu0 0.0
  %2180 = vmatprep.subr.mxu0 0.0
  %2181 = vmatpush1.msra.mxu0 0.0
  %2182 = vmatprep.subr.mxu0 0.0
  %2183 = vmatpush1.msra.mxu0 0.0
  %2184 = vmatprep.subr.mxu0 0.0
  %2185 = vmatpush1.msra.mxu0 0.0
  %2186 = vmatprep.subr.mxu0 0.0
  %2187 = vmatpush1.msra.mxu0 0.0
  %2188 = vmatprep.subr.mxu0 0.0
  %2189 = vmatpush1.msra.mxu0 0.0
  %2190 = vmatprep.subr.mxu0 0.0
  %2191 = vmatpush1.msra.mxu0 0.0
  %2192 = vmatprep.subr.mxu0 0.0
  %2193 = vmatpush1.msra.mxu0 0.0
  %2194 = vmatprep.subr.mxu0 0.0
  %2195 = vmatpush1.msra.mxu0 0.0
  %2196 = vmatprep.subr.mxu0 0.0
  %2197 = vmatpush1.msra.mxu0 0.0
  %2198 = vmatprep.subr.mxu0 0.0
  %2199 = vmatpush1.msra.mxu0 0.0
  %2200 = vmatprep.subr.mxu0 0.0
  %2201 = vmatpush1.msra.mxu0 0.0
  %2202 = vmatprep.subr.mxu0 0.0
  %2203 = vmatpush1.msra.mxu0 0.0
  %2204 = vmatprep.subr.mxu0 0.0
  %2205 = vmatpush1.msra.mxu0 0.0
  %2206 = vmatprep.subr.mxu0 0.0
  %2207 = vmatpush1.msra.mxu0 0.0
  %2208 = vmatprep.subr.mxu0 0.0
  %2209 = vmatpush1.msra.mxu0 0.0
  %2210 = vmatprep.subr.mxu0 0.0
  %2211 = vmatpush1.msra.mxu0 0.0
  %2212 = vmatprep.subr.mxu0 0.0
  %2213 = vmatpush1.msra.mxu0 0.0
  %2214 = vmatprep.subr.mxu0 0.0
  %2215 = vmatpush1.msra.mxu0 0.0
  %2216 = vmatprep.subr.mxu0 0.0
  %2217 = vmatpush1.msra.mxu0 0.0
  %2218 = vmatprep.subr.mxu0 0.0
  %2219 = vmatpush1.msra.mxu0 0.0
  %2220 = vmatprep.subr.mxu0 0.0
  %2221 = vmatpush1.msra.mxu0 0.0
  %2222 = vmatprep.mubr.f32.mxu0 0.0
  %2223 = vmatmul.mubr.f32.gmra.mrb[0].mxu0 %v2147
  %v2224 = vpop.f32.mrb[0].mxu0
  %v2225 = vadd.f32 %v2144, %v2224
  %v2226 = vpop.f32.mrb[0].mxu0
  %2227 = vmatprep.mubr.f32.mxu0 0.0
  %2228 = vmatmul.mubr.f32.gmra.mrb[0].mxu0 %v2150
  %v2229 = vpop.f32.mrb[0].mxu0
  %v2230 = vadd.f32 %v2144, %v2229
  %v2231 = vpop.f32.mrb[0].mxu0
  %2232 = vmatprep.mubr.f32.mxu0 0.0
  %2233 = vmatmul.mubr.f32.gmra.mrb[0].mxu0 %v2153
  %v2234 = vpop.f32.mrb[0].mxu0
  %v2235 = vadd.f32 %v2144, %v2234
  %v2236 = vpop.f32.mrb[0].mxu0
  %2237 = vmatprep.mubr.f32.mxu0 0.0
  %2238 = vmatmul.mubr.f32.gmra.mrb[0].mxu0 %v2156
  %v2239 = vpop.f32.mrb[0].mxu0
  %v2240 = vadd.f32 %v2144, %v2239
  %v2241 = vpop.f32.mrb[0].mxu0
  %2242 = vdwg.mxu0
  %v2243 = vmul.f32 %v1364, %v2225
  %v2244 = vmul.f32 %v1365, %v2230
  %v2245 = vmul.f32 %v1366, %v2235
  %v2246 = vmul.f32 %v1367, %v2240
  %v2247 = vadd.f32 %v1349, %v2243
  %v2248 = vadd.f32 %v1350, %v2244
  %v2249 = vadd.f32 %v1351, %v2245
  %v2250 = vadd.f32 %v1352, %v2246
  %v2251 = vsel %vm34, %v2247, 0.0
  %2252 = vadd.xlane.f32.xlu0 %v2251
  %v2253 = vpop.xlane.xlu0 %2252
  %v2254 = vsel %vm34, %v2248, 0.0
  %2255 = vadd.xlane.f32.xlu0 %v2254
  %v2256 = vpop.xlane.xlu0 %2255
  %v2257 = vsel %vm34, %v2249, 0.0
  %2258 = vadd.xlane.f32.xlu0 %v2257
  %v2259 = vpop.xlane.xlu0 %2258
  %v2260 = vsel %vm170, %v2250, 0.0
  %2261 = vadd.xlane.f32.xlu0 %v2260
  %v2262 = vpop.xlane.xlu0 %2261
  %v2263 = vmul.f32 %v2253, %v174
  %v2264 = vmul.f32 %v2256, %v174
  %v2265 = vmul.f32 %v2259, %v174
  %v2266 = vmul.f32 %v2262, %v174
  %v2267 = vsub.f32 %v2247, %v2263
  %v2268 = vsub.f32 %v2248, %v2264
  %v2269 = vsub.f32 %v2249, %v2265
  %v2270 = vsub.f32 %v2250, %v2266
  %v2271 = vmul.f32 %v2267, %v2267
  %v2272 = vmul.f32 %v2268, %v2268
  %v2273 = vmul.f32 %v2269, %v2269
  %v2274 = vmul.f32 %v2270, %v2270
  %v2275 = vsel %vm34, %v2271, 0.0
  %2276 = vadd.xlane.f32.xlu0 %v2275
  %v2277 = vpop.xlane.xlu0 %2276
  %v2278 = vsel %vm34, %v2272, 0.0
  %2279 = vadd.xlane.f32.xlu0 %v2278
  %v2280 = vpop.xlane.xlu0 %2279
  %v2281 = vsel %vm34, %v2273, 0.0
  %2282 = vadd.xlane.f32.xlu0 %v2281
  %v2283 = vpop.xlane.xlu0 %2282
  %v2284 = vsel %vm170, %v2274, 0.0
  %2285 = vadd.xlane.f32.xlu0 %v2284
  %v2286 = vpop.xlane.xlu0 %2285
  %v2287 = vmul.f32 %v2277, %v174
  %v2288 = vmul.f32 %v2280, %v174
  %v2289 = vmul.f32 %v2283, %v174
  %v2290 = vmul.f32 %v2286, %v174
  %v2291 = vadd.f32 %v2287, 1e-06
  %v2292 = vadd.f32 %v2288, 1e-06
  %v2293 = vadd.f32 %v2289, 1e-06
  %v2294 = vadd.f32 %v2290, 1e-06
  %v2295 = vrsqrt.pop %v2291
  %v2296 = vrsqrt.pop %v2292
  %v2297 = vrsqrt.pop %v2293
  %v2298 = vrsqrt.pop %v2294
  %v2299 = vmul.f32 %v2267, %v2295
  %v2300 = vmul.f32 %v2268, %v2296
  %v2301 = vmul.f32 %v2269, %v2297
  %v2302 = vmul.f32 %v2270, %v2298
  %v2303 = vadd.f32 %v1374, 1.0
  %v2304 = vadd.f32 %v1375, 1.0
  %v2305 = vadd.f32 %v1376, 1.0
  %v2306 = vadd.f32 %v1377, 1.0
  %v2307 = vmul.f32 %v2299, %v2303
  %v2308 = vmul.f32 %v2300, %v2304
  %v2309 = vmul.f32 %v2301, %v2305
  %v2310 = vmul.f32 %v2302, %v2306
  %v2311 = vadd.f32 %v2307, %v1369
  %v2312 = vadd.f32 %v2308, %v1370
  %v2313 = vadd.f32 %v2309, %v1371
  %v2314 = vadd.f32 %v2310, %v1372
  %v2315 = vld [vmem:[%s3 + $0xa8] sm:$0xff]
  %v2316 = vld [vmem:[%s3 + $0xb0] sm:$0xff]
  %v2317 = vld [vmem:[%s3 + $0xb8] sm:$0xff]
  %v2318 = vld [vmem:[%s3 + $0xc0] sm:$0xff]
  %v2319 = vlaneseq
  %v2320 = vshrl.u32 %v2319, 7
  %v2321 = vsub.s32 4, %v2320
  %v2322 = vrot.slane %v25, %v2321
  %v2324 = vsel %vm34, %v2311, 0
  %v2327 = vsel %vm34, %v2312, 0
  %v2330 = vsel %vm34, %v2313, 0
  %v2333 = vsel %vm34, %v2314, 0
  %2335 = vmatprep.subr.mxu0 0.0
  %2336 = vmatpush1.msra.mxu0 %v2315
  %2337 = vmatprep.subr.mxu0 0.0
  %2338 = vmatpush1.msra.mxu0 %v2316
  %2339 = vmatprep.subr.mxu0 0.0
  %2340 = vmatpush1.msra.mxu0 %v2317
  %2341 = vmatprep.subr.mxu0 0.0
  %2342 = vmatpush1.msra.mxu0 %v2318
  %2343 = vmatprep.subr.mxu0 0.0
  %2344 = vmatpush1.msra.mxu0 0.0
  %2345 = vmatprep.subr.mxu0 0.0
  %2346 = vmatpush1.msra.mxu0 0.0
  %2347 = vmatprep.subr.mxu0 0.0
  %2348 = vmatpush1.msra.mxu0 0.0
  %2349 = vmatprep.subr.mxu0 0.0
  %2350 = vmatpush1.msra.mxu0 0.0
  %2351 = vmatprep.subr.mxu0 0.0
  %2352 = vmatpush1.msra.mxu0 0.0
  %2353 = vmatprep.subr.mxu0 0.0
  %2354 = vmatpush1.msra.mxu0 0.0
  %2355 = vmatprep.subr.mxu0 0.0
  %2356 = vmatpush1.msra.mxu0 0.0
  %2357 = vmatprep.subr.mxu0 0.0
  %2358 = vmatpush1.msra.mxu0 0.0
  %2359 = vmatprep.subr.mxu0 0.0
  %2360 = vmatpush1.msra.mxu0 0.0
  %2361 = vmatprep.subr.mxu0 0.0
  %2362 = vmatpush1.msra.mxu0 0.0
  %2363 = vmatprep.subr.mxu0 0.0
  %2364 = vmatpush1.msra.mxu0 0.0
  %2365 = vmatprep.subr.mxu0 0.0
  %2366 = vmatpush1.msra.mxu0 0.0
  %2367 = vmatprep.subr.mxu0 0.0
  %2368 = vmatpush1.msra.mxu0 0.0
  %2369 = vmatprep.subr.mxu0 0.0
  %2370 = vmatpush1.msra.mxu0 0.0
  %2371 = vmatprep.subr.mxu0 0.0
  %2372 = vmatpush1.msra.mxu0 0.0
  %2373 = vmatprep.subr.mxu0 0.0
  %2374 = vmatpush1.msra.mxu0 0.0
  %2375 = vmatprep.subr.mxu0 0.0
  %2376 = vmatpush1.msra.mxu0 0.0
  %2377 = vmatprep.subr.mxu0 0.0
  %2378 = vmatpush1.msra.mxu0 0.0
  %2379 = vmatprep.subr.mxu0 0.0
  %2380 = vmatpush1.msra.mxu0 0.0
  %2381 = vmatprep.subr.mxu0 0.0
  %2382 = vmatpush1.msra.mxu0 0.0
  %2383 = vmatprep.subr.mxu0 0.0
  %2384 = vmatpush1.msra.mxu0 0.0
  %2385 = vmatprep.subr.mxu0 0.0
  %2386 = vmatpush1.msra.mxu0 0.0
  %2387 = vmatprep.subr.mxu0 0.0
  %2388 = vmatpush1.msra.mxu0 0.0
  %2389 = vmatprep.subr.mxu0 0.0
  %2390 = vmatpush1.msra.mxu0 0.0
  %2391 = vmatprep.subr.mxu0 0.0
  %2392 = vmatpush1.msra.mxu0 0.0
  %2393 = vmatprep.subr.mxu0 0.0
  %2394 = vmatpush1.msra.mxu0 0.0
  %2395 = vmatprep.subr.mxu0 0.0
  %2396 = vmatpush1.msra.mxu0 0.0
  %2397 = vmatprep.subr.mxu0 0.0
  %2398 = vmatpush1.msra.mxu0 0.0
  %2399 = vmatprep.mubr.f32.mxu0 0.0
  %2400 = vmatmul.mubr.f32.gmra.mrb[0].mxu0 %v2324
  %v2401 = vpop.f32.mrb[0].mxu0
  %v2402 = vadd.f32 %v2322, %v2401
  %v2403 = vpop.f32.mrb[0].mxu0
  %2404 = vmatprep.mubr.f32.mxu0 0.0
  %2405 = vmatmul.mubr.f32.gmra.mrb[0].mxu0 %v2327
  %v2406 = vpop.f32.mrb[0].mxu0
  %v2407 = vadd.f32 %v2322, %v2406
  %v2408 = vpop.f32.mrb[0].mxu0
  %2409 = vmatprep.mubr.f32.mxu0 0.0
  %2410 = vmatmul.mubr.f32.gmra.mrb[0].mxu0 %v2330
  %v2411 = vpop.f32.mrb[0].mxu0
  %v2412 = vadd.f32 %v2322, %v2411
  %v2413 = vpop.f32.mrb[0].mxu0
  %2414 = vmatprep.mubr.f32.mxu0 0.0
  %2415 = vmatmul.mubr.f32.gmra.mrb[0].mxu0 %v2333
  %v2416 = vpop.f32.mrb[0].mxu0
  %v2417 = vadd.f32 %v2322, %v2416
  %v2418 = vpop.f32.mrb[0].mxu0
  %2419 = vdwg.mxu0
  %v2420 = vmul.f32 %v2402, %v2402
  %v2421 = vmul.f32 %v2407, %v2407
  %v2422 = vmul.f32 %v2412, %v2412
  %v2423 = vmul.f32 %v2417, %v2417
  %v2424 = vmul.f32 %v2402, %v2420
  %v2425 = vmul.f32 %v2407, %v2421
  %v2426 = vmul.f32 %v2412, %v2422
  %v2427 = vmul.f32 %v2417, %v2423
  %v2428 = vmul.f32 %v2424, 0.044715
  %v2429 = vmul.f32 %v2425, 0.044715
  %v2430 = vmul.f32 %v2426, 0.044715
  %v2431 = vmul.f32 %v2427, 0.044715
  %v2432 = vadd.f32 %v2402, %v2428
  %v2433 = vadd.f32 %v2407, %v2429
  %v2434 = vadd.f32 %v2412, %v2430
  %v2435 = vadd.f32 %v2417, %v2431
  %v2436 = vmul.f32 %v2432, 0.7978846
  %v2437 = vmul.f32 %v2433, 0.7978846
  %v2438 = vmul.f32 %v2434, 0.7978846
  %v2439 = vmul.f32 %v2435, 0.7978846
  %v2440 = vtanh.pop %v2436
  %v2441 = vtanh.pop %v2437
  %v2442 = vtanh.pop %v2438
  %v2443 = vtanh.pop %v2439
  %v2444 = vadd.f32 %v2440, 1.0
  %v2445 = vadd.f32 %v2441, 1.0
  %v2446 = vadd.f32 %v2442, 1.0
  %v2447 = vadd.f32 %v2443, 1.0
  %v2448 = vmul.f32 %v2444, 0.5
  %v2449 = vmul.f32 %v2445, 0.5
  %v2450 = vmul.f32 %v2446, 0.5
  %v2451 = vmul.f32 %v2447, 0.5
  %v2452 = vmul.f32 %v2402, %v2448
  %v2453 = vmul.f32 %v2407, %v2449
  %v2454 = vmul.f32 %v2412, %v2450
  %v2455 = vmul.f32 %v2417, %v2451
  %v2456 = vlaneseq
  %v2457 = vshrl.u32 %v2456, 7
  %v2458 = vsub.s32 5, %v2457
  %v2459 = vrot.slane %v25, %v2458
  %2476 = vrot.lane.b32.xlu0 %v1240, 96
  %v2477 = vpop.permute.xlu0 %2476
  %2478 = vrot.lane.b32.xlu0 %v1241, 96
  %v2479 = vpop.permute.xlu0 %2478
  %2480 = vrot.lane.b32.xlu0 %v1242, 96
  %v2481 = vpop.permute.xlu0 %2480
  %2482 = vrot.lane.b32.xlu0 %v1243, 96
  %v2483 = vpop.permute.xlu0 %2482
  %2484 = vrot.lane.b32.xlu0 %v1244, 96
  %v2485 = vpop.permute.xlu0 %2484
  %2486 = vrot.lane.b32.xlu0 %v1245, 96
  %v2487 = vpop.permute.xlu0 %2486
  %2488 = vrot.lane.b32.xlu0 %v1246, 96
  %v2489 = vpop.permute.xlu0 %2488
  %2490 = vrot.lane.b32.xlu0 %v1247, 96
  %v2491 = vpop.permute.xlu0 %2490
  %2492 = vrot.lane.b32.xlu0 %v1248, 96
  %v2493 = vpop.permute.xlu0 %2492
  %2494 = vrot.lane.b32.xlu0 %v1249, 96
  %v2495 = vpop.permute.xlu0 %2494
  %2496 = vrot.lane.b32.xlu0 %v1250, 96
  %v2497 = vpop.permute.xlu0 %2496
  %2498 = vrot.lane.b32.xlu0 %v1251, 96
  %v2499 = vpop.permute.xlu0 %2498
  %2500 = vrot.lane.b32.xlu0 %v1252, 96
  %v2501 = vpop.permute.xlu0 %2500
  %2502 = vrot.lane.b32.xlu0 %v1253, 96
  %v2503 = vpop.permute.xlu0 %2502
  %2504 = vrot.lane.b32.xlu0 %v1254, 96
  %v2505 = vpop.permute.xlu0 %2504
  %2506 = vrot.lane.b32.xlu0 %v1255, 96
  %v2507 = vpop.permute.xlu0 %2506
  %2524 = vmatprep.subr.mxu0 0.0
  %2525 = vmatpush1.msra.mxu0 %v2477
  %2526 = vmatprep.subr.mxu0 0.0
  %2527 = vmatpush1.msra.mxu0 %v2479
  %2528 = vmatprep.subr.mxu0 0.0
  %2529 = vmatpush1.msra.mxu0 %v2481
  %2530 = vmatprep.subr.mxu0 0.0
  %2531 = vmatpush1.msra.mxu0 %v2483
  %2532 = vmatprep.subr.mxu0 0.0
  %2533 = vmatpush1.msra.mxu0 %v2485
  %2534 = vmatprep.subr.mxu0 0.0
  %2535 = vmatpush1.msra.mxu0 %v2487
  %2536 = vmatprep.subr.mxu0 0.0
  %2537 = vmatpush1.msra.mxu0 %v2489
  %2538 = vmatprep.subr.mxu0 0.0
  %2539 = vmatpush1.msra.mxu0 %v2491
  %2540 = vmatprep.subr.mxu0 0.0
  %2541 = vmatpush1.msra.mxu0 %v2493
  %2542 = vmatprep.subr.mxu0 0.0
  %2543 = vmatpush1.msra.mxu0 %v2495
  %2544 = vmatprep.subr.mxu0 0.0
  %2545 = vmatpush1.msra.mxu0 %v2497
  %2546 = vmatprep.subr.mxu0 0.0
  %2547 = vmatpush1.msra.mxu0 %v2499
  %2548 = vmatprep.subr.mxu0 0.0
  %2549 = vmatpush1.msra.mxu0 %v2501
  %2550 = vmatprep.subr.mxu0 0.0
  %2551 = vmatpush1.msra.mxu0 %v2503
  %2552 = vmatprep.subr.mxu0 0.0
  %2553 = vmatpush1.msra.mxu0 %v2505
  %2554 = vmatprep.subr.mxu0 0.0
  %2555 = vmatpush1.msra.mxu0 %v2507
  %2556 = vmatprep.subr.mxu0 0.0
  %2557 = vmatpush1.msra.mxu0 0.0
  %2558 = vmatprep.subr.mxu0 0.0
  %2559 = vmatpush1.msra.mxu0 0.0
  %2560 = vmatprep.subr.mxu0 0.0
  %2561 = vmatpush1.msra.mxu0 0.0
  %2562 = vmatprep.subr.mxu0 0.0
  %2563 = vmatpush1.msra.mxu0 0.0
  %2564 = vmatprep.subr.mxu0 0.0
  %2565 = vmatpush1.msra.mxu0 0.0
  %2566 = vmatprep.subr.mxu0 0.0
  %2567 = vmatpush1.msra.mxu0 0.0
  %2568 = vmatprep.subr.mxu0 0.0
  %2569 = vmatpush1.msra.mxu0 0.0
  %2570 = vmatprep.subr.mxu0 0.0
  %2571 = vmatpush1.msra.mxu0 0.0
  %2572 = vmatprep.subr.mxu0 0.0
  %2573 = vmatpush1.msra.mxu0 0.0
  %2574 = vmatprep.subr.mxu0 0.0
  %2575 = vmatpush1.msra.mxu0 0.0
  %2576 = vmatprep.subr.mxu0 0.0
  %2577 = vmatpush1.msra.mxu0 0.0
  %2578 = vmatprep.subr.mxu0 0.0
  %2579 = vmatpush1.msra.mxu0 0.0
  %2580 = vmatprep.subr.mxu0 0.0
  %2581 = vmatpush1.msra.mxu0 0.0
  %2582 = vmatprep.subr.mxu0 0.0
  %2583 = vmatpush1.msra.mxu0 0.0
  %2584 = vmatprep.subr.mxu0 0.0
  %2585 = vmatpush1.msra.mxu0 0.0
  %2586 = vmatprep.subr.mxu0 0.0
  %2587 = vmatpush1.msra.mxu0 0.0
  %2588 = vmatprep.mubr.f32.mxu0 0.0
  %2589 = vmatmul.mubr.f32.gmra.mrb[0].mxu0 %v2452
  %v2590 = vpop.f32.mrb[0].mxu0
  %v2591 = vadd.f32 %v2459, %v2590
  %v2592 = vpop.f32.mrb[0].mxu0
  %2593 = vmatprep.mubr.f32.mxu0 0.0
  %2594 = vmatmul.mubr.f32.gmra.mrb[0].mxu0 %v2453
  %v2595 = vpop.f32.mrb[0].mxu0
  %v2596 = vadd.f32 %v2459, %v2595
  %v2597 = vpop.f32.mrb[0].mxu0
  %2598 = vmatprep.mubr.f32.mxu0 0.0
  %2599 = vmatmul.mubr.f32.gmra.mrb[0].mxu0 %v2454
  %v2600 = vpop.f32.mrb[0].mxu0
  %v2601 = vadd.f32 %v2459, %v2600
  %v2602 = vpop.f32.mrb[0].mxu0
  %2603 = vmatprep.mubr.f32.mxu0 0.0
  %2604 = vmatmul.mubr.f32.gmra.mrb[0].mxu0 %v2455
  %v2605 = vpop.f32.mrb[0].mxu0
  %v2606 = vadd.f32 %v2459, %v2605
  %v2607 = vpop.f32.mrb[0].mxu0
  %2608 = vdwg.mxu0
  %v2609 = vmul.f32 %v1379, %v2591
  %v2610 = vmul.f32 %v1380, %v2596
  %v2611 = vmul.f32 %v1381, %v2601
  %v2612 = vmul.f32 %v1382, %v2606
  %v2613 = vadd.f32 %v2247, %v2609
  %v2614 = vadd.f32 %v2248, %v2610
  %v2615 = vadd.f32 %v2249, %v2611
  %v2616 = vadd.f32 %v2250, %v2612
  %s2617 = scalar_lea.vmem %s1, 384
  %v2618 = vld [vmem:[%s2617] sm:$0xff]
  %v2619 = vld [vmem:[%s2617 + $0x8] sm:$0xff]
  %v2620 = vld [vmem:[%s2617 + $0x10] sm:$0xff]
  %v2621 = vld [vmem:[%s2617 + $0x18] sm:$0x3]
  %s2622 = scalar_lea.vmem %s1, 416
  %v2623 = vld [vmem:[%s2622] sm:$0xff]
  %v2624 = vld [vmem:[%s2622 + $0x8] sm:$0xff]
  %v2625 = vld [vmem:[%s2622 + $0x10] sm:$0xff]
  %v2626 = vld [vmem:[%s2622 + $0x18] sm:$0x3]
  %v2627 = vsel %vm34, %v2613, 0.0
  %2628 = vadd.xlane.f32.xlu0 %v2627
  %v2629 = vpop.xlane.xlu0 %2628
  %v2630 = vsel %vm34, %v2614, 0.0
  %2631 = vadd.xlane.f32.xlu0 %v2630
  %v2632 = vpop.xlane.xlu0 %2631
  %v2633 = vsel %vm34, %v2615, 0.0
  %2634 = vadd.xlane.f32.xlu0 %v2633
  %v2635 = vpop.xlane.xlu0 %2634
  %v2636 = vsel %vm170, %v2616, 0.0
  %2637 = vadd.xlane.f32.xlu0 %v2636
  %v2638 = vpop.xlane.xlu0 %2637
  %v2639 = vmul.f32 %v2629, %v174
  %v2640 = vmul.f32 %v2632, %v174
  %v2641 = vmul.f32 %v2635, %v174
  %v2642 = vmul.f32 %v2638, %v174
  %v2643 = vsub.f32 %v2613, %v2639
  %v2644 = vsub.f32 %v2614, %v2640
  %v2645 = vsub.f32 %v2615, %v2641
  %v2646 = vsub.f32 %v2616, %v2642
  %v2647 = vmul.f32 %v2643, %v2643
  %v2648 = vmul.f32 %v2644, %v2644
  %v2649 = vmul.f32 %v2645, %v2645
  %v2650 = vmul.f32 %v2646, %v2646
  %v2651 = vsel %vm34, %v2647, 0.0
  %2652 = vadd.xlane.f32.xlu0 %v2651
  %v2653 = vpop.xlane.xlu0 %2652
  %v2654 = vsel %vm34, %v2648, 0.0
  %2655 = vadd.xlane.f32.xlu0 %v2654
  %v2656 = vpop.xlane.xlu0 %2655
  %v2657 = vsel %vm34, %v2649, 0.0
  %2658 = vadd.xlane.f32.xlu0 %v2657
  %v2659 = vpop.xlane.xlu0 %2658
  %v2660 = vsel %vm170, %v2650, 0.0
  %2661 = vadd.xlane.f32.xlu0 %v2660
  %v2662 = vpop.xlane.xlu0 %2661
  %v2663 = vmul.f32 %v2653, %v174
  %v2664 = vmul.f32 %v2656, %v174
  %v2665 = vmul.f32 %v2659, %v174
  %v2666 = vmul.f32 %v2662, %v174
  %v2667 = vadd.f32 %v2663, 1e-06
  %v2668 = vadd.f32 %v2664, 1e-06
  %v2669 = vadd.f32 %v2665, 1e-06
  %v2670 = vadd.f32 %v2666, 1e-06
  %v2671 = vrsqrt.pop %v2667
  %v2672 = vrsqrt.pop %v2668
  %v2673 = vrsqrt.pop %v2669
  %v2674 = vrsqrt.pop %v2670
  %v2675 = vmul.f32 %v2643, %v2671
  %v2676 = vmul.f32 %v2644, %v2672
  %v2677 = vmul.f32 %v2645, %v2673
  %v2678 = vmul.f32 %v2646, %v2674
  %v2679 = vadd.f32 %v2623, 1.0
  %v2680 = vadd.f32 %v2624, 1.0
  %v2681 = vadd.f32 %v2625, 1.0
  %v2682 = vadd.f32 %v2626, 1.0
  %v2683 = vmul.f32 %v2675, %v2679
  %v2684 = vmul.f32 %v2676, %v2680
  %v2685 = vmul.f32 %v2677, %v2681
  %v2686 = vmul.f32 %v2678, %v2682
  %v2687 = vadd.f32 %v2683, %v2618
  %v2688 = vadd.f32 %v2684, %v2619
  %v2689 = vadd.f32 %v2685, %v2620
  %v2690 = vadd.f32 %v2686, %v2621
  %v2691 = vld [vmem:[%s3 + $0x148] sm:$0xff]
  %v2692 = vld [vmem:[%s3 + $0x150] sm:$0xff]
  %v2693 = vld [vmem:[%s3 + $0x158] sm:$0xff]
  %v2694 = vld [vmem:[%s3 + $0x160] sm:$0xff]
  %v2695 = vlaneseq
  %v2696 = vshrl.u32 %v2695, 7
  %v2697 = vsub.s32 6, %v2696
  %v2698 = vrot.slane %v25, %v2697
  %v2700 = vsel %vm34, %v2687, 0
  %v2703 = vsel %vm34, %v2688, 0
  %v2706 = vsel %vm34, %v2689, 0
  %v2709 = vsel %vm34, %v2690, 0
  %2711 = vmatprep.subr.mxu0 0.0
  %2712 = vmatpush1.msra.mxu0 %v2691
  %2713 = vmatprep.subr.mxu0 0.0
  %2714 = vmatpush1.msra.mxu0 %v2692
  %2715 = vmatprep.subr.mxu0 0.0
  %2716 = vmatpush1.msra.mxu0 %v2693
  %2717 = vmatprep.subr.mxu0 0.0
  %2718 = vmatpush1.msra.mxu0 %v2694
  %2719 = vmatprep.subr.mxu0 0.0
  %2720 = vmatpush1.msra.mxu0 0.0
  %2721 = vmatprep.subr.mxu0 0.0
  %2722 = vmatpush1.msra.mxu0 0.0
  %2723 = vmatprep.subr.mxu0 0.0
  %2724 = vmatpush1.msra.mxu0 0.0
  %2725 = vmatprep.subr.mxu0 0.0
  %2726 = vmatpush1.msra.mxu0 0.0
  %2727 = vmatprep.subr.mxu0 0.0
  %2728 = vmatpush1.msra.mxu0 0.0
  %2729 = vmatprep.subr.mxu0 0.0
  %2730 = vmatpush1.msra.mxu0 0.0
  %2731 = vmatprep.subr.mxu0 0.0
  %2732 = vmatpush1.msra.mxu0 0.0
  %2733 = vmatprep.subr.mxu0 0.0
  %2734 = vmatpush1.msra.mxu0 0.0
  %2735 = vmatprep.subr.mxu0 0.0
  %2736 = vmatpush1.msra.mxu0 0.0
  %2737 = vmatprep.subr.mxu0 0.0
  %2738 = vmatpush1.msra.mxu0 0.0
  %2739 = vmatprep.subr.mxu0 0.0
  %2740 = vmatpush1.msra.mxu0 0.0
  %2741 = vmatprep.subr.mxu0 0.0
  %2742 = vmatpush1.msra.mxu0 0.0
  %2743 = vmatprep.subr.mxu0 0.0
  %2744 = vmatpush1.msra.mxu0 0.0
  %2745 = vmatprep.subr.mxu0 0.0
  %2746 = vmatpush1.msra.mxu0 0.0
  %2747 = vmatprep.subr.mxu0 0.0
  %2748 = vmatpush1.msra.mxu0 0.0
  %2749 = vmatprep.subr.mxu0 0.0
  %2750 = vmatpush1.msra.mxu0 0.0
  %2751 = vmatprep.subr.mxu0 0.0
  %2752 = vmatpush1.msra.mxu0 0.0
  %2753 = vmatprep.subr.mxu0 0.0
  %2754 = vmatpush1.msra.mxu0 0.0
  %2755 = vmatprep.subr.mxu0 0.0
  %2756 = vmatpush1.msra.mxu0 0.0
  %2757 = vmatprep.subr.mxu0 0.0
  %2758 = vmatpush1.msra.mxu0 0.0
  %2759 = vmatprep.subr.mxu0 0.0
  %2760 = vmatpush1.msra.mxu0 0.0
  %2761 = vmatprep.subr.mxu0 0.0
  %2762 = vmatpush1.msra.mxu0 0.0
  %2763 = vmatprep.subr.mxu0 0.0
  %2764 = vmatpush1.msra.mxu0 0.0
  %2765 = vmatprep.subr.mxu0 0.0
  %2766 = vmatpush1.msra.mxu0 0.0
  %2767 = vmatprep.subr.mxu0 0.0
  %2768 = vmatpush1.msra.mxu0 0.0
  %2769 = vmatprep.subr.mxu0 0.0
  %2770 = vmatpush1.msra.mxu0 0.0
  %2771 = vmatprep.subr.mxu0 0.0
  %2772 = vmatpush1.msra.mxu0 0.0
  %2773 = vmatprep.subr.mxu0 0.0
  %2774 = vmatpush1.msra.mxu0 0.0
  %2775 = vmatprep.mubr.f32.mxu0 0.0
  %2776 = vmatmul.mubr.f32.gmra.mrb[0].mxu0 %v2700
  %v2777 = vpop.f32.mrb[0].mxu0
  %v2778 = vadd.f32 %v2698, %v2777
  %v2779 = vpop.f32.mrb[0].mxu0
  %2780 = vmatprep.mubr.f32.mxu0 0.0
  %2781 = vmatmul.mubr.f32.gmra.mrb[0].mxu0 %v2703
  %v2782 = vpop.f32.mrb[0].mxu0
  %v2783 = vadd.f32 %v2698, %v2782
  %v2784 = vpop.f32.mrb[0].mxu0
  %2785 = vmatprep.mubr.f32.mxu0 0.0
  %2786 = vmatmul.mubr.f32.gmra.mrb[0].mxu0 %v2706
  %v2787 = vpop.f32.mrb[0].mxu0
  %v2788 = vadd.f32 %v2698, %v2787
  %v2789 = vpop.f32.mrb[0].mxu0
  %2790 = vmatprep.mubr.f32.mxu0 0.0
  %2791 = vmatmul.mubr.f32.gmra.mrb[0].mxu0 %v2709
  %v2792 = vpop.f32.mrb[0].mxu0
  %v2793 = vadd.f32 %v2698, %v2792
  %v2794 = vpop.f32.mrb[0].mxu0
  %2795 = vdwg.mxu0
  %2796 = vst [vmem:[%s4] sm:$0xff] %v2778
  %2797 = vst [vmem:[%s4 + $0x8] sm:$0xff] %v2783
  %2798 = vst [vmem:[%s4 + $0x10] sm:$0xff] %v2788
  %2799 = vst [vmem:[%s4 + $0x18] sm:$0x3] %v2793
  // Predicated region
  $region18: #{policy_forward.21} parent=0 // pred_check
    _
  $region19: #{policy_forward.21} parent=0 // pred_check_branch
    %2801 = sbr.rel (0) target = $region21
  $region20: #{policy_forward.21} parent=0 // pred_region
    _
  $region21: #{policy_forward.21} parent=0 // pred_fallthru
    _
  // Predicated region
  $region22: #{policy_forward.21} parent=0 // pred_check
    _
  $region23: #{policy_forward.21} parent=0 // pred_check_branch
    %2803 = sbr.rel (0) target = $region25
  $region24: #{policy_forward.21} parent=0 // pred_region
    _
  $region25: #{policy_forward.21} parent=0 // pred_fallthru
    _

</llo_original>
